<compile_context>
chip_gen: v5e
topology: v5e:2x2
jax: 0.10.0
libtpu: 0.0.40
codegen_flags: <defaults>
</compile_context>

<pallas_src>
import functools

import jax
import jax.numpy as jnp
from jax import lax
from jax.experimental import pallas as pl
from jax.experimental.pallas import tpu as pltpu


def _round_up(x, m):
    return ((x + m - 1) // m) * m


# ----------------------------------------------------------------------------
# Pallas kernel: entire forward in one grid step.
# ----------------------------------------------------------------------------
def _semvec_to_mel_kernel(
    x_ref,                        # (T*Bp, Ip)
    wih0_ref, whh0_ref, b0_ref,   # (Ip, G) (Hp, G) (1, G)   with G = 4*Hp
    wih1_ref, whh1_ref, b1_ref,   # (Hp, G) ...
    wih2_ref, whh2_ref, b2_ref,
    wih3_ref, whh3_ref, b3_ref,
    wpost_ref, bpost_ref,         # (Hp, Op) (1, Op)
    mband_ref, bblk_ref,          # (3, 5, Op, Op) (3, Op)   banded mel-conv matrices
    wres_ref, bres_ref,           # (2, 5, Op) (1, Op)       lstm-residual depthwise conv
    out_ref,                      # (T*Bp, Op)
    gseq_ref,                     # VMEM scratch (T*Bp, G)   hoisted gate pre-activations
    hseq_ref,                     # VMEM scratch (T*Bp, Hp)  hidden-state sequence
    pad_lstm_ref,                 # VMEM scratch ((T+4)*Bp, Op) zero-halo lstm_out slab
    pad_y_ref,                    # VMEM scratch ((T+4)*Bp, Op) zero-halo mel slab
    *, bp,                        # padded batch (= sublanes per timestep), static
):
    TB = x_ref.shape[0]
    T = TB // bp
    Hp, G = whh0_ref.shape
    Op = out_ref.shape[1]
    PAD = 2 * bp                  # 2-timestep zero halo on each side

    # ---- hoisted (non-recurrent) input projection: one big matmul per layer ----
    def input_proj(src, wih_ref, b_ref):
        gseq_ref[...] = (
            jnp.dot(src, wih_ref[...], preferred_element_type=jnp.float32)
            + b_ref[...]
        )

    # ---- serial recurrence: only h @ W_hh remains per timestep ----
    def recurrence(whh_ref):
        def step(t, carry):
            h, c = carry
            row = pl.multiple_of(t * bp, bp)
            gates = gseq_ref[pl.ds(row, bp), :] + jnp.dot(
                h, whh_ref[...], preferred_element_type=jnp.float32
            )
            gi = jax.nn.sigmoid(gates[:, 0:Hp])          # 128-aligned gate slices
            gf = jax.nn.sigmoid(gates[:, Hp:2 * Hp])
            gg = jnp.tanh(gates[:, 2 * Hp:3 * Hp])
            go = jax.nn.sigmoid(gates[:, 3 * Hp:4 * Hp])
            c = gf * c + gi * gg
            h = go * jnp.tanh(c)
            hseq_ref[pl.ds(row, bp), :] = h
            return (h, c)

        z = jnp.zeros((bp, Hp), jnp.float32)
        lax.fori_loop(0, T, step, (z, z))

    # ---- 4-layer LSTM (zero initial states, no dropout in eval mode) ----
    input_proj(x_ref[...], wih0_ref, b0_ref)
    recurrence(whh0_ref)
    for wih_ref, whh_ref, b_ref in ((wih1_ref, whh1_ref, b1_ref),
                                    (wih2_ref, whh2_ref, b2_ref),
                                    (wih3_ref, whh3_ref, b3_ref)):
        input_proj(hseq_ref[...], wih_ref, b_ref)
        recurrence(whh_ref)

    # ---- zero the time halos of both slabs once ----
    zero_halo = jnp.zeros((PAD, Op), jnp.float32)
    pad_lstm_ref[pl.ds(0, PAD), :] = zero_halo
    pad_lstm_ref[pl.ds(PAD + TB, PAD), :] = zero_halo
    pad_y_ref[pl.ds(0, PAD), :] = zero_halo
    pad_y_ref[pl.ds(PAD + TB, PAD), :] = zero_halo

    # ---- post_linear over the whole sequence at once, written into its halo slab ----
    pad_lstm_ref[pl.ds(PAD, TB), :] = (
        jnp.dot(hseq_ref[...], wpost_ref[...], preferred_element_type=jnp.float32)
        + bpost_ref[...]
    )

    # Rows are (t, b)-flattened, so tap k (time offset k-2) of a slab is simply the
    # static window pad[pl.ds(k*bp, TB), :] of its zero-halo scratch copy.

    # ---- 3 x MelChannelConv1D (+ residual): 5 banded (Op,Op) matmuls per block ----
    src_ref = pad_lstm_ref                       # block 0 reads lstm_out directly
    for blk in range(3):
        acc = jnp.zeros((TB, Op), jnp.float32) + bblk_ref[blk]
        for k in range(5):
            acc = acc + jnp.dot(src_ref[pl.ds(k * bp, TB), :], mband_ref[blk, k],
                                preferred_element_type=jnp.float32)
        # residual add; mel_resid_activation == Identity
        pad_y_ref[pl.ds(PAD, TB), :] = acc + src_ref[pl.ds(PAD, TB), :]
        src_ref = pad_y_ref

    # ---- lstm_resid weighting: depthwise 5-tap conv over {lstm_out, y} ----
    acc = jnp.zeros((TB, Op), jnp.float32) + bres_ref[...]
    for k in range(5):
        acc = acc + pad_lstm_ref[pl.ds(k * bp, TB), :] * wres_ref[0, k]
        acc = acc + pad_y_ref[pl.ds(k * bp, TB), :] * wres_ref[1, k]

    # TODO(synk): non-default output_activation / mel_resid_activation modules are
    # not parameterized; the default (Identity) is what is implemented.
    out_ref[...] = acc


# ----------------------------------------------------------------------------
# Wrapper: matches SemVecToMelModel.forward(x) for the default configuration.
# ----------------------------------------------------------------------------
def semvec_to_mel_forward(x, params):
    B, T, I = x.shape
    H = params["w_hh_0"].shape[1]
    O = params["w_post"].shape[0]
    assert O % 3 == 0

    Hp = _round_up(H, 128)            # lane-align each LSTM gate block
    G = 4 * Hp
    Ip = _round_up(I, 128)            # lane-align the input features
    Op = _round_up(O, 128)            # lane-align mel channels (unmasked stores)
    Bp = _round_up(B, 8)              # full f32 sublane tiles
    TB = T * Bp
    TBP = (T + 4) * Bp                # with a 2-timestep zero halo on each side

    def gate_pad_cols(w):             # (K, 4H) -> (K, G), zero-pad each gate block
        K = w.shape[0]
        return jnp.pad(w.reshape(K, 4, H), ((0, 0), (0, 0), (0, Hp - H))).reshape(K, G)

    def prep_layer(l, in_pad):
        wih = gate_pad_cols(params[f"w_ih_{l}"].T)                 # (in, G)
        wih = jnp.pad(wih, ((0, in_pad - wih.shape[0]), (0, 0)))   # zero-pad contraction dim
        whh = jnp.pad(gate_pad_cols(params[f"w_hh_{l}"].T), ((0, Hp - H), (0, 0)))
        b = (params[f"b_ih_{l}"] + params[f"b_hh_{l}"]).reshape(1, 4, H)
        b = jnp.pad(b, ((0, 0), (0, 0), (0, Hp - H))).reshape(1, G)
        return wih, whh, b

    lstm_w = []
    lstm_w.extend(prep_layer(0, Ip))
    for l in range(1, 4):
        lstm_w.extend(prep_layer(l, Hp))

    wpost = jnp.pad(params["w_post"].T, ((0, Hp - H), (0, Op - O)))    # (Hp, Op)
    bpost = jnp.pad(params["b_post"].reshape(1, O), ((0, 0), (0, Op - O)))

    # MelChannelConv1D: output channel m = 3j+i reads input channels m-1, m, m+1,
    # so each time tap k is a tridiagonal (O, O) matrix Mk[p, m] (zero-padded to Op).
    def band_matrices(wconv):          # wconv: (3, O//3, 3, 5) -> (5, Op, Op)
        wd = jnp.transpose(wconv, (1, 0, 2, 3)).reshape(O, 3, 5)   # [m, c, k]
        mats = []
        for k in range(5):
            m = (jnp.diag(wd[1:, 0, k], k=1)        # input channel m-1
                 + jnp.diag(wd[:, 1, k])            # input channel m
                 + jnp.diag(wd[:-1, 2, k], k=-1))   # input channel m+1
            mats.append(jnp.pad(m, ((0, Op - O), (0, Op - O))))
        return jnp.stack(mats)

    mband = jnp.stack([band_matrices(params[f"wconv{b}"]) for b in range(3)])  # (3,5,Op,Op)
    bblk = jnp.stack([
        jnp.pad(jnp.transpose(params[f"bconv{b}"], (1, 0)).reshape(O), (0, Op - O))
        for b in range(3)])                                                    # (3, Op)

    wres = jnp.pad(jnp.transpose(params["w_res"], (1, 2, 0)),
                   ((0, 0), (0, 0), (0, Op - O)))            # (2, 5, Op)  [src, k, m]
    bres = jnp.pad(params["b_res"].reshape(1, O), ((0, 0), (0, Op - O)))

    # time-major, batch zero-padded to a full sublane tile, features zero-padded to
    # 128 lanes, then (t, b)-flattened
    x_tm = jnp.pad(jnp.transpose(x, (1, 0, 2)), ((0, 0), (0, Bp - B), (0, Ip - I)))
    x_flat = x_tm.reshape(TB, Ip)

    inputs = [x_flat, *lstm_w, wpost, bpost, mband, bblk, wres, bres]

    def full_spec(a):
        n = a.ndim
        return pl.BlockSpec(a.shape, lambda i, n=n: (0,) * n)

    out_flat = pl.pallas_call(
        functools.partial(_semvec_to_mel_kernel, bp=Bp),
        out_shape=jax.ShapeDtypeStruct((TB, Op), jnp.float32),
        grid=(1,),
        in_specs=[full_spec(a) for a in inputs],
        out_specs=pl.BlockSpec((TB, Op), lambda i: (0, 0)),
        scratch_shapes=[
            pltpu.VMEM((TB, G), jnp.float32),     # hoisted gate pre-activations (reused/layer)
            pltpu.VMEM((TB, Hp), jnp.float32),    # hidden-state sequence (reused/layer)
            pltpu.VMEM((TBP, Op), jnp.float32),   # zero-halo lstm_out slab (time shifts)
            pltpu.VMEM((TBP, Op), jnp.float32),   # zero-halo mel slab (time shifts)
        ],
        compiler_params=pltpu.CompilerParams(
            dimension_semantics=("arbitrary",),
            vmem_limit_bytes=64 * 1024 * 1024,
        ),
    )(*inputs)

    out = out_flat.reshape(T, Bp, Op)[:, :B, :O]
    return jnp.transpose(out, (1, 0, 2))         # (B, T, O)


# ----------------------------------------------------------------------------
# Pure-JAX reference (follows the PyTorch graph literally, for correctness).
# ----------------------------------------------------------------------------
def semvec_to_mel_reference(x, params):
    B, T, I = x.shape
    H = params["w_hh_0"].shape[1]
    O = params["w_post"].shape[0]
    J = O // 3
    hi = jax.lax.Precision.HIGHEST

    # 4-layer LSTM, batch_first, zero init, gate order i,f,g,o
    seq = jnp.transpose(x, (1, 0, 2))                       # (T, B, I)
    for l in range(4):
        w_ih = params[f"w_ih_{l}"]; w_hh = params[f"w_hh_{l}"]
        b = params[f"b_ih_{l}"] + params[f"b_hh_{l}"]

        def cell(carry, xt, w_ih=w_ih, w_hh=w_hh, b=b):
            h, c = carry
            gates = (jnp.dot(xt, w_ih.T, precision=hi)
                     + jnp.dot(h, w_hh.T, precision=hi) + b)
            i, f, g, o = jnp.split(gates, 4, axis=-1)
            c = jax.nn.sigmoid(f) * c + jax.nn.sigmoid(i) * jnp.tanh(g)
            h = jax.nn.sigmoid(o) * jnp.tanh(c)
            return (h, c), h

        init = (jnp.zeros((B, H), jnp.float32), jnp.zeros((B, H), jnp.float32))
        _, seq = jax.lax.scan(cell, init, seq)              # (T, B, H)

    out = jnp.einsum("tbh,oh->bot", seq, params["w_post"], precision=hi)
    out = out + params["b_post"][None, :, None]             # (B, O, T)
    lstm_output = out

    def mel_block(y, wconv, bconv):
        B_, O_, T_ = y.shape
        xs = [
            jnp.concatenate([jnp.zeros((B_, 1, T_), y.dtype), y[:, :-1, :]], axis=1),
            y,
            jnp.concatenate([y[:, 1:, :], jnp.zeros((B_, 1, T_), y.dtype)], axis=1),
        ]
        outs = []
        for i in range(3):
            xg = jnp.pad(xs[i].reshape(B_, J, 3, T_), ((0, 0), (0, 0), (0, 0), (2, 2)))
            o_i = jnp.zeros((B_, J, T_), y.dtype) + bconv[i][None, :, None]
            for k in range(5):
                o_i = o_i + jnp.einsum("bjct,jc->bjt", xg[..., k:k + T_],
                                       wconv[i, :, :, k], precision=hi)
            outs.append(o_i)
        return jnp.stack(outs, axis=2).reshape(B_, O_, T_)

    for blk in range(3):
        out = mel_block(out, params[f"wconv{blk}"], params[f"bconv{blk}"]) + out

    inter = jnp.pad(jnp.stack([lstm_output, out], axis=2),
                    ((0, 0), (0, 0), (0, 0), (2, 2)))       # (B, O, 2, T+4)
    res = jnp.zeros_like(out) + params["b_res"][None, :, None]
    for k in range(5):
        res = res + jnp.einsum("bmst,ms->bmt", inter[..., k:k + T],
                               params["w_res"][:, :, k], precision=hi)
    return jnp.transpose(res, (0, 2, 1))                    # (B, T, O)


# ----------------------------------------------------------------------------
# Deterministic parameter construction (PyTorch-structured shapes).
# ----------------------------------------------------------------------------
def make_params(key, input_size, hidden_size, output_size):
    H, O, I = hidden_size, output_size, input_size
    J = O // 3
    ks = iter(jax.random.split(key, 64))

    def u(shape, bound):
        return jax.random.uniform(next(ks), shape, jnp.float32, -bound, bound)

    p = {}
    kh = (1.0 / H) ** 0.5
    for l in range(4):
        in_dim = I if l == 0 else H
        p[f"w_ih_{l}"] = u((4 * H, in_dim), kh)
        p[f"w_hh_{l}"] = u((4 * H, H), kh)
        p[f"b_ih_{l}"] = u((4 * H,), kh)
        p[f"b_hh_{l}"] = u((4 * H,), kh)
    p["w_post"] = u((O, H), kh)
    p["b_post"] = u((O,), kh)
    kc = (1.0 / 15.0) ** 0.5
    for blk in range(3):
        p[f"wconv{blk}"] = u((3, J, 3, 5), kc)   # per conv layer i: (out_ch=J, in/grp=3, k=5)
        p[f"bconv{blk}"] = u((3, J), kc)
    kr = (1.0 / 10.0) ** 0.5
    p["w_res"] = u((O, 2, 5), kr)
    p["b_res"] = u((O,), kr)
    return p


if __name__ == "__main__":
    # Small config consistent with SemVecToMelModel (default structure, reduced sizes):
    # 4 LSTM layers, 3 mel-smoothing blocks (channel filter 3), time filter 5,
    # lstm_resid=True, Identity activations.
    B, T = 2, 8
    input_size, hidden_size, output_size = 64, 32, 24

    key = jax.random.PRNGKey(0)
    k_x, k_p = jax.random.split(key)
    x = jax.random.normal(k_x, (B, T, input_size), jnp.float32)
    params = make_params(k_p, input_size, hidden_size, output_size)

    out = semvec_to_mel_forward(x, params)
    out = jax.block_until_ready(out)

    ref = semvec_to_mel_reference(x, params)
    assert out.shape == (B, T, output_size)
    assert jnp.allclose(out, ref, atol=5e-3, rtol=5e-3), float(
        jnp.max(jnp.abs(out - ref)))

    print("KERNEL_OK")
</pallas_src>

<mosaic_0001>
module attributes {stable_mosaic.version = 11 : i64} {
  func.func @_semvec_to_mel_kernel(%arg0: i32, %arg1: memref<64x128xf32, #tpu.memory_space<vmem>>, %arg2: memref<128x512xf32, #tpu.memory_space<vmem>>, %arg3: memref<128x512xf32, #tpu.memory_space<vmem>>, %arg4: memref<1x512xf32, #tpu.memory_space<vmem>>, %arg5: memref<128x512xf32, #tpu.memory_space<vmem>>, %arg6: memref<128x512xf32, #tpu.memory_space<vmem>>, %arg7: memref<1x512xf32, #tpu.memory_space<vmem>>, %arg8: memref<128x512xf32, #tpu.memory_space<vmem>>, %arg9: memref<128x512xf32, #tpu.memory_space<vmem>>, %arg10: memref<1x512xf32, #tpu.memory_space<vmem>>, %arg11: memref<128x512xf32, #tpu.memory_space<vmem>>, %arg12: memref<128x512xf32, #tpu.memory_space<vmem>>, %arg13: memref<1x512xf32, #tpu.memory_space<vmem>>, %arg14: memref<128x128xf32, #tpu.memory_space<vmem>>, %arg15: memref<1x128xf32, #tpu.memory_space<vmem>>, %arg16: memref<3x5x128x128xf32, #tpu.memory_space<vmem>>, %arg17: memref<3x128xf32, #tpu.memory_space<vmem>>, %arg18: memref<2x5x128xf32, #tpu.memory_space<vmem>>, %arg19: memref<1x128xf32, #tpu.memory_space<vmem>>, %arg20: memref<64x128xf32, #tpu.memory_space<vmem>>, %arg21: memref<64x512xf32, #tpu.memory_space<vmem>>, %arg22: memref<64x128xf32, #tpu.memory_space<vmem>>, %arg23: memref<96x128xf32, #tpu.memory_space<vmem>>, %arg24: memref<96x128xf32, #tpu.memory_space<vmem>>) attributes {dimension_semantics = [#tpu.dimension_semantics<arbitrary>], iteration_bounds = array<i64: 1>, scalar_prefetch = 0 : i64, scratch_operands = 4 : i64, tpu.core_type = #tpu.core_type<tc>, window_params = [{pipeline_mode = #tpu.pipeline_mode<synchronous>, transform_indices = @transform_0, window_bounds = array<i64: 64, 128>}, {pipeline_mode = #tpu.pipeline_mode<synchronous>, transform_indices = @transform_1, window_bounds = array<i64: 128, 512>}, {pipeline_mode = #tpu.pipeline_mode<synchronous>, transform_indices = @transform_2, window_bounds = array<i64: 128, 512>}, {pipeline_mode = #tpu.pipeline_mode<synchronous>, transform_indices = @transform_3, window_bounds = array<i64: 1, 512>}, {pipeline_mode = #tpu.pipeline_mode<synchronous>, transform_indices = @transform_4, window_bounds = array<i64: 128, 512>}, {pipeline_mode = #tpu.pipeline_mode<synchronous>, transform_indices = @transform_5, window_bounds = array<i64: 128, 512>}, {pipeline_mode = #tpu.pipeline_mode<synchronous>, transform_indices = @transform_6, window_bounds = array<i64: 1, 512>}, {pipeline_mode = #tpu.pipeline_mode<synchronous>, transform_indices = @transform_7, window_bounds = array<i64: 128, 512>}, {pipeline_mode = #tpu.pipeline_mode<synchronous>, transform_indices = @transform_8, window_bounds = array<i64: 128, 512>}, {pipeline_mode = #tpu.pipeline_mode<synchronous>, transform_indices = @transform_9, window_bounds = array<i64: 1, 512>}, {pipeline_mode = #tpu.pipeline_mode<synchronous>, transform_indices = @transform_10, window_bounds = array<i64: 128, 512>}, {pipeline_mode = #tpu.pipeline_mode<synchronous>, transform_indices = @transform_11, window_bounds = array<i64: 128, 512>}, {pipeline_mode = #tpu.pipeline_mode<synchronous>, transform_indices = @transform_12, window_bounds = array<i64: 1, 512>}, {pipeline_mode = #tpu.pipeline_mode<synchronous>, transform_indices = @transform_13, window_bounds = array<i64: 128, 128>}, {pipeline_mode = #tpu.pipeline_mode<synchronous>, transform_indices = @transform_14, window_bounds = array<i64: 1, 128>}, {pipeline_mode = #tpu.pipeline_mode<synchronous>, transform_indices = @transform_15, window_bounds = array<i64: 3, 5, 128, 128>}, {pipeline_mode = #tpu.pipeline_mode<synchronous>, transform_indices = @transform_16, window_bounds = array<i64: 3, 128>}, {pipeline_mode = #tpu.pipeline_mode<synchronous>, transform_indices = @transform_17, window_bounds = array<i64: 2, 5, 128>}, {pipeline_mode = #tpu.pipeline_mode<synchronous>, transform_indices = @transform_18, window_bounds = array<i64: 1, 128>}, {pipeline_mode = #tpu.pipeline_mode<synchronous>, transform_indices = @transform_19, window_bounds = array<i64: 64, 128>}]} {
    %c0 = arith.constant 0 : index
    %c0_0 = arith.constant 0 : index
    %0 = vector.load %arg1[%c0, %c0_0] : memref<64x128xf32, #tpu.memory_space<vmem>>, vector<64x128xf32>
    %c0_1 = arith.constant 0 : index
    %c0_2 = arith.constant 0 : index
    %1 = vector.load %arg2[%c0_1, %c0_2] : memref<128x512xf32, #tpu.memory_space<vmem>>, vector<128x512xf32>
    %cst = arith.constant dense<0.000000e+00> : vector<64x512xf32>
    %2 = tpu.matmul %0, %1, %cst {dimension_numbers = #tpu.dot_dimension_numbers<[1], [0], [0], [1], [0, 0, 1, 1], [], []>} : vector<64x128xf32>, vector<128x512xf32>, vector<64x512xf32> -> vector<64x512xf32>
    %c0_3 = arith.constant 0 : index
    %c0_4 = arith.constant 0 : index
    %3 = vector.load %arg4[%c0_3, %c0_4] : memref<1x512xf32, #tpu.memory_space<vmem>>, vector<1x512xf32>
    %4 = vector.broadcast %3 : vector<1x512xf32> to vector<64x512xf32>
    %5 = arith.addf %2, %4 : vector<64x512xf32>
    %c0_5 = arith.constant 0 : index
    %c0_6 = arith.constant 0 : index
    %6 = vector.load %arg21[%c0_5, %c0_6] : memref<64x512xf32, #tpu.memory_space<vmem>>, vector<64x512xf32>
    tpu.vector_store %arg21[%c0_5, %c0_6], %5 {strides = array<i32>} : memref<64x512xf32, #tpu.memory_space<vmem>>, vector<64x512xf32>,
    %cst_7 = arith.constant 0.000000e+00 : f32
    %7 = vector.broadcast %cst_7 : f32 to vector<8x128xf32>
    %c0_i32 = arith.constant 0 : i32
    %c8_i32 = arith.constant 8 : i32
    %8 = arith.addi %c0_i32, %c8_i32 : i32
    %c1_i32 = arith.constant 1 : i32
    %9:2 = scf.for %arg25 = %c0_i32 to %8 step %c1_i32 iter_args(%arg26 = %7, %arg27 = %7) -> (vector<8x128xf32>, vector<8x128xf32>)  : i32 {
      %c8_i32_241 = arith.constant 8 : i32
      %229 = arith.muli %arg25, %c8_i32_241 : i32
      %230 = tpu.assume_multiple %229, 8 : i32
      %231 = arith.index_cast %230 : i32 to index
      %c0_242 = arith.constant 0 : index
      %232 = vector.load %arg21[%231, %c0_242] : memref<64x512xf32, #tpu.memory_space<vmem>>, vector<8x512xf32>
      %c0_243 = arith.constant 0 : index
      %c0_244 = arith.constant 0 : index
      %233 = vector.load %arg3[%c0_243, %c0_244] : memref<128x512xf32, #tpu.memory_space<vmem>>, vector<128x512xf32>
      %cst_245 = arith.constant dense<0.000000e+00> : vector<8x512xf32>
      %234 = tpu.matmul %arg26, %233, %cst_245 {dimension_numbers = #tpu.dot_dimension_numbers<[1], [0], [0], [1], [0, 0, 1, 1], [], []>} : vector<8x128xf32>, vector<128x512xf32>, vector<8x512xf32> -> vector<8x512xf32>
      %235 = arith.addf %232, %234 : vector<8x512xf32>
      %236 = vector.extract_strided_slice %235 {offsets = [0, 0], sizes = [8, 128], strides = [1, 1]} : vector<8x512xf32> to vector<8x128xf32>
      %237 = arith.negf %236 : vector<8x128xf32>
      %238 = math.exp %237 : vector<8x128xf32>
      %cst_246 = arith.constant 1.000000e+00 : f32
      %239 = vector.broadcast %cst_246 : f32 to vector<8x128xf32>
      %240 = arith.addf %239, %238 : vector<8x128xf32>
      %241 = arith.divf %239, %240 : vector<8x128xf32>
      %242 = vector.extract_strided_slice %235 {offsets = [0, 128], sizes = [8, 128], strides = [1, 1]} : vector<8x512xf32> to vector<8x128xf32>
      %243 = arith.negf %242 : vector<8x128xf32>
      %244 = math.exp %243 : vector<8x128xf32>
      %cst_247 = arith.constant 1.000000e+00 : f32
      %245 = vector.broadcast %cst_247 : f32 to vector<8x128xf32>
      %246 = arith.addf %245, %244 : vector<8x128xf32>
      %247 = arith.divf %245, %246 : vector<8x128xf32>
      %248 = vector.extract_strided_slice %235 {offsets = [0, 256], sizes = [8, 128], strides = [1, 1]} : vector<8x512xf32> to vector<8x128xf32>
      %249 = math.tanh %248 : vector<8x128xf32>
      %250 = vector.extract_strided_slice %235 {offsets = [0, 384], sizes = [8, 128], strides = [1, 1]} : vector<8x512xf32> to vector<8x128xf32>
      %251 = arith.negf %250 : vector<8x128xf32>
      %252 = math.exp %251 : vector<8x128xf32>
      %cst_248 = arith.constant 1.000000e+00 : f32
      %253 = vector.broadcast %cst_248 : f32 to vector<8x128xf32>
      %254 = arith.addf %253, %252 : vector<8x128xf32>
      %255 = arith.divf %253, %254 : vector<8x128xf32>
      %256 = arith.mulf %247, %arg27 : vector<8x128xf32>
      %257 = arith.mulf %241, %249 : vector<8x128xf32>
      %258 = arith.addf %256, %257 : vector<8x128xf32>
      %259 = math.tanh %258 : vector<8x128xf32>
      %260 = arith.mulf %255, %259 : vector<8x128xf32>
      %261 = arith.index_cast %230 : i32 to index
      %c0_249 = arith.constant 0 : index
      %262 = vector.load %arg22[%261, %c0_249] : memref<64x128xf32, #tpu.memory_space<vmem>>, vector<8x128xf32>
      tpu.vector_store %arg22[%261, %c0_249], %260 {strides = array<i32>} : memref<64x128xf32, #tpu.memory_space<vmem>>, vector<8x128xf32>,
      scf.yield %260, %258 : vector<8x128xf32>, vector<8x128xf32>
    }
    %c8_i32_8 = arith.constant 8 : i32
    %c0_9 = arith.constant 0 : index
    %c0_10 = arith.constant 0 : index
    %10 = vector.load %arg22[%c0_9, %c0_10] : memref<64x128xf32, #tpu.memory_space<vmem>>, vector<64x128xf32>
    %c0_11 = arith.constant 0 : index
    %c0_12 = arith.constant 0 : index
    %11 = vector.load %arg5[%c0_11, %c0_12] : memref<128x512xf32, #tpu.memory_space<vmem>>, vector<128x512xf32>
    %cst_13 = arith.constant dense<0.000000e+00> : vector<64x512xf32>
    %12 = tpu.matmul %10, %11, %cst_13 {dimension_numbers = #tpu.dot_dimension_numbers<[1], [0], [0], [1], [0, 0, 1, 1], [], []>} : vector<64x128xf32>, vector<128x512xf32>, vector<64x512xf32> -> vector<64x512xf32>
    %c0_14 = arith.constant 0 : index
    %c0_15 = arith.constant 0 : index
    %13 = vector.load %arg7[%c0_14, %c0_15] : memref<1x512xf32, #tpu.memory_space<vmem>>, vector<1x512xf32>
    %14 = vector.broadcast %13 : vector<1x512xf32> to vector<64x512xf32>
    %15 = arith.addf %12, %14 : vector<64x512xf32>
    %c0_16 = arith.constant 0 : index
    %c0_17 = arith.constant 0 : index
    %16 = vector.load %arg21[%c0_16, %c0_17] : memref<64x512xf32, #tpu.memory_space<vmem>>, vector<64x512xf32>
    tpu.vector_store %arg21[%c0_16, %c0_17], %15 {strides = array<i32>} : memref<64x512xf32, #tpu.memory_space<vmem>>, vector<64x512xf32>,
    %cst_18 = arith.constant 0.000000e+00 : f32
    %17 = vector.broadcast %cst_18 : f32 to vector<8x128xf32>
    %c0_i32_19 = arith.constant 0 : i32
    %c8_i32_20 = arith.constant 8 : i32
    %18 = arith.addi %c0_i32_19, %c8_i32_20 : i32
    %c1_i32_21 = arith.constant 1 : i32
    %19:2 = scf.for %arg25 = %c0_i32_19 to %18 step %c1_i32_21 iter_args(%arg26 = %17, %arg27 = %17) -> (vector<8x128xf32>, vector<8x128xf32>)  : i32 {
      %c8_i32_241 = arith.constant 8 : i32
      %229 = arith.muli %arg25, %c8_i32_241 : i32
      %230 = tpu.assume_multiple %229, 8 : i32
      %231 = arith.index_cast %230 : i32 to index
      %c0_242 = arith.constant 0 : index
      %232 = vector.load %arg21[%231, %c0_242] : memref<64x512xf32, #tpu.memory_space<vmem>>, vector<8x512xf32>
      %c0_243 = arith.constant 0 : index
      %c0_244 = arith.constant 0 : index
      %233 = vector.load %arg6[%c0_243, %c0_244] : memref<128x512xf32, #tpu.memory_space<vmem>>, vector<128x512xf32>
      %cst_245 = arith.constant dense<0.000000e+00> : vector<8x512xf32>
      %234 = tpu.matmul %arg26, %233, %cst_245 {dimension_numbers = #tpu.dot_dimension_numbers<[1], [0], [0], [1], [0, 0, 1, 1], [], []>} : vector<8x128xf32>, vector<128x512xf32>, vector<8x512xf32> -> vector<8x512xf32>
      %235 = arith.addf %232, %234 : vector<8x512xf32>
      %236 = vector.extract_strided_slice %235 {offsets = [0, 0], sizes = [8, 128], strides = [1, 1]} : vector<8x512xf32> to vector<8x128xf32>
      %237 = arith.negf %236 : vector<8x128xf32>
      %238 = math.exp %237 : vector<8x128xf32>
      %cst_246 = arith.constant 1.000000e+00 : f32
      %239 = vector.broadcast %cst_246 : f32 to vector<8x128xf32>
      %240 = arith.addf %239, %238 : vector<8x128xf32>
      %241 = arith.divf %239, %240 : vector<8x128xf32>
      %242 = vector.extract_strided_slice %235 {offsets = [0, 128], sizes = [8, 128], strides = [1, 1]} : vector<8x512xf32> to vector<8x128xf32>
      %243 = arith.negf %242 : vector<8x128xf32>
      %244 = math.exp %243 : vector<8x128xf32>
      %cst_247 = arith.constant 1.000000e+00 : f32
      %245 = vector.broadcast %cst_247 : f32 to vector<8x128xf32>
      %246 = arith.addf %245, %244 : vector<8x128xf32>
      %247 = arith.divf %245, %246 : vector<8x128xf32>
      %248 = vector.extract_strided_slice %235 {offsets = [0, 256], sizes = [8, 128], strides = [1, 1]} : vector<8x512xf32> to vector<8x128xf32>
      %249 = math.tanh %248 : vector<8x128xf32>
      %250 = vector.extract_strided_slice %235 {offsets = [0, 384], sizes = [8, 128], strides = [1, 1]} : vector<8x512xf32> to vector<8x128xf32>
      %251 = arith.negf %250 : vector<8x128xf32>
      %252 = math.exp %251 : vector<8x128xf32>
      %cst_248 = arith.constant 1.000000e+00 : f32
      %253 = vector.broadcast %cst_248 : f32 to vector<8x128xf32>
      %254 = arith.addf %253, %252 : vector<8x128xf32>
      %255 = arith.divf %253, %254 : vector<8x128xf32>
      %256 = arith.mulf %247, %arg27 : vector<8x128xf32>
      %257 = arith.mulf %241, %249 : vector<8x128xf32>
      %258 = arith.addf %256, %257 : vector<8x128xf32>
      %259 = math.tanh %258 : vector<8x128xf32>
      %260 = arith.mulf %255, %259 : vector<8x128xf32>
      %261 = arith.index_cast %230 : i32 to index
      %c0_249 = arith.constant 0 : index
      %262 = vector.load %arg22[%261, %c0_249] : memref<64x128xf32, #tpu.memory_space<vmem>>, vector<8x128xf32>
      tpu.vector_store %arg22[%261, %c0_249], %260 {strides = array<i32>} : memref<64x128xf32, #tpu.memory_space<vmem>>, vector<8x128xf32>,
      scf.yield %260, %258 : vector<8x128xf32>, vector<8x128xf32>
    }
    %c8_i32_22 = arith.constant 8 : i32
    %c0_23 = arith.constant 0 : index
    %c0_24 = arith.constant 0 : index
    %20 = vector.load %arg22[%c0_23, %c0_24] : memref<64x128xf32, #tpu.memory_space<vmem>>, vector<64x128xf32>
    %c0_25 = arith.constant 0 : index
    %c0_26 = arith.constant 0 : index
    %21 = vector.load %arg8[%c0_25, %c0_26] : memref<128x512xf32, #tpu.memory_space<vmem>>, vector<128x512xf32>
    %cst_27 = arith.constant dense<0.000000e+00> : vector<64x512xf32>
    %22 = tpu.matmul %20, %21, %cst_27 {dimension_numbers = #tpu.dot_dimension_numbers<[1], [0], [0], [1], [0, 0, 1, 1], [], []>} : vector<64x128xf32>, vector<128x512xf32>, vector<64x512xf32> -> vector<64x512xf32>
    %c0_28 = arith.constant 0 : index
    %c0_29 = arith.constant 0 : index
    %23 = vector.load %arg10[%c0_28, %c0_29] : memref<1x512xf32, #tpu.memory_space<vmem>>, vector<1x512xf32>
    %24 = vector.broadcast %23 : vector<1x512xf32> to vector<64x512xf32>
    %25 = arith.addf %22, %24 : vector<64x512xf32>
    %c0_30 = arith.constant 0 : index
    %c0_31 = arith.constant 0 : index
    %26 = vector.load %arg21[%c0_30, %c0_31] : memref<64x512xf32, #tpu.memory_space<vmem>>, vector<64x512xf32>
    tpu.vector_store %arg21[%c0_30, %c0_31], %25 {strides = array<i32>} : memref<64x512xf32, #tpu.memory_space<vmem>>, vector<64x512xf32>,
    %cst_32 = arith.constant 0.000000e+00 : f32
    %27 = vector.broadcast %cst_32 : f32 to vector<8x128xf32>
    %c0_i32_33 = arith.constant 0 : i32
    %c8_i32_34 = arith.constant 8 : i32
    %28 = arith.addi %c0_i32_33, %c8_i32_34 : i32
    %c1_i32_35 = arith.constant 1 : i32
    %29:2 = scf.for %arg25 = %c0_i32_33 to %28 step %c1_i32_35 iter_args(%arg26 = %27, %arg27 = %27) -> (vector<8x128xf32>, vector<8x128xf32>)  : i32 {
      %c8_i32_241 = arith.constant 8 : i32
      %229 = arith.muli %arg25, %c8_i32_241 : i32
      %230 = tpu.assume_multiple %229, 8 : i32
      %231 = arith.index_cast %230 : i32 to index
      %c0_242 = arith.constant 0 : index
      %232 = vector.load %arg21[%231, %c0_242] : memref<64x512xf32, #tpu.memory_space<vmem>>, vector<8x512xf32>
      %c0_243 = arith.constant 0 : index
      %c0_244 = arith.constant 0 : index
      %233 = vector.load %arg9[%c0_243, %c0_244] : memref<128x512xf32, #tpu.memory_space<vmem>>, vector<128x512xf32>
      %cst_245 = arith.constant dense<0.000000e+00> : vector<8x512xf32>
      %234 = tpu.matmul %arg26, %233, %cst_245 {dimension_numbers = #tpu.dot_dimension_numbers<[1], [0], [0], [1], [0, 0, 1, 1], [], []>} : vector<8x128xf32>, vector<128x512xf32>, vector<8x512xf32> -> vector<8x512xf32>
      %235 = arith.addf %232, %234 : vector<8x512xf32>
      %236 = vector.extract_strided_slice %235 {offsets = [0, 0], sizes = [8, 128], strides = [1, 1]} : vector<8x512xf32> to vector<8x128xf32>
      %237 = arith.negf %236 : vector<8x128xf32>
      %238 = math.exp %237 : vector<8x128xf32>
      %cst_246 = arith.constant 1.000000e+00 : f32
      %239 = vector.broadcast %cst_246 : f32 to vector<8x128xf32>
      %240 = arith.addf %239, %238 : vector<8x128xf32>
      %241 = arith.divf %239, %240 : vector<8x128xf32>
      %242 = vector.extract_strided_slice %235 {offsets = [0, 128], sizes = [8, 128], strides = [1, 1]} : vector<8x512xf32> to vector<8x128xf32>
      %243 = arith.negf %242 : vector<8x128xf32>
      %244 = math.exp %243 : vector<8x128xf32>
      %cst_247 = arith.constant 1.000000e+00 : f32
      %245 = vector.broadcast %cst_247 : f32 to vector<8x128xf32>
      %246 = arith.addf %245, %244 : vector<8x128xf32>
      %247 = arith.divf %245, %246 : vector<8x128xf32>
      %248 = vector.extract_strided_slice %235 {offsets = [0, 256], sizes = [8, 128], strides = [1, 1]} : vector<8x512xf32> to vector<8x128xf32>
      %249 = math.tanh %248 : vector<8x128xf32>
      %250 = vector.extract_strided_slice %235 {offsets = [0, 384], sizes = [8, 128], strides = [1, 1]} : vector<8x512xf32> to vector<8x128xf32>
      %251 = arith.negf %250 : vector<8x128xf32>
      %252 = math.exp %251 : vector<8x128xf32>
      %cst_248 = arith.constant 1.000000e+00 : f32
      %253 = vector.broadcast %cst_248 : f32 to vector<8x128xf32>
      %254 = arith.addf %253, %252 : vector<8x128xf32>
      %255 = arith.divf %253, %254 : vector<8x128xf32>
      %256 = arith.mulf %247, %arg27 : vector<8x128xf32>
      %257 = arith.mulf %241, %249 : vector<8x128xf32>
      %258 = arith.addf %256, %257 : vector<8x128xf32>
      %259 = math.tanh %258 : vector<8x128xf32>
      %260 = arith.mulf %255, %259 : vector<8x128xf32>
      %261 = arith.index_cast %230 : i32 to index
      %c0_249 = arith.constant 0 : index
      %262 = vector.load %arg22[%261, %c0_249] : memref<64x128xf32, #tpu.memory_space<vmem>>, vector<8x128xf32>
      tpu.vector_store %arg22[%261, %c0_249], %260 {strides = array<i32>} : memref<64x128xf32, #tpu.memory_space<vmem>>, vector<8x128xf32>,
      scf.yield %260, %258 : vector<8x128xf32>, vector<8x128xf32>
    }
    %c8_i32_36 = arith.constant 8 : i32
    %c0_37 = arith.constant 0 : index
    %c0_38 = arith.constant 0 : index
    %30 = vector.load %arg22[%c0_37, %c0_38] : memref<64x128xf32, #tpu.memory_space<vmem>>, vector<64x128xf32>
    %c0_39 = arith.constant 0 : index
    %c0_40 = arith.constant 0 : index
    %31 = vector.load %arg11[%c0_39, %c0_40] : memref<128x512xf32, #tpu.memory_space<vmem>>, vector<128x512xf32>
    %cst_41 = arith.constant dense<0.000000e+00> : vector<64x512xf32>
    %32 = tpu.matmul %30, %31, %cst_41 {dimension_numbers = #tpu.dot_dimension_numbers<[1], [0], [0], [1], [0, 0, 1, 1], [], []>} : vector<64x128xf32>, vector<128x512xf32>, vector<64x512xf32> -> vector<64x512xf32>
    %c0_42 = arith.constant 0 : index
    %c0_43 = arith.constant 0 : index
    %33 = vector.load %arg13[%c0_42, %c0_43] : memref<1x512xf32, #tpu.memory_space<vmem>>, vector<1x512xf32>
    %34 = vector.broadcast %33 : vector<1x512xf32> to vector<64x512xf32>
    %35 = arith.addf %32, %34 : vector<64x512xf32>
    %c0_44 = arith.constant 0 : index
    %c0_45 = arith.constant 0 : index
    %36 = vector.load %arg21[%c0_44, %c0_45] : memref<64x512xf32, #tpu.memory_space<vmem>>, vector<64x512xf32>
    tpu.vector_store %arg21[%c0_44, %c0_45], %35 {strides = array<i32>} : memref<64x512xf32, #tpu.memory_space<vmem>>, vector<64x512xf32>,
    %cst_46 = arith.constant 0.000000e+00 : f32
    %37 = vector.broadcast %cst_46 : f32 to vector<8x128xf32>
    %c0_i32_47 = arith.constant 0 : i32
    %c8_i32_48 = arith.constant 8 : i32
    %38 = arith.addi %c0_i32_47, %c8_i32_48 : i32
    %c1_i32_49 = arith.constant 1 : i32
    %39:2 = scf.for %arg25 = %c0_i32_47 to %38 step %c1_i32_49 iter_args(%arg26 = %37, %arg27 = %37) -> (vector<8x128xf32>, vector<8x128xf32>)  : i32 {
      %c8_i32_241 = arith.constant 8 : i32
      %229 = arith.muli %arg25, %c8_i32_241 : i32
      %230 = tpu.assume_multiple %229, 8 : i32
      %231 = arith.index_cast %230 : i32 to index
      %c0_242 = arith.constant 0 : index
      %232 = vector.load %arg21[%231, %c0_242] : memref<64x512xf32, #tpu.memory_space<vmem>>, vector<8x512xf32>
      %c0_243 = arith.constant 0 : index
      %c0_244 = arith.constant 0 : index
      %233 = vector.load %arg12[%c0_243, %c0_244] : memref<128x512xf32, #tpu.memory_space<vmem>>, vector<128x512xf32>
      %cst_245 = arith.constant dense<0.000000e+00> : vector<8x512xf32>
      %234 = tpu.matmul %arg26, %233, %cst_245 {dimension_numbers = #tpu.dot_dimension_numbers<[1], [0], [0], [1], [0, 0, 1, 1], [], []>} : vector<8x128xf32>, vector<128x512xf32>, vector<8x512xf32> -> vector<8x512xf32>
      %235 = arith.addf %232, %234 : vector<8x512xf32>
      %236 = vector.extract_strided_slice %235 {offsets = [0, 0], sizes = [8, 128], strides = [1, 1]} : vector<8x512xf32> to vector<8x128xf32>
      %237 = arith.negf %236 : vector<8x128xf32>
      %238 = math.exp %237 : vector<8x128xf32>
      %cst_246 = arith.constant 1.000000e+00 : f32
      %239 = vector.broadcast %cst_246 : f32 to vector<8x128xf32>
      %240 = arith.addf %239, %238 : vector<8x128xf32>
      %241 = arith.divf %239, %240 : vector<8x128xf32>
      %242 = vector.extract_strided_slice %235 {offsets = [0, 128], sizes = [8, 128], strides = [1, 1]} : vector<8x512xf32> to vector<8x128xf32>
      %243 = arith.negf %242 : vector<8x128xf32>
      %244 = math.exp %243 : vector<8x128xf32>
      %cst_247 = arith.constant 1.000000e+00 : f32
      %245 = vector.broadcast %cst_247 : f32 to vector<8x128xf32>
      %246 = arith.addf %245, %244 : vector<8x128xf32>
      %247 = arith.divf %245, %246 : vector<8x128xf32>
      %248 = vector.extract_strided_slice %235 {offsets = [0, 256], sizes = [8, 128], strides = [1, 1]} : vector<8x512xf32> to vector<8x128xf32>
      %249 = math.tanh %248 : vector<8x128xf32>
      %250 = vector.extract_strided_slice %235 {offsets = [0, 384], sizes = [8, 128], strides = [1, 1]} : vector<8x512xf32> to vector<8x128xf32>
      %251 = arith.negf %250 : vector<8x128xf32>
      %252 = math.exp %251 : vector<8x128xf32>
      %cst_248 = arith.constant 1.000000e+00 : f32
      %253 = vector.broadcast %cst_248 : f32 to vector<8x128xf32>
      %254 = arith.addf %253, %252 : vector<8x128xf32>
      %255 = arith.divf %253, %254 : vector<8x128xf32>
      %256 = arith.mulf %247, %arg27 : vector<8x128xf32>
      %257 = arith.mulf %241, %249 : vector<8x128xf32>
      %258 = arith.addf %256, %257 : vector<8x128xf32>
      %259 = math.tanh %258 : vector<8x128xf32>
      %260 = arith.mulf %255, %259 : vector<8x128xf32>
      %261 = arith.index_cast %230 : i32 to index
      %c0_249 = arith.constant 0 : index
      %262 = vector.load %arg22[%261, %c0_249] : memref<64x128xf32, #tpu.memory_space<vmem>>, vector<8x128xf32>
      tpu.vector_store %arg22[%261, %c0_249], %260 {strides = array<i32>} : memref<64x128xf32, #tpu.memory_space<vmem>>, vector<8x128xf32>,
      scf.yield %260, %258 : vector<8x128xf32>, vector<8x128xf32>
    }
    %c8_i32_50 = arith.constant 8 : i32
    %cst_51 = arith.constant 0.000000e+00 : f32
    %40 = vector.broadcast %cst_51 : f32 to vector<16x128xf32>
    %c0_52 = arith.constant 0 : index
    %c0_53 = arith.constant 0 : index
    %41 = vector.load %arg23[%c0_52, %c0_53] : memref<96x128xf32, #tpu.memory_space<vmem>>, vector<16x128xf32>
    tpu.vector_store %arg23[%c0_52, %c0_53], %40 {strides = array<i32>} : memref<96x128xf32, #tpu.memory_space<vmem>>, vector<16x128xf32>,
    %c80 = arith.constant 80 : index
    %c0_54 = arith.constant 0 : index
    %42 = vector.load %arg23[%c80, %c0_54] : memref<96x128xf32, #tpu.memory_space<vmem>>, vector<16x128xf32>
    tpu.vector_store %arg23[%c80, %c0_54], %40 {strides = array<i32>} : memref<96x128xf32, #tpu.memory_space<vmem>>, vector<16x128xf32>,
    %c0_55 = arith.constant 0 : index
    %c0_56 = arith.constant 0 : index
    %43 = vector.load %arg24[%c0_55, %c0_56] : memref<96x128xf32, #tpu.memory_space<vmem>>, vector<16x128xf32>
    tpu.vector_store %arg24[%c0_55, %c0_56], %40 {strides = array<i32>} : memref<96x128xf32, #tpu.memory_space<vmem>>, vector<16x128xf32>,
    %c80_57 = arith.constant 80 : index
    %c0_58 = arith.constant 0 : index
    %44 = vector.load %arg24[%c80_57, %c0_58] : memref<96x128xf32, #tpu.memory_space<vmem>>, vector<16x128xf32>
    tpu.vector_store %arg24[%c80_57, %c0_58], %40 {strides = array<i32>} : memref<96x128xf32, #tpu.memory_space<vmem>>, vector<16x128xf32>,
    %c0_59 = arith.constant 0 : index
    %c0_60 = arith.constant 0 : index
    %45 = vector.load %arg22[%c0_59, %c0_60] : memref<64x128xf32, #tpu.memory_space<vmem>>, vector<64x128xf32>
    %c0_61 = arith.constant 0 : index
    %c0_62 = arith.constant 0 : index
    %46 = vector.load %arg14[%c0_61, %c0_62] : memref<128x128xf32, #tpu.memory_space<vmem>>, vector<128x128xf32>
    %cst_63 = arith.constant dense<0.000000e+00> : vector<64x128xf32>
    %47 = tpu.matmul %45, %46, %cst_63 {dimension_numbers = #tpu.dot_dimension_numbers<[1], [0], [0], [1], [0, 0, 1, 1], [], []>} : vector<64x128xf32>, vector<128x128xf32>, vector<64x128xf32> -> vector<64x128xf32>
    %c0_64 = arith.constant 0 : index
    %c0_65 = arith.constant 0 : index
    %48 = vector.load %arg15[%c0_64, %c0_65] : memref<1x128xf32, #tpu.memory_space<vmem>>, vector<1x128xf32>
    %49 = vector.broadcast %48 : vector<1x128xf32> to vector<64x128xf32>
    %50 = arith.addf %47, %49 : vector<64x128xf32>
    %c16 = arith.constant 16 : index
    %c0_66 = arith.constant 0 : index
    %51 = vector.load %arg23[%c16, %c0_66] : memref<96x128xf32, #tpu.memory_space<vmem>>, vector<64x128xf32>
    tpu.vector_store %arg23[%c16, %c0_66], %50 {strides = array<i32>} : memref<96x128xf32, #tpu.memory_space<vmem>>, vector<64x128xf32>,
    %cst_67 = arith.constant 0.000000e+00 : f32
    %52 = vector.broadcast %cst_67 : f32 to vector<64x128xf32>
    %c0_68 = arith.constant 0 : index
    %c0_69 = arith.constant 0 : index
    %53 = vector.load %arg17[%c0_68, %c0_69] : memref<3x128xf32, #tpu.memory_space<vmem>>, vector<1x128xf32>
    %54 = vector.shape_cast %53 : vector<1x128xf32> to vector<128xf32>
    %55 = vector.shape_cast %54 : vector<128xf32> to vector<1x128xf32>
    %56 = vector.broadcast %55 : vector<1x128xf32> to vector<64x128xf32>
    %57 = arith.addf %52, %56 : vector<64x128xf32>
    %c0_70 = arith.constant 0 : index
    %c0_71 = arith.constant 0 : index
    %58 = vector.load %arg23[%c0_70, %c0_71] : memref<96x128xf32, #tpu.memory_space<vmem>>, vector<64x128xf32>
    %c0_72 = arith.constant 0 : index
    %c0_73 = arith.constant 0 : index
    %c0_74 = arith.constant 0 : index
    %c0_75 = arith.constant 0 : index
    %59 = vector.load %arg16[%c0_72, %c0_73, %c0_74, %c0_75] : memref<3x5x128x128xf32, #tpu.memory_space<vmem>>, vector<1x1x128x128xf32>
    %60 = vector.shape_cast %59 : vector<1x1x128x128xf32> to vector<128x128xf32>
    %cst_76 = arith.constant dense<0.000000e+00> : vector<64x128xf32>
    %61 = tpu.matmul %58, %60, %cst_76 {dimension_numbers = #tpu.dot_dimension_numbers<[1], [0], [0], [1], [0, 0, 1, 1], [], []>} : vector<64x128xf32>, vector<128x128xf32>, vector<64x128xf32> -> vector<64x128xf32>
    %62 = arith.addf %57, %61 : vector<64x128xf32>
    %c8 = arith.constant 8 : index
    %c0_77 = arith.constant 0 : index
    %63 = vector.load %arg23[%c8, %c0_77] : memref<96x128xf32, #tpu.memory_space<vmem>>, vector<64x128xf32>
    %c0_78 = arith.constant 0 : index
    %c1 = arith.constant 1 : index
    %c0_79 = arith.constant 0 : index
    %c0_80 = arith.constant 0 : index
    %64 = vector.load %arg16[%c0_78, %c1, %c0_79, %c0_80] : memref<3x5x128x128xf32, #tpu.memory_space<vmem>>, vector<1x1x128x128xf32>
    %65 = vector.shape_cast %64 : vector<1x1x128x128xf32> to vector<128x128xf32>
    %cst_81 = arith.constant dense<0.000000e+00> : vector<64x128xf32>
    %66 = tpu.matmul %63, %65, %cst_81 {dimension_numbers = #tpu.dot_dimension_numbers<[1], [0], [0], [1], [0, 0, 1, 1], [], []>} : vector<64x128xf32>, vector<128x128xf32>, vector<64x128xf32> -> vector<64x128xf32>
    %67 = arith.addf %62, %66 : vector<64x128xf32>
    %c16_82 = arith.constant 16 : index
    %c0_83 = arith.constant 0 : index
    %68 = vector.load %arg23[%c16_82, %c0_83] : memref<96x128xf32, #tpu.memory_space<vmem>>, vector<64x128xf32>
    %c0_84 = arith.constant 0 : index
    %c2 = arith.constant 2 : index
    %c0_85 = arith.constant 0 : index
    %c0_86 = arith.constant 0 : index
    %69 = vector.load %arg16[%c0_84, %c2, %c0_85, %c0_86] : memref<3x5x128x128xf32, #tpu.memory_space<vmem>>, vector<1x1x128x128xf32>
    %70 = vector.shape_cast %69 : vector<1x1x128x128xf32> to vector<128x128xf32>
    %cst_87 = arith.constant dense<0.000000e+00> : vector<64x128xf32>
    %71 = tpu.matmul %68, %70, %cst_87 {dimension_numbers = #tpu.dot_dimension_numbers<[1], [0], [0], [1], [0, 0, 1, 1], [], []>} : vector<64x128xf32>, vector<128x128xf32>, vector<64x128xf32> -> vector<64x128xf32>
    %72 = arith.addf %67, %71 : vector<64x128xf32>
    %c24 = arith.constant 24 : index
    %c0_88 = arith.constant 0 : index
    %73 = vector.load %arg23[%c24, %c0_88] : memref<96x128xf32, #tpu.memory_space<vmem>>, vector<64x128xf32>
    %c0_89 = arith.constant 0 : index
    %c3 = arith.constant 3 : index
    %c0_90 = arith.constant 0 : index
    %c0_91 = arith.constant 0 : index
    %74 = vector.load %arg16[%c0_89, %c3, %c0_90, %c0_91] : memref<3x5x128x128xf32, #tpu.memory_space<vmem>>, vector<1x1x128x128xf32>
    %75 = vector.shape_cast %74 : vector<1x1x128x128xf32> to vector<128x128xf32>
    %cst_92 = arith.constant dense<0.000000e+00> : vector<64x128xf32>
    %76 = tpu.matmul %73, %75, %cst_92 {dimension_numbers = #tpu.dot_dimension_numbers<[1], [0], [0], [1], [0, 0, 1, 1], [], []>} : vector<64x128xf32>, vector<128x128xf32>, vector<64x128xf32> -> vector<64x128xf32>
    %77 = arith.addf %72, %76 : vector<64x128xf32>
    %c32 = arith.constant 32 : index
    %c0_93 = arith.constant 0 : index
    %78 = vector.load %arg23[%c32, %c0_93] : memref<96x128xf32, #tpu.memory_space<vmem>>, vector<64x128xf32>
    %c0_94 = arith.constant 0 : index
    %c4 = arith.constant 4 : index
    %c0_95 = arith.constant 0 : index
    %c0_96 = arith.constant 0 : index
    %79 = vector.load %arg16[%c0_94, %c4, %c0_95, %c0_96] : memref<3x5x128x128xf32, #tpu.memory_space<vmem>>, vector<1x1x128x128xf32>
    %80 = vector.shape_cast %79 : vector<1x1x128x128xf32> to vector<128x128xf32>
    %cst_97 = arith.constant dense<0.000000e+00> : vector<64x128xf32>
    %81 = tpu.matmul %78, %80, %cst_97 {dimension_numbers = #tpu.dot_dimension_numbers<[1], [0], [0], [1], [0, 0, 1, 1], [], []>} : vector<64x128xf32>, vector<128x128xf32>, vector<64x128xf32> -> vector<64x128xf32>
    %82 = arith.addf %77, %81 : vector<64x128xf32>
    %c16_98 = arith.constant 16 : index
    %c0_99 = arith.constant 0 : index
    %83 = vector.load %arg23[%c16_98, %c0_99] : memref<96x128xf32, #tpu.memory_space<vmem>>, vector<64x128xf32>
    %84 = arith.addf %82, %83 : vector<64x128xf32>
    %c16_100 = arith.constant 16 : index
    %c0_101 = arith.constant 0 : index
    %85 = vector.load %arg24[%c16_100, %c0_101] : memref<96x128xf32, #tpu.memory_space<vmem>>, vector<64x128xf32>
    tpu.vector_store %arg24[%c16_100, %c0_101], %84 {strides = array<i32>} : memref<96x128xf32, #tpu.memory_space<vmem>>, vector<64x128xf32>,
    %cst_102 = arith.constant 0.000000e+00 : f32
    %86 = vector.broadcast %cst_102 : f32 to vector<64x128xf32>
    %c1_103 = arith.constant 1 : index
    %c0_104 = arith.constant 0 : index
    %87 = vector.load %arg17[%c1_103, %c0_104] : memref<3x128xf32, #tpu.memory_space<vmem>>, vector<1x128xf32>
    %88 = vector.shape_cast %87 : vector<1x128xf32> to vector<128xf32>
    %89 = vector.shape_cast %88 : vector<128xf32> to vector<1x128xf32>
    %90 = vector.broadcast %89 : vector<1x128xf32> to vector<64x128xf32>
    %91 = arith.addf %86, %90 : vector<64x128xf32>
    %c0_105 = arith.constant 0 : index
    %c0_106 = arith.constant 0 : index
    %92 = vector.load %arg24[%c0_105, %c0_106] : memref<96x128xf32, #tpu.memory_space<vmem>>, vector<64x128xf32>
    %c1_107 = arith.constant 1 : index
    %c0_108 = arith.constant 0 : index
    %c0_109 = arith.constant 0 : index
    %c0_110 = arith.constant 0 : index
    %93 = vector.load %arg16[%c1_107, %c0_108, %c0_109, %c0_110] : memref<3x5x128x128xf32, #tpu.memory_space<vmem>>, vector<1x1x128x128xf32>
    %94 = vector.shape_cast %93 : vector<1x1x128x128xf32> to vector<128x128xf32>
    %cst_111 = arith.constant dense<0.000000e+00> : vector<64x128xf32>
    %95 = tpu.matmul %92, %94, %cst_111 {dimension_numbers = #tpu.dot_dimension_numbers<[1], [0], [0], [1], [0, 0, 1, 1], [], []>} : vector<64x128xf32>, vector<128x128xf32>, vector<64x128xf32> -> vector<64x128xf32>
    %96 = arith.addf %91, %95 : vector<64x128xf32>
    %c8_112 = arith.constant 8 : index
    %c0_113 = arith.constant 0 : index
    %97 = vector.load %arg24[%c8_112, %c0_113] : memref<96x128xf32, #tpu.memory_space<vmem>>, vector<64x128xf32>
    %c1_114 = arith.constant 1 : index
    %c1_115 = arith.constant 1 : index
    %c0_116 = arith.constant 0 : index
    %c0_117 = arith.constant 0 : index
    %98 = vector.load %arg16[%c1_114, %c1_115, %c0_116, %c0_117] : memref<3x5x128x128xf32, #tpu.memory_space<vmem>>, vector<1x1x128x128xf32>
    %99 = vector.shape_cast %98 : vector<1x1x128x128xf32> to vector<128x128xf32>
    %cst_118 = arith.constant dense<0.000000e+00> : vector<64x128xf32>
    %100 = tpu.matmul %97, %99, %cst_118 {dimension_numbers = #tpu.dot_dimension_numbers<[1], [0], [0], [1], [0, 0, 1, 1], [], []>} : vector<64x128xf32>, vector<128x128xf32>, vector<64x128xf32> -> vector<64x128xf32>
    %101 = arith.addf %96, %100 : vector<64x128xf32>
    %c16_119 = arith.constant 16 : index
    %c0_120 = arith.constant 0 : index
    %102 = vector.load %arg24[%c16_119, %c0_120] : memref<96x128xf32, #tpu.memory_space<vmem>>, vector<64x128xf32>
    %c1_121 = arith.constant 1 : index
    %c2_122 = arith.constant 2 : index
    %c0_123 = arith.constant 0 : index
    %c0_124 = arith.constant 0 : index
    %103 = vector.load %arg16[%c1_121, %c2_122, %c0_123, %c0_124] : memref<3x5x128x128xf32, #tpu.memory_space<vmem>>, vector<1x1x128x128xf32>
    %104 = vector.shape_cast %103 : vector<1x1x128x128xf32> to vector<128x128xf32>
    %cst_125 = arith.constant dense<0.000000e+00> : vector<64x128xf32>
    %105 = tpu.matmul %102, %104, %cst_125 {dimension_numbers = #tpu.dot_dimension_numbers<[1], [0], [0], [1], [0, 0, 1, 1], [], []>} : vector<64x128xf32>, vector<128x128xf32>, vector<64x128xf32> -> vector<64x128xf32>
    %106 = arith.addf %101, %105 : vector<64x128xf32>
    %c24_126 = arith.constant 24 : index
    %c0_127 = arith.constant 0 : index
    %107 = vector.load %arg24[%c24_126, %c0_127] : memref<96x128xf32, #tpu.memory_space<vmem>>, vector<64x128xf32>
    %c1_128 = arith.constant 1 : index
    %c3_129 = arith.constant 3 : index
    %c0_130 = arith.constant 0 : index
    %c0_131 = arith.constant 0 : index
    %108 = vector.load %arg16[%c1_128, %c3_129, %c0_130, %c0_131] : memref<3x5x128x128xf32, #tpu.memory_space<vmem>>, vector<1x1x128x128xf32>
    %109 = vector.shape_cast %108 : vector<1x1x128x128xf32> to vector<128x128xf32>
    %cst_132 = arith.constant dense<0.000000e+00> : vector<64x128xf32>
    %110 = tpu.matmul %107, %109, %cst_132 {dimension_numbers = #tpu.dot_dimension_numbers<[1], [0], [0], [1], [0, 0, 1, 1], [], []>} : vector<64x128xf32>, vector<128x128xf32>, vector<64x128xf32> -> vector<64x128xf32>
    %111 = arith.addf %106, %110 : vector<64x128xf32>
    %c32_133 = arith.constant 32 : index
    %c0_134 = arith.constant 0 : index
    %112 = vector.load %arg24[%c32_133, %c0_134] : memref<96x128xf32, #tpu.memory_space<vmem>>, vector<64x128xf32>
    %c1_135 = arith.constant 1 : index
    %c4_136 = arith.constant 4 : index
    %c0_137 = arith.constant 0 : index
    %c0_138 = arith.constant 0 : index
    %113 = vector.load %arg16[%c1_135, %c4_136, %c0_137, %c0_138] : memref<3x5x128x128xf32, #tpu.memory_space<vmem>>, vector<1x1x128x128xf32>
    %114 = vector.shape_cast %113 : vector<1x1x128x128xf32> to vector<128x128xf32>
    %cst_139 = arith.constant dense<0.000000e+00> : vector<64x128xf32>
    %115 = tpu.matmul %112, %114, %cst_139 {dimension_numbers = #tpu.dot_dimension_numbers<[1], [0], [0], [1], [0, 0, 1, 1], [], []>} : vector<64x128xf32>, vector<128x128xf32>, vector<64x128xf32> -> vector<64x128xf32>
    %116 = arith.addf %111, %115 : vector<64x128xf32>
    %c16_140 = arith.constant 16 : index
    %c0_141 = arith.constant 0 : index
    %117 = vector.load %arg24[%c16_140, %c0_141] : memref<96x128xf32, #tpu.memory_space<vmem>>, vector<64x128xf32>
    %118 = arith.addf %116, %117 : vector<64x128xf32>
    %c16_142 = arith.constant 16 : index
    %c0_143 = arith.constant 0 : index
    %119 = vector.load %arg24[%c16_142, %c0_143] : memref<96x128xf32, #tpu.memory_space<vmem>>, vector<64x128xf32>
    tpu.vector_store %arg24[%c16_142, %c0_143], %118 {strides = array<i32>} : memref<96x128xf32, #tpu.memory_space<vmem>>, vector<64x128xf32>,
    %cst_144 = arith.constant 0.000000e+00 : f32
    %120 = vector.broadcast %cst_144 : f32 to vector<64x128xf32>
    %c2_145 = arith.constant 2 : index
    %c0_146 = arith.constant 0 : index
    %121 = vector.load %arg17[%c2_145, %c0_146] : memref<3x128xf32, #tpu.memory_space<vmem>>, vector<1x128xf32>
    %122 = vector.shape_cast %121 : vector<1x128xf32> to vector<128xf32>
    %123 = vector.shape_cast %122 : vector<128xf32> to vector<1x128xf32>
    %124 = vector.broadcast %123 : vector<1x128xf32> to vector<64x128xf32>
    %125 = arith.addf %120, %124 : vector<64x128xf32>
    %c0_147 = arith.constant 0 : index
    %c0_148 = arith.constant 0 : index
    %126 = vector.load %arg24[%c0_147, %c0_148] : memref<96x128xf32, #tpu.memory_space<vmem>>, vector<64x128xf32>
    %c2_149 = arith.constant 2 : index
    %c0_150 = arith.constant 0 : index
    %c0_151 = arith.constant 0 : index
    %c0_152 = arith.constant 0 : index
    %127 = vector.load %arg16[%c2_149, %c0_150, %c0_151, %c0_152] : memref<3x5x128x128xf32, #tpu.memory_space<vmem>>, vector<1x1x128x128xf32>
    %128 = vector.shape_cast %127 : vector<1x1x128x128xf32> to vector<128x128xf32>
    %cst_153 = arith.constant dense<0.000000e+00> : vector<64x128xf32>
    %129 = tpu.matmul %126, %128, %cst_153 {dimension_numbers = #tpu.dot_dimension_numbers<[1], [0], [0], [1], [0, 0, 1, 1], [], []>} : vector<64x128xf32>, vector<128x128xf32>, vector<64x128xf32> -> vector<64x128xf32>
    %130 = arith.addf %125, %129 : vector<64x128xf32>
    %c8_154 = arith.constant 8 : index
    %c0_155 = arith.constant 0 : index
    %131 = vector.load %arg24[%c8_154, %c0_155] : memref<96x128xf32, #tpu.memory_space<vmem>>, vector<64x128xf32>
    %c2_156 = arith.constant 2 : index
    %c1_157 = arith.constant 1 : index
    %c0_158 = arith.constant 0 : index
    %c0_159 = arith.constant 0 : index
    %132 = vector.load %arg16[%c2_156, %c1_157, %c0_158, %c0_159] : memref<3x5x128x128xf32, #tpu.memory_space<vmem>>, vector<1x1x128x128xf32>
    %133 = vector.shape_cast %132 : vector<1x1x128x128xf32> to vector<128x128xf32>
    %cst_160 = arith.constant dense<0.000000e+00> : vector<64x128xf32>
    %134 = tpu.matmul %131, %133, %cst_160 {dimension_numbers = #tpu.dot_dimension_numbers<[1], [0], [0], [1], [0, 0, 1, 1], [], []>} : vector<64x128xf32>, vector<128x128xf32>, vector<64x128xf32> -> vector<64x128xf32>
    %135 = arith.addf %130, %134 : vector<64x128xf32>
    %c16_161 = arith.constant 16 : index
    %c0_162 = arith.constant 0 : index
    %136 = vector.load %arg24[%c16_161, %c0_162] : memref<96x128xf32, #tpu.memory_space<vmem>>, vector<64x128xf32>
    %c2_163 = arith.constant 2 : index
    %c2_164 = arith.constant 2 : index
    %c0_165 = arith.constant 0 : index
    %c0_166 = arith.constant 0 : index
    %137 = vector.load %arg16[%c2_163, %c2_164, %c0_165, %c0_166] : memref<3x5x128x128xf32, #tpu.memory_space<vmem>>, vector<1x1x128x128xf32>
    %138 = vector.shape_cast %137 : vector<1x1x128x128xf32> to vector<128x128xf32>
    %cst_167 = arith.constant dense<0.000000e+00> : vector<64x128xf32>
    %139 = tpu.matmul %136, %138, %cst_167 {dimension_numbers = #tpu.dot_dimension_numbers<[1], [0], [0], [1], [0, 0, 1, 1], [], []>} : vector<64x128xf32>, vector<128x128xf32>, vector<64x128xf32> -> vector<64x128xf32>
    %140 = arith.addf %135, %139 : vector<64x128xf32>
    %c24_168 = arith.constant 24 : index
    %c0_169 = arith.constant 0 : index
    %141 = vector.load %arg24[%c24_168, %c0_169] : memref<96x128xf32, #tpu.memory_space<vmem>>, vector<64x128xf32>
    %c2_170 = arith.constant 2 : index
    %c3_171 = arith.constant 3 : index
    %c0_172 = arith.constant 0 : index
    %c0_173 = arith.constant 0 : index
    %142 = vector.load %arg16[%c2_170, %c3_171, %c0_172, %c0_173] : memref<3x5x128x128xf32, #tpu.memory_space<vmem>>, vector<1x1x128x128xf32>
    %143 = vector.shape_cast %142 : vector<1x1x128x128xf32> to vector<128x128xf32>
    %cst_174 = arith.constant dense<0.000000e+00> : vector<64x128xf32>
    %144 = tpu.matmul %141, %143, %cst_174 {dimension_numbers = #tpu.dot_dimension_numbers<[1], [0], [0], [1], [0, 0, 1, 1], [], []>} : vector<64x128xf32>, vector<128x128xf32>, vector<64x128xf32> -> vector<64x128xf32>
    %145 = arith.addf %140, %144 : vector<64x128xf32>
    %c32_175 = arith.constant 32 : index
    %c0_176 = arith.constant 0 : index
    %146 = vector.load %arg24[%c32_175, %c0_176] : memref<96x128xf32, #tpu.memory_space<vmem>>, vector<64x128xf32>
    %c2_177 = arith.constant 2 : index
    %c4_178 = arith.constant 4 : index
    %c0_179 = arith.constant 0 : index
    %c0_180 = arith.constant 0 : index
    %147 = vector.load %arg16[%c2_177, %c4_178, %c0_179, %c0_180] : memref<3x5x128x128xf32, #tpu.memory_space<vmem>>, vector<1x1x128x128xf32>
    %148 = vector.shape_cast %147 : vector<1x1x128x128xf32> to vector<128x128xf32>
    %cst_181 = arith.constant dense<0.000000e+00> : vector<64x128xf32>
    %149 = tpu.matmul %146, %148, %cst_181 {dimension_numbers = #tpu.dot_dimension_numbers<[1], [0], [0], [1], [0, 0, 1, 1], [], []>} : vector<64x128xf32>, vector<128x128xf32>, vector<64x128xf32> -> vector<64x128xf32>
    %150 = arith.addf %145, %149 : vector<64x128xf32>
    %c16_182 = arith.constant 16 : index
    %c0_183 = arith.constant 0 : index
    %151 = vector.load %arg24[%c16_182, %c0_183] : memref<96x128xf32, #tpu.memory_space<vmem>>, vector<64x128xf32>
    %152 = arith.addf %150, %151 : vector<64x128xf32>
    %c16_184 = arith.constant 16 : index
    %c0_185 = arith.constant 0 : index
    %153 = vector.load %arg24[%c16_184, %c0_185] : memref<96x128xf32, #tpu.memory_space<vmem>>, vector<64x128xf32>
    tpu.vector_store %arg24[%c16_184, %c0_185], %152 {strides = array<i32>} : memref<96x128xf32, #tpu.memory_space<vmem>>, vector<64x128xf32>,
    %cst_186 = arith.constant 0.000000e+00 : f32
    %154 = vector.broadcast %cst_186 : f32 to vector<64x128xf32>
    %c0_187 = arith.constant 0 : index
    %c0_188 = arith.constant 0 : index
    %155 = vector.load %arg19[%c0_187, %c0_188] : memref<1x128xf32, #tpu.memory_space<vmem>>, vector<1x128xf32>
    %156 = vector.broadcast %155 : vector<1x128xf32> to vector<64x128xf32>
    %157 = arith.addf %154, %156 : vector<64x128xf32>
    %c0_189 = arith.constant 0 : index
    %c0_190 = arith.constant 0 : index
    %158 = vector.load %arg23[%c0_189, %c0_190] : memref<96x128xf32, #tpu.memory_space<vmem>>, vector<64x128xf32>
    %c0_191 = arith.constant 0 : index
    %c0_192 = arith.constant 0 : index
    %c0_193 = arith.constant 0 : index
    %159 = vector.load %arg18[%c0_191, %c0_192, %c0_193] : memref<2x5x128xf32, #tpu.memory_space<vmem>>, vector<1x1x128xf32>
    %160 = vector.shape_cast %159 : vector<1x1x128xf32> to vector<128xf32>
    %161 = vector.shape_cast %160 : vector<128xf32> to vector<1x128xf32>
    %162 = vector.broadcast %161 : vector<1x128xf32> to vector<64x128xf32>
    %163 = arith.mulf %158, %162 : vector<64x128xf32>
    %164 = arith.addf %157, %163 : vector<64x128xf32>
    %c0_194 = arith.constant 0 : index
    %c0_195 = arith.constant 0 : index
    %165 = vector.load %arg24[%c0_194, %c0_195] : memref<96x128xf32, #tpu.memory_space<vmem>>, vector<64x128xf32>
    %c1_196 = arith.constant 1 : index
    %c0_197 = arith.constant 0 : index
    %c0_198 = arith.constant 0 : index
    %166 = vector.load %arg18[%c1_196, %c0_197, %c0_198] : memref<2x5x128xf32, #tpu.memory_space<vmem>>, vector<1x1x128xf32>
    %167 = vector.shape_cast %166 : vector<1x1x128xf32> to vector<128xf32>
    %168 = vector.shape_cast %167 : vector<128xf32> to vector<1x128xf32>
    %169 = vector.broadcast %168 : vector<1x128xf32> to vector<64x128xf32>
    %170 = arith.mulf %165, %169 : vector<64x128xf32>
    %171 = arith.addf %164, %170 : vector<64x128xf32>
    %c8_199 = arith.constant 8 : index
    %c0_200 = arith.constant 0 : index
    %172 = vector.load %arg23[%c8_199, %c0_200] : memref<96x128xf32, #tpu.memory_space<vmem>>, vector<64x128xf32>
    %c0_201 = arith.constant 0 : index
    %c1_202 = arith.constant 1 : index
    %c0_203 = arith.constant 0 : index
    %173 = vector.load %arg18[%c0_201, %c1_202, %c0_203] : memref<2x5x128xf32, #tpu.memory_space<vmem>>, vector<1x1x128xf32>
    %174 = vector.shape_cast %173 : vector<1x1x128xf32> to vector<128xf32>
    %175 = vector.shape_cast %174 : vector<128xf32> to vector<1x128xf32>
    %176 = vector.broadcast %175 : vector<1x128xf32> to vector<64x128xf32>
    %177 = arith.mulf %172, %176 : vector<64x128xf32>
    %178 = arith.addf %171, %177 : vector<64x128xf32>
    %c8_204 = arith.constant 8 : index
    %c0_205 = arith.constant 0 : index
    %179 = vector.load %arg24[%c8_204, %c0_205] : memref<96x128xf32, #tpu.memory_space<vmem>>, vector<64x128xf32>
    %c1_206 = arith.constant 1 : index
    %c1_207 = arith.constant 1 : index
    %c0_208 = arith.constant 0 : index
    %180 = vector.load %arg18[%c1_206, %c1_207, %c0_208] : memref<2x5x128xf32, #tpu.memory_space<vmem>>, vector<1x1x128xf32>
    %181 = vector.shape_cast %180 : vector<1x1x128xf32> to vector<128xf32>
    %182 = vector.shape_cast %181 : vector<128xf32> to vector<1x128xf32>
    %183 = vector.broadcast %182 : vector<1x128xf32> to vector<64x128xf32>
    %184 = arith.mulf %179, %183 : vector<64x128xf32>
    %185 = arith.addf %178, %184 : vector<64x128xf32>
    %c16_209 = arith.constant 16 : index
    %c0_210 = arith.constant 0 : index
    %186 = vector.load %arg23[%c16_209, %c0_210] : memref<96x128xf32, #tpu.memory_space<vmem>>, vector<64x128xf32>
    %c0_211 = arith.constant 0 : index
    %c2_212 = arith.constant 2 : index
    %c0_213 = arith.constant 0 : index
    %187 = vector.load %arg18[%c0_211, %c2_212, %c0_213] : memref<2x5x128xf32, #tpu.memory_space<vmem>>, vector<1x1x128xf32>
    %188 = vector.shape_cast %187 : vector<1x1x128xf32> to vector<128xf32>
    %189 = vector.shape_cast %188 : vector<128xf32> to vector<1x128xf32>
    %190 = vector.broadcast %189 : vector<1x128xf32> to vector<64x128xf32>
    %191 = arith.mulf %186, %190 : vector<64x128xf32>
    %192 = arith.addf %185, %191 : vector<64x128xf32>
    %c16_214 = arith.constant 16 : index
    %c0_215 = arith.constant 0 : index
    %193 = vector.load %arg24[%c16_214, %c0_215] : memref<96x128xf32, #tpu.memory_space<vmem>>, vector<64x128xf32>
    %c1_216 = arith.constant 1 : index
    %c2_217 = arith.constant 2 : index
    %c0_218 = arith.constant 0 : index
    %194 = vector.load %arg18[%c1_216, %c2_217, %c0_218] : memref<2x5x128xf32, #tpu.memory_space<vmem>>, vector<1x1x128xf32>
    %195 = vector.shape_cast %194 : vector<1x1x128xf32> to vector<128xf32>
    %196 = vector.shape_cast %195 : vector<128xf32> to vector<1x128xf32>
    %197 = vector.broadcast %196 : vector<1x128xf32> to vector<64x128xf32>
    %198 = arith.mulf %193, %197 : vector<64x128xf32>
    %199 = arith.addf %192, %198 : vector<64x128xf32>
    %c24_219 = arith.constant 24 : index
    %c0_220 = arith.constant 0 : index
    %200 = vector.load %arg23[%c24_219, %c0_220] : memref<96x128xf32, #tpu.memory_space<vmem>>, vector<64x128xf32>
    %c0_221 = arith.constant 0 : index
    %c3_222 = arith.constant 3 : index
    %c0_223 = arith.constant 0 : index
    %201 = vector.load %arg18[%c0_221, %c3_222, %c0_223] : memref<2x5x128xf32, #tpu.memory_space<vmem>>, vector<1x1x128xf32>
    %202 = vector.shape_cast %201 : vector<1x1x128xf32> to vector<128xf32>
    %203 = vector.shape_cast %202 : vector<128xf32> to vector<1x128xf32>
    %204 = vector.broadcast %203 : vector<1x128xf32> to vector<64x128xf32>
    %205 = arith.mulf %200, %204 : vector<64x128xf32>
    %206 = arith.addf %199, %205 : vector<64x128xf32>
    %c24_224 = arith.constant 24 : index
    %c0_225 = arith.constant 0 : index
    %207 = vector.load %arg24[%c24_224, %c0_225] : memref<96x128xf32, #tpu.memory_space<vmem>>, vector<64x128xf32>
    %c1_226 = arith.constant 1 : index
    %c3_227 = arith.constant 3 : index
    %c0_228 = arith.constant 0 : index
    %208 = vector.load %arg18[%c1_226, %c3_227, %c0_228] : memref<2x5x128xf32, #tpu.memory_space<vmem>>, vector<1x1x128xf32>
    %209 = vector.shape_cast %208 : vector<1x1x128xf32> to vector<128xf32>
    %210 = vector.shape_cast %209 : vector<128xf32> to vector<1x128xf32>
    %211 = vector.broadcast %210 : vector<1x128xf32> to vector<64x128xf32>
    %212 = arith.mulf %207, %211 : vector<64x128xf32>
    %213 = arith.addf %206, %212 : vector<64x128xf32>
    %c32_229 = arith.constant 32 : index
    %c0_230 = arith.constant 0 : index
    %214 = vector.load %arg23[%c32_229, %c0_230] : memref<96x128xf32, #tpu.memory_space<vmem>>, vector<64x128xf32>
    %c0_231 = arith.constant 0 : index
    %c4_232 = arith.constant 4 : index
    %c0_233 = arith.constant 0 : index
    %215 = vector.load %arg18[%c0_231, %c4_232, %c0_233] : memref<2x5x128xf32, #tpu.memory_space<vmem>>, vector<1x1x128xf32>
    %216 = vector.shape_cast %215 : vector<1x1x128xf32> to vector<128xf32>
    %217 = vector.shape_cast %216 : vector<128xf32> to vector<1x128xf32>
    %218 = vector.broadcast %217 : vector<1x128xf32> to vector<64x128xf32>
    %219 = arith.mulf %214, %218 : vector<64x128xf32>
    %220 = arith.addf %213, %219 : vector<64x128xf32>
    %c32_234 = arith.constant 32 : index
    %c0_235 = arith.constant 0 : index
    %221 = vector.load %arg24[%c32_234, %c0_235] : memref<96x128xf32, #tpu.memory_space<vmem>>, vector<64x128xf32>
    %c1_236 = arith.constant 1 : index
    %c4_237 = arith.constant 4 : index
    %c0_238 = arith.constant 0 : index
    %222 = vector.load %arg18[%c1_236, %c4_237, %c0_238] : memref<2x5x128xf32, #tpu.memory_space<vmem>>, vector<1x1x128xf32>
    %223 = vector.shape_cast %222 : vector<1x1x128xf32> to vector<128xf32>
    %224 = vector.shape_cast %223 : vector<128xf32> to vector<1x128xf32>
    %225 = vector.broadcast %224 : vector<1x128xf32> to vector<64x128xf32>
    %226 = arith.mulf %221, %225 : vector<64x128xf32>
    %227 = arith.addf %220, %226 : vector<64x128xf32>
    %c0_239 = arith.constant 0 : index
    %c0_240 = arith.constant 0 : index
    %228 = vector.load %arg20[%c0_239, %c0_240] : memref<64x128xf32, #tpu.memory_space<vmem>>, vector<64x128xf32>
    tpu.vector_store %arg20[%c0_239, %c0_240], %227 {strides = array<i32>} : memref<64x128xf32, #tpu.memory_space<vmem>>, vector<64x128xf32>,
    return
  }
  func.func @transform_0(%arg0: i32) -> (i32, i32) {
    %c0_i32 = arith.constant 0 : i32
    %c0_i32_0 = arith.constant 0 : i32
    %c0_i32_1 = arith.constant 0 : i32
    return %c0_i32, %c0_i32_0 : i32, i32
  }
  func.func @transform_1(%arg0: i32) -> (i32, i32) {
    %c0_i32 = arith.constant 0 : i32
    %c0_i32_0 = arith.constant 0 : i32
    %c0_i32_1 = arith.constant 0 : i32
    return %c0_i32, %c0_i32_0 : i32, i32
  }
  func.func @transform_2(%arg0: i32) -> (i32, i32) {
    %c0_i32 = arith.constant 0 : i32
    %c0_i32_0 = arith.constant 0 : i32
    %c0_i32_1 = arith.constant 0 : i32
    return %c0_i32, %c0_i32_0 : i32, i32
  }
  func.func @transform_3(%arg0: i32) -> (i32, i32) {
    %c0_i32 = arith.constant 0 : i32
    %c0_i32_0 = arith.constant 0 : i32
    %c0_i32_1 = arith.constant 0 : i32
    return %c0_i32, %c0_i32_0 : i32, i32
  }
  func.func @transform_4(%arg0: i32) -> (i32, i32) {
    %c0_i32 = arith.constant 0 : i32
    %c0_i32_0 = arith.constant 0 : i32
    %c0_i32_1 = arith.constant 0 : i32
    return %c0_i32, %c0_i32_0 : i32, i32
  }
  func.func @transform_5(%arg0: i32) -> (i32, i32) {
    %c0_i32 = arith.constant 0 : i32
    %c0_i32_0 = arith.constant 0 : i32
    %c0_i32_1 = arith.constant 0 : i32
    return %c0_i32, %c0_i32_0 : i32, i32
  }
  func.func @transform_6(%arg0: i32) -> (i32, i32) {
    %c0_i32 = arith.constant 0 : i32
    %c0_i32_0 = arith.constant 0 : i32
    %c0_i32_1 = arith.constant 0 : i32
    return %c0_i32, %c0_i32_0 : i32, i32
  }
  func.func @transform_7(%arg0: i32) -> (i32, i32) {
    %c0_i32 = arith.constant 0 : i32
    %c0_i32_0 = arith.constant 0 : i32
    %c0_i32_1 = arith.constant 0 : i32
    return %c0_i32, %c0_i32_0 : i32, i32
  }
  func.func @transform_8(%arg0: i32) -> (i32, i32) {
    %c0_i32 = arith.constant 0 : i32
    %c0_i32_0 = arith.constant 0 : i32
    %c0_i32_1 = arith.constant 0 : i32
    return %c0_i32, %c0_i32_0 : i32, i32
  }
  func.func @transform_9(%arg0: i32) -> (i32, i32) {
    %c0_i32 = arith.constant 0 : i32
    %c0_i32_0 = arith.constant 0 : i32
    %c0_i32_1 = arith.constant 0 : i32
    return %c0_i32, %c0_i32_0 : i32, i32
  }
  func.func @transform_10(%arg0: i32) -> (i32, i32) {
    %c0_i32 = arith.constant 0 : i32
    %c0_i32_0 = arith.constant 0 : i32
    %c0_i32_1 = arith.constant 0 : i32
    return %c0_i32, %c0_i32_0 : i32, i32
  }
  func.func @transform_11(%arg0: i32) -> (i32, i32) {
    %c0_i32 = arith.constant 0 : i32
    %c0_i32_0 = arith.constant 0 : i32
    %c0_i32_1 = arith.constant 0 : i32
    return %c0_i32, %c0_i32_0 : i32, i32
  }
  func.func @transform_12(%arg0: i32) -> (i32, i32) {
    %c0_i32 = arith.constant 0 : i32
    %c0_i32_0 = arith.constant 0 : i32
    %c0_i32_1 = arith.constant 0 : i32
    return %c0_i32, %c0_i32_0 : i32, i32
  }
  func.func @transform_13(%arg0: i32) -> (i32, i32) {
    %c0_i32 = arith.constant 0 : i32
    %c0_i32_0 = arith.constant 0 : i32
    %c0_i32_1 = arith.constant 0 : i32
    return %c0_i32, %c0_i32_0 : i32, i32
  }
  func.func @transform_14(%arg0: i32) -> (i32, i32) {
    %c0_i32 = arith.constant 0 : i32
    %c0_i32_0 = arith.constant 0 : i32
    %c0_i32_1 = arith.constant 0 : i32
    return %c0_i32, %c0_i32_0 : i32, i32
  }
  func.func @transform_15(%arg0: i32) -> (i32, i32, i32, i32) {
    %c0_i32 = arith.constant 0 : i32
    %c0_i32_0 = arith.constant 0 : i32
    %c0_i32_1 = arith.constant 0 : i32
    %c0_i32_2 = arith.constant 0 : i32
    %c0_i32_3 = arith.constant 0 : i32
    return %c0_i32, %c0_i32_0, %c0_i32_1, %c0_i32_2 : i32, i32, i32, i32
  }
  func.func @transform_16(%arg0: i32) -> (i32, i32) {
    %c0_i32 = arith.constant 0 : i32
    %c0_i32_0 = arith.constant 0 : i32
    %c0_i32_1 = arith.constant 0 : i32
    return %c0_i32, %c0_i32_0 : i32, i32
  }
  func.func @transform_17(%arg0: i32) -> (i32, i32, i32) {
    %c0_i32 = arith.constant 0 : i32
    %c0_i32_0 = arith.constant 0 : i32
    %c0_i32_1 = arith.constant 0 : i32
    %c0_i32_2 = arith.constant 0 : i32
    return %c0_i32, %c0_i32_0, %c0_i32_1 : i32, i32, i32
  }
  func.func @transform_18(%arg0: i32) -> (i32, i32) {
    %c0_i32 = arith.constant 0 : i32
    %c0_i32_0 = arith.constant 0 : i32
    %c0_i32_1 = arith.constant 0 : i32
    return %c0_i32, %c0_i32_0 : i32, i32
  }
  func.func @transform_19(%arg0: i32) -> (i32, i32) {
    %c0_i32 = arith.constant 0 : i32
    %c0_i32_0 = arith.constant 0 : i32
    %c0_i32_1 = arith.constant 0 : i32
    return %c0_i32, %c0_i32_0 : i32, i32
  }
}

</mosaic_0001>

<llo_original>
// kernel: tpu_custom_call.1
$region0: #{tpu_custom_call.1}
  #allocation0 [shape = 'u32[]', space=smem, size = 0x4, offset = 0x4, fixed_abs, tag = 'smem constant byte address 0x4 - core index']
  #allocation1 [shape = 'u32[72,128]{1,0:T(1,128)}', space=vmem, size = 0x9000, scoped, tag = 'internal scratch']
  #allocation2 [shape = 'f32[64,512]{1,0:T(8,128)}', space=vmem, size = 0x20000, scoped, tag = 'scratch operand']
  #allocation3 [shape = 'f32[64,128]{1,0:T(8,128)}', space=vmem, size = 0x8000, scoped, tag = 'scratch operand']
  #allocation4 [shape = 'f32[96,128]{1,0:T(8,128)}', space=vmem, size = 0xc000, scoped, tag = 'scratch operand']
  #allocation5 [shape = 'f32[96,128]{1,0:T(8,128)}', space=vmem, size = 0xc000, scoped, tag = 'scratch operand']
  %s0 = inlined_call_operand.hbm [shape: f32[64,128], index: 0, kind: input, shape index: {}]
  %s1 = inlined_call_operand.hbm [shape: f32[128,512], index: 1, kind: input, shape index: {}]
  %s2 = inlined_call_operand.hbm [shape: f32[128,512], index: 2, kind: input, shape index: {}]
  %s3 = inlined_call_operand.vmem [shape: f32[1,512], index: 3, kind: input, shape index: {}]
  %s4 = inlined_call_operand.hbm [shape: f32[128,512], index: 4, kind: input, shape index: {}]
  %s5 = inlined_call_operand.hbm [shape: f32[128,512], index: 5, kind: input, shape index: {}]
  %s6 = inlined_call_operand.vmem [shape: f32[1,512], index: 6, kind: input, shape index: {}]
  %s7 = inlined_call_operand.hbm [shape: f32[128,512], index: 7, kind: input, shape index: {}]
  %s8 = inlined_call_operand.hbm [shape: f32[128,512], index: 8, kind: input, shape index: {}]
  %s9 = inlined_call_operand.vmem [shape: f32[1,512], index: 9, kind: input, shape index: {}]
  %s10 = inlined_call_operand.hbm [shape: f32[128,512], index: 10, kind: input, shape index: {}]
  %s11 = inlined_call_operand.hbm [shape: f32[128,512], index: 11, kind: input, shape index: {}]
  %s12 = inlined_call_operand.vmem [shape: f32[1,512], index: 12, kind: input, shape index: {}]
  %s13 = inlined_call_operand.hbm [shape: f32[128,128], index: 13, kind: input, shape index: {}]
  %s14 = inlined_call_operand.vmem [shape: f32[1,128], index: 14, kind: input, shape index: {}]
  %s15 = inlined_call_operand.hbm [shape: f32[3,5,128,128], index: 15, kind: input, shape index: {}]
  %s16 = inlined_call_operand.vmem [shape: f32[3,128], index: 16, kind: input, shape index: {}]
  %s17 = inlined_call_operand.vmem [shape: f32[2,5,128], index: 17, kind: input, shape index: {}]
  %s18 = inlined_call_operand.vmem [shape: f32[1,128], index: 18, kind: input, shape index: {}]
  %s19 = inlined_call_operand.hbm [shape: f32[64,128], index: 19, kind: output, shape index: {}]
  %s20 = sld [smem:[#allocation0]]
  $region158: #{tpu_custom_call.1} parent=0
    _
  %s22 = ssub.s32 1, %s20
  %s23 = scalar_select 0, %s22, %s20
  $region1: #{tpu_custom_call.1} parent=0
    #allocation6 [shape = 'u8[32768]{0}', space=vmem, size = 0x8000, scoped, tag = 'input window, operand 0, single buffered']
    #allocation7 [shape = 's32[1]{0}', space=sflag, size = 0x4, scoped, tag = 'scoped memory for tpu_custom_call.1']
    #allocation8 [shape = 's32[1]{0}', space=sflag, size = 0x4, scoped, tag = 'scoped memory for tpu_custom_call.1']
    #allocation9 [shape = 'u8[262144]{0}', space=vmem, size = 0x40000, scoped, tag = 'input window, operand 1, single buffered']
    #allocation10 [shape = 's32[1]{0}', space=sflag, size = 0x4, scoped, tag = 'scoped memory for tpu_custom_call.1']
    #allocation11 [shape = 'u8[262144]{0}', space=vmem, size = 0x40000, scoped, tag = 'input window, operand 2, single buffered']
    #allocation12 [shape = 'u8[262144]{0}', space=vmem, size = 0x40000, scoped, tag = 'input window, operand 4, single buffered']
    #allocation13 [shape = 's32[1]{0}', space=sflag, size = 0x4, scoped, tag = 'scoped memory for tpu_custom_call.1']
    #allocation14 [shape = 'u8[262144]{0}', space=vmem, size = 0x40000, scoped, tag = 'input window, operand 5, single buffered']
    #allocation15 [shape = 'u8[262144]{0}', space=vmem, size = 0x40000, scoped, tag = 'input window, operand 7, single buffered']
    #allocation16 [shape = 's32[1]{0}', space=sflag, size = 0x4, scoped, tag = 'scoped memory for tpu_custom_call.1']
    #allocation17 [shape = 'u8[262144]{0}', space=vmem, size = 0x40000, scoped, tag = 'input window, operand 8, single buffered']
    #allocation18 [shape = 'u8[262144]{0}', space=vmem, size = 0x40000, scoped, tag = 'input window, operand 10, single buffered']
    #allocation19 [shape = 's32[1]{0}', space=sflag, size = 0x4, scoped, tag = 'scoped memory for tpu_custom_call.1']
    #allocation20 [shape = 'u8[262144]{0}', space=vmem, size = 0x40000, scoped, tag = 'input window, operand 11, single buffered']
    #allocation21 [shape = 'u8[65536]{0}', space=vmem, size = 0x10000, scoped, tag = 'input window, operand 13, single buffered']
    #allocation22 [shape = 's32[1]{0}', space=sflag, size = 0x4, scoped, tag = 'scoped memory for tpu_custom_call.1']
    #allocation23 [shape = 'u8[983040]{0}', space=vmem, size = 0xf0000, scoped, tag = 'input window, operand 15, single buffered']
    #allocation24 [shape = 'u8[32768]{0}', space=vmem, size = 0x8000, scoped, tag = 'output window, operand 0, single buffered']
    %24 = vsyncpa [#allocation7], 0
    %25 = vsyncpa [#allocation10], 0
    %26 = vsyncpa [#allocation13], 0
    %27 = vsyncpa [#allocation16], 0
    %28 = vsyncpa [#allocation19], 0
    %29 = vsyncpa [#allocation22], 0
    %30 = vsyncpa [#allocation8], 0
    // Predicated region
    $region2: #{tpu_custom_call.1} parent=1 // pred_check
      _
    $region3: #{tpu_custom_call.1} parent=1 // pred_check_branch
      %32 = sbr.rel (0) target = $region5
    $region4: #{tpu_custom_call.1} parent=1 // pred_region
      %34 = vsyncadd [#allocation7], 0
      %s35 = sshll.u32 %s0, 4
      %s36 = int_to_ptr.hbm [resolvable:$true] %s35
      %s37 = sshll.u32 [#allocation6], 4
      %s38 = int_to_ptr.vmem [resolvable:$true] %s37
      %43 = dma.hbm_to_vmem [thread:$0]  %s36, 1024, %s38, [#allocation7], 128, 128, 8
    $region5: #{tpu_custom_call.1} parent=1 // pred_fallthru
      _
    // Predicated region
    $region6: #{tpu_custom_call.1} parent=1 // pred_check
      _
    $region7: #{tpu_custom_call.1} parent=1 // pred_check_branch
      %45 = sbr.rel (0) target = $region9
    $region8: #{tpu_custom_call.1} parent=1 // pred_region
      %47 = vsyncadd [#allocation10], 0
      %s48 = sshll.u32 %s1, 4
      %s49 = int_to_ptr.hbm [resolvable:$true] %s48
      %s50 = sshll.u32 [#allocation9], 4
      %s51 = int_to_ptr.vmem [resolvable:$true] %s50
      %56 = dma.hbm_to_vmem [thread:$0]  %s49, 8192, %s51, [#allocation10], 512, 512, 32
    $region9: #{tpu_custom_call.1} parent=1 // pred_fallthru
      _
    // Predicated region
    $region10: #{tpu_custom_call.1} parent=1 // pred_check
      _
    $region11: #{tpu_custom_call.1} parent=1 // pred_check_branch
      %58 = sbr.rel (0) target = $region13
    $region12: #{tpu_custom_call.1} parent=1 // pred_region
      %60 = vsyncadd [#allocation10], 0
      %s61 = sshll.u32 %s2, 4
      %s62 = int_to_ptr.hbm [resolvable:$true] %s61
      %s63 = sshll.u32 [#allocation11], 4
      %s64 = int_to_ptr.vmem [resolvable:$true] %s63
      %69 = dma.hbm_to_vmem [thread:$0]  %s62, 8192, %s64, [#allocation10], 512, 512, 32
    $region13: #{tpu_custom_call.1} parent=1 // pred_fallthru
      _
    // Predicated region
    $region14: #{tpu_custom_call.1} parent=1 // pred_check
      _
    $region15: #{tpu_custom_call.1} parent=1 // pred_check_branch
      %71 = sbr.rel (0) target = $region17
    $region16: #{tpu_custom_call.1} parent=1 // pred_region
      _
    $region17: #{tpu_custom_call.1} parent=1 // pred_fallthru
      _
    // Predicated region
    $region18: #{tpu_custom_call.1} parent=1 // pred_check
      _
    $region19: #{tpu_custom_call.1} parent=1 // pred_check_branch
      %73 = sbr.rel (0) target = $region21
    $region20: #{tpu_custom_call.1} parent=1 // pred_region
      %75 = vsyncadd [#allocation13], 0
      %s76 = sshll.u32 %s4, 4
      %s77 = int_to_ptr.hbm [resolvable:$true] %s76
      %s78 = sshll.u32 [#allocation12], 4
      %s79 = int_to_ptr.vmem [resolvable:$true] %s78
      %84 = dma.hbm_to_vmem [thread:$0]  %s77, 8192, %s79, [#allocation13], 512, 512, 32
    $region21: #{tpu_custom_call.1} parent=1 // pred_fallthru
      _
    // Predicated region
    $region22: #{tpu_custom_call.1} parent=1 // pred_check
      _
    $region23: #{tpu_custom_call.1} parent=1 // pred_check_branch
      %86 = sbr.rel (0) target = $region25
    $region24: #{tpu_custom_call.1} parent=1 // pred_region
      %88 = vsyncadd [#allocation13], 0
      %s89 = sshll.u32 %s5, 4
      %s90 = int_to_ptr.hbm [resolvable:$true] %s89
      %s91 = sshll.u32 [#allocation14], 4
      %s92 = int_to_ptr.vmem [resolvable:$true] %s91
      %97 = dma.hbm_to_vmem [thread:$0]  %s90, 8192, %s92, [#allocation13], 512, 512, 32
    $region25: #{tpu_custom_call.1} parent=1 // pred_fallthru
      _
    // Predicated region
    $region26: #{tpu_custom_call.1} parent=1 // pred_check
      _
    $region27: #{tpu_custom_call.1} parent=1 // pred_check_branch
      %99 = sbr.rel (0) target = $region29
    $region28: #{tpu_custom_call.1} parent=1 // pred_region
      _
    $region29: #{tpu_custom_call.1} parent=1 // pred_fallthru
      _
    // Predicated region
    $region30: #{tpu_custom_call.1} parent=1 // pred_check
      _
    $region31: #{tpu_custom_call.1} parent=1 // pred_check_branch
      %101 = sbr.rel (0) target = $region33
    $region32: #{tpu_custom_call.1} parent=1 // pred_region
      %103 = vsyncadd [#allocation16], 0
      %s104 = sshll.u32 %s7, 4
      %s105 = int_to_ptr.hbm [resolvable:$true] %s104
      %s106 = sshll.u32 [#allocation15], 4
      %s107 = int_to_ptr.vmem [resolvable:$true] %s106
      %112 = dma.hbm_to_vmem [thread:$0]  %s105, 8192, %s107, [#allocation16], 512, 512, 32
    $region33: #{tpu_custom_call.1} parent=1 // pred_fallthru
      _
    // Predicated region
    $region34: #{tpu_custom_call.1} parent=1 // pred_check
      _
    $region35: #{tpu_custom_call.1} parent=1 // pred_check_branch
      %114 = sbr.rel (0) target = $region37
    $region36: #{tpu_custom_call.1} parent=1 // pred_region
      %116 = vsyncadd [#allocation16], 0
      %s117 = sshll.u32 %s8, 4
      %s118 = int_to_ptr.hbm [resolvable:$true] %s117
      %s119 = sshll.u32 [#allocation17], 4
      %s120 = int_to_ptr.vmem [resolvable:$true] %s119
      %125 = dma.hbm_to_vmem [thread:$0]  %s118, 8192, %s120, [#allocation16], 512, 512, 32
    $region37: #{tpu_custom_call.1} parent=1 // pred_fallthru
      _
    // Predicated region
    $region38: #{tpu_custom_call.1} parent=1 // pred_check
      _
    $region39: #{tpu_custom_call.1} parent=1 // pred_check_branch
      %127 = sbr.rel (0) target = $region41
    $region40: #{tpu_custom_call.1} parent=1 // pred_region
      _
    $region41: #{tpu_custom_call.1} parent=1 // pred_fallthru
      _
    // Predicated region
    $region42: #{tpu_custom_call.1} parent=1 // pred_check
      _
    $region43: #{tpu_custom_call.1} parent=1 // pred_check_branch
      %129 = sbr.rel (0) target = $region45
    $region44: #{tpu_custom_call.1} parent=1 // pred_region
      %131 = vsyncadd [#allocation19], 0
      %s132 = sshll.u32 %s10, 4
      %s133 = int_to_ptr.hbm [resolvable:$true] %s132
      %s134 = sshll.u32 [#allocation18], 4
      %s135 = int_to_ptr.vmem [resolvable:$true] %s134
      %140 = dma.hbm_to_vmem [thread:$0]  %s133, 8192, %s135, [#allocation19], 512, 512, 32
    $region45: #{tpu_custom_call.1} parent=1 // pred_fallthru
      _
    // Predicated region
    $region46: #{tpu_custom_call.1} parent=1 // pred_check
      _
    $region47: #{tpu_custom_call.1} parent=1 // pred_check_branch
      %142 = sbr.rel (0) target = $region49
    $region48: #{tpu_custom_call.1} parent=1 // pred_region
      %144 = vsyncadd [#allocation19], 0
      %s145 = sshll.u32 %s11, 4
      %s146 = int_to_ptr.hbm [resolvable:$true] %s145
      %s147 = sshll.u32 [#allocation20], 4
      %s148 = int_to_ptr.vmem [resolvable:$true] %s147
      %153 = dma.hbm_to_vmem [thread:$0]  %s146, 8192, %s148, [#allocation19], 512, 512, 32
    $region49: #{tpu_custom_call.1} parent=1 // pred_fallthru
      _
    // Predicated region
    $region50: #{tpu_custom_call.1} parent=1 // pred_check
      _
    $region51: #{tpu_custom_call.1} parent=1 // pred_check_branch
      %155 = sbr.rel (0) target = $region53
    $region52: #{tpu_custom_call.1} parent=1 // pred_region
      _
    $region53: #{tpu_custom_call.1} parent=1 // pred_fallthru
      _
    // Predicated region
    $region54: #{tpu_custom_call.1} parent=1 // pred_check
      _
    $region55: #{tpu_custom_call.1} parent=1 // pred_check_branch
      %157 = sbr.rel (0) target = $region57
    $region56: #{tpu_custom_call.1} parent=1 // pred_region
      %159 = vsyncadd [#allocation22], 0
      %s160 = sshll.u32 %s13, 4
      %s161 = int_to_ptr.hbm [resolvable:$true] %s160
      %s162 = sshll.u32 [#allocation21], 4
      %s163 = int_to_ptr.vmem [resolvable:$true] %s162
      %168 = dma.hbm_to_vmem [thread:$0]  %s161, 2048, %s163, [#allocation22], 128, 128, 8
    $region57: #{tpu_custom_call.1} parent=1 // pred_fallthru
      _
    // Predicated region
    $region58: #{tpu_custom_call.1} parent=1 // pred_check
      _
    $region59: #{tpu_custom_call.1} parent=1 // pred_check_branch
      %170 = sbr.rel (0) target = $region61
    $region60: #{tpu_custom_call.1} parent=1 // pred_region
      _
    $region61: #{tpu_custom_call.1} parent=1 // pred_fallthru
      _
    // Predicated region
    $region62: #{tpu_custom_call.1} parent=1 // pred_check
      _
    $region63: #{tpu_custom_call.1} parent=1 // pred_check_branch
      %172 = sbr.rel (0) target = $region65
    $region64: #{tpu_custom_call.1} parent=1 // pred_region
      %174 = vsyncadd [#allocation22], 0
      %s175 = sshll.u32 %s15, 4
      %s176 = int_to_ptr.hbm [resolvable:$true] %s175
      %s177 = sshll.u32 [#allocation23], 4
      %s178 = int_to_ptr.vmem [resolvable:$true] %s177
      %183 = dma.hbm_to_vmem [thread:$0]  %s176, 30720, %s178, [#allocation22], 128, 128, 8
    $region65: #{tpu_custom_call.1} parent=1 // pred_fallthru
      _
    // Predicated region
    $region66: #{tpu_custom_call.1} parent=1 // pred_check
      _
    $region67: #{tpu_custom_call.1} parent=1 // pred_check_branch
      %185 = sbr.rel (0) target = $region69
    $region68: #{tpu_custom_call.1} parent=1 // pred_region
      _
    $region69: #{tpu_custom_call.1} parent=1 // pred_fallthru
      _
    // Predicated region
    $region70: #{tpu_custom_call.1} parent=1 // pred_check
      _
    $region71: #{tpu_custom_call.1} parent=1 // pred_check_branch
      %187 = sbr.rel (0) target = $region73
    $region72: #{tpu_custom_call.1} parent=1 // pred_region
      _
    $region73: #{tpu_custom_call.1} parent=1 // pred_fallthru
      _
    // Predicated region
    $region74: #{tpu_custom_call.1} parent=1 // pred_check
      _
    $region75: #{tpu_custom_call.1} parent=1 // pred_check_branch
      %189 = sbr.rel (0) target = $region77
    $region76: #{tpu_custom_call.1} parent=1 // pred_region
      _
    $region77: #{tpu_custom_call.1} parent=1 // pred_fallthru
      _
    // Predicated region
    $region78: #{tpu_custom_call.1} parent=1 // pred_check
      _
    $region79: #{tpu_custom_call.1} parent=1 // pred_check_branch
      %191 = sbr.rel (0) target = $region81
    $region80: #{tpu_custom_call.1} parent=1 // pred_region
      %193 = dma.done [#allocation7], 1024
    $region81: #{tpu_custom_call.1} parent=1 // pred_fallthru
      _
    // Predicated region
    $region82: #{tpu_custom_call.1} parent=1 // pred_check
      _
    $region83: #{tpu_custom_call.1} parent=1 // pred_check_branch
      %195 = sbr.rel (0) target = $region85
    $region84: #{tpu_custom_call.1} parent=1 // pred_region
      %197 = dma.done [#allocation10], 8192
    $region85: #{tpu_custom_call.1} parent=1 // pred_fallthru
      _
    // Predicated region
    $region86: #{tpu_custom_call.1} parent=1 // pred_check
      _
    $region87: #{tpu_custom_call.1} parent=1 // pred_check_branch
      %199 = sbr.rel (0) target = $region89
    $region88: #{tpu_custom_call.1} parent=1 // pred_region
      %201 = dma.done [#allocation10], 8192
    $region89: #{tpu_custom_call.1} parent=1 // pred_fallthru
      _
    // Predicated region
    $region90: #{tpu_custom_call.1} parent=1 // pred_check
      _
    $region91: #{tpu_custom_call.1} parent=1 // pred_check_branch
      %203 = sbr.rel (0) target = $region93
    $region92: #{tpu_custom_call.1} parent=1 // pred_region
      %205 = dma.done [#allocation13], 8192
    $region93: #{tpu_custom_call.1} parent=1 // pred_fallthru
      _
    // Predicated region
    $region94: #{tpu_custom_call.1} parent=1 // pred_check
      _
    $region95: #{tpu_custom_call.1} parent=1 // pred_check_branch
      %207 = sbr.rel (0) target = $region97
    $region96: #{tpu_custom_call.1} parent=1 // pred_region
      %209 = dma.done [#allocation13], 8192
    $region97: #{tpu_custom_call.1} parent=1 // pred_fallthru
      _
    // Predicated region
    $region98: #{tpu_custom_call.1} parent=1 // pred_check
      _
    $region99: #{tpu_custom_call.1} parent=1 // pred_check_branch
      %211 = sbr.rel (0) target = $region101
    $region100: #{tpu_custom_call.1} parent=1 // pred_region
      %213 = dma.done [#allocation16], 8192
    $region101: #{tpu_custom_call.1} parent=1 // pred_fallthru
      _
    // Predicated region
    $region102: #{tpu_custom_call.1} parent=1 // pred_check
      _
    $region103: #{tpu_custom_call.1} parent=1 // pred_check_branch
      %215 = sbr.rel (0) target = $region105
    $region104: #{tpu_custom_call.1} parent=1 // pred_region
      %217 = dma.done [#allocation16], 8192
    $region105: #{tpu_custom_call.1} parent=1 // pred_fallthru
      _
    // Predicated region
    $region106: #{tpu_custom_call.1} parent=1 // pred_check
      _
    $region107: #{tpu_custom_call.1} parent=1 // pred_check_branch
      %219 = sbr.rel (0) target = $region109
    $region108: #{tpu_custom_call.1} parent=1 // pred_region
      %221 = dma.done [#allocation19], 8192
    $region109: #{tpu_custom_call.1} parent=1 // pred_fallthru
      _
    // Predicated region
    $region110: #{tpu_custom_call.1} parent=1 // pred_check
      _
    $region111: #{tpu_custom_call.1} parent=1 // pred_check_branch
      %223 = sbr.rel (0) target = $region113
    $region112: #{tpu_custom_call.1} parent=1 // pred_region
      %225 = dma.done [#allocation19], 8192
    $region113: #{tpu_custom_call.1} parent=1 // pred_fallthru
      _
    // Predicated region
    $region114: #{tpu_custom_call.1} parent=1 // pred_check
      _
    $region115: #{tpu_custom_call.1} parent=1 // pred_check_branch
      %227 = sbr.rel (0) target = $region117
    $region116: #{tpu_custom_call.1} parent=1 // pred_region
      %229 = dma.done [#allocation22], 2048
    $region117: #{tpu_custom_call.1} parent=1 // pred_fallthru
      _
    // Predicated region
    $region118: #{tpu_custom_call.1} parent=1 // pred_check
      _
    $region119: #{tpu_custom_call.1} parent=1 // pred_check_branch
      %231 = sbr.rel (0) target = $region121
    $region120: #{tpu_custom_call.1} parent=1 // pred_region
      %233 = dma.done [#allocation22], 30720
    $region121: #{tpu_custom_call.1} parent=1 // pred_fallthru
      _
    %v234 = vld [vmem:[#allocation6] sm:$0xff]
    %v235 = vld [vmem:[#allocation6 + $0x8] sm:$0xff]
    %v236 = vld [vmem:[#allocation6 + $0x10] sm:$0xff]
    %v237 = vld [vmem:[#allocation6 + $0x18] sm:$0xff]
    %v238 = vld [vmem:[#allocation6 + $0x20] sm:$0xff]
    %v239 = vld [vmem:[#allocation6 + $0x28] sm:$0xff]
    %v240 = vld [vmem:[#allocation6 + $0x30] sm:$0xff]
    %v241 = vld [vmem:[#allocation6 + $0x38] sm:$0xff]
    %v242 = vld [vmem:[#allocation9] sm:$0xff]
    %v243 = vld [vmem:[#allocation9 + $0x8] sm:$0xff]
    %v244 = vld [vmem:[#allocation9 + $0x10] sm:$0xff]
    %v245 = vld [vmem:[#allocation9 + $0x18] sm:$0xff]
    %v246 = vld [vmem:[#allocation9 + $0x20] sm:$0xff]
    %v247 = vld [vmem:[#allocation9 + $0x28] sm:$0xff]
    %v248 = vld [vmem:[#allocation9 + $0x30] sm:$0xff]
    %v249 = vld [vmem:[#allocation9 + $0x38] sm:$0xff]
    %v250 = vld [vmem:[#allocation9 + $0x40] sm:$0xff]
    %v251 = vld [vmem:[#allocation9 + $0x48] sm:$0xff]
    %v252 = vld [vmem:[#allocation9 + $0x50] sm:$0xff]
    %v253 = vld [vmem:[#allocation9 + $0x58] sm:$0xff]
    %v254 = vld [vmem:[#allocation9 + $0x60] sm:$0xff]
    %v255 = vld [vmem:[#allocation9 + $0x68] sm:$0xff]
    %v256 = vld [vmem:[#allocation9 + $0x70] sm:$0xff]
    %v257 = vld [vmem:[#allocation9 + $0x78] sm:$0xff]
    %v258 = vld [vmem:[#allocation9 + $0x80] sm:$0xff]
    %v259 = vld [vmem:[#allocation9 + $0x88] sm:$0xff]
    %v260 = vld [vmem:[#allocation9 + $0x90] sm:$0xff]
    %v261 = vld [vmem:[#allocation9 + $0x98] sm:$0xff]
    %v262 = vld [vmem:[#allocation9 + $0xa0] sm:$0xff]
    %v263 = vld [vmem:[#allocation9 + $0xa8] sm:$0xff]
    %v264 = vld [vmem:[#allocation9 + $0xb0] sm:$0xff]
    %v265 = vld [vmem:[#allocation9 + $0xb8] sm:$0xff]
    %v266 = vld [vmem:[#allocation9 + $0xc0] sm:$0xff]
    %v267 = vld [vmem:[#allocation9 + $0xc8] sm:$0xff]
    %v268 = vld [vmem:[#allocation9 + $0xd0] sm:$0xff]
    %v269 = vld [vmem:[#allocation9 + $0xd8] sm:$0xff]
    %v270 = vld [vmem:[#allocation9 + $0xe0] sm:$0xff]
    %v271 = vld [vmem:[#allocation9 + $0xe8] sm:$0xff]
    %v272 = vld [vmem:[#allocation9 + $0xf0] sm:$0xff]
    %v273 = vld [vmem:[#allocation9 + $0xf8] sm:$0xff]
    %v274 = vld [vmem:[#allocation9 + $0x100] sm:$0xff]
    %v275 = vld [vmem:[#allocation9 + $0x108] sm:$0xff]
    %v276 = vld [vmem:[#allocation9 + $0x110] sm:$0xff]
    %v277 = vld [vmem:[#allocation9 + $0x118] sm:$0xff]
    %v278 = vld [vmem:[#allocation9 + $0x120] sm:$0xff]
    %v279 = vld [vmem:[#allocation9 + $0x128] sm:$0xff]
    %v280 = vld [vmem:[#allocation9 + $0x130] sm:$0xff]
    %v281 = vld [vmem:[#allocation9 + $0x138] sm:$0xff]
    %v282 = vld [vmem:[#allocation9 + $0x140] sm:$0xff]
    %v283 = vld [vmem:[#allocation9 + $0x148] sm:$0xff]
    %v284 = vld [vmem:[#allocation9 + $0x150] sm:$0xff]
    %v285 = vld [vmem:[#allocation9 + $0x158] sm:$0xff]
    %v286 = vld [vmem:[#allocation9 + $0x160] sm:$0xff]
    %v287 = vld [vmem:[#allocation9 + $0x168] sm:$0xff]
    %v288 = vld [vmem:[#allocation9 + $0x170] sm:$0xff]
    %v289 = vld [vmem:[#allocation9 + $0x178] sm:$0xff]
    %v290 = vld [vmem:[#allocation9 + $0x180] sm:$0xff]
    %v291 = vld [vmem:[#allocation9 + $0x188] sm:$0xff]
    %v292 = vld [vmem:[#allocation9 + $0x190] sm:$0xff]
    %v293 = vld [vmem:[#allocation9 + $0x198] sm:$0xff]
    %v294 = vld [vmem:[#allocation9 + $0x1a0] sm:$0xff]
    %v295 = vld [vmem:[#allocation9 + $0x1a8] sm:$0xff]
    %v296 = vld [vmem:[#allocation9 + $0x1b0] sm:$0xff]
    %v297 = vld [vmem:[#allocation9 + $0x1b8] sm:$0xff]
    %v298 = vld [vmem:[#allocation9 + $0x1c0] sm:$0xff]
    %v299 = vld [vmem:[#allocation9 + $0x1c8] sm:$0xff]
    %v300 = vld [vmem:[#allocation9 + $0x1d0] sm:$0xff]
    %v301 = vld [vmem:[#allocation9 + $0x1d8] sm:$0xff]
    %v302 = vld [vmem:[#allocation9 + $0x1e0] sm:$0xff]
    %v303 = vld [vmem:[#allocation9 + $0x1e8] sm:$0xff]
    %v304 = vld [vmem:[#allocation9 + $0x1f0] sm:$0xff]
    %v305 = vld [vmem:[#allocation9 + $0x1f8] sm:$0xff]
    %v306 = vld [vmem:[%s3] sm:$0xf]
    %v308 = vperm.slane %v306, 0
    %v309 = vperm.slane %v306, 1
    %v310 = vperm.slane %v306, 2
    %v311 = vperm.slane %v306, 3
    %316 = vmatpush.msra.mxu0 %v302
    %317 = vmatpush.msra.mxu0 %v298
    %318 = vmatpush.msra.mxu0 %v294
    %319 = vmatpush.msra.mxu0 %v290
    %320 = vmatpush.msra.mxu0 %v286
    %321 = vmatpush.msra.mxu0 %v282
    %322 = vmatpush.msra.mxu0 %v278
    %323 = vmatpush.msra.mxu0 %v274
    %324 = vmatpush.msra.mxu0 %v270
    %325 = vmatpush.msra.mxu0 %v266
    %326 = vmatpush.msra.mxu0 %v262
    %327 = vmatpush.msra.mxu0 %v258
    %328 = vmatpush.msra.mxu0 %v254
    %329 = vmatpush.msra.mxu0 %v250
    %330 = vmatpush.msra.mxu0 %v246
    %331 = vmatpush.msra.mxu0 %v242
    %332 = vmatmul.f32.gmra.mxu0 %v234
    %v333 = vpop.f32.mrf.mxu0
    %v334 = vadd.f32 %v308, %v333
    %335 = vmatmul.f32.gmra.mxu0 %v235
    %v336 = vpop.f32.mrf.mxu0
    %v337 = vadd.f32 %v308, %v336
    %338 = vmatmul.f32.gmra.mxu0 %v236
    %v339 = vpop.f32.mrf.mxu0
    %v340 = vadd.f32 %v308, %v339
    %341 = vmatmul.f32.gmra.mxu0 %v237
    %v342 = vpop.f32.mrf.mxu0
    %v343 = vadd.f32 %v308, %v342
    %344 = vmatmul.f32.gmra.mxu0 %v238
    %v345 = vpop.f32.mrf.mxu0
    %v346 = vadd.f32 %v308, %v345
    %347 = vmatmul.f32.gmra.mxu0 %v239
    %v348 = vpop.f32.mrf.mxu0
    %v349 = vadd.f32 %v308, %v348
    %350 = vmatmul.f32.gmra.mxu0 %v240
    %v351 = vpop.f32.mrf.mxu0
    %v352 = vadd.f32 %v308, %v351
    %353 = vmatmul.f32.gmra.mxu0 %v241
    %v354 = vpop.f32.mrf.mxu0
    %v355 = vadd.f32 %v308, %v354
    %356 = vdwg.mxu0
    %357 = vmatpush.msra.mxu0 %v303
    %358 = vmatpush.msra.mxu0 %v299
    %359 = vmatpush.msra.mxu0 %v295
    %360 = vmatpush.msra.mxu0 %v291
    %361 = vmatpush.msra.mxu0 %v287
    %362 = vmatpush.msra.mxu0 %v283
    %363 = vmatpush.msra.mxu0 %v279
    %364 = vmatpush.msra.mxu0 %v275
    %365 = vmatpush.msra.mxu0 %v271
    %366 = vmatpush.msra.mxu0 %v267
    %367 = vmatpush.msra.mxu0 %v263
    %368 = vmatpush.msra.mxu0 %v259
    %369 = vmatpush.msra.mxu0 %v255
    %370 = vmatpush.msra.mxu0 %v251
    %371 = vmatpush.msra.mxu0 %v247
    %372 = vmatpush.msra.mxu0 %v243
    %373 = vmatmul.f32.gmra.mxu0 %v234
    %v374 = vpop.f32.mrf.mxu0
    %v375 = vadd.f32 %v309, %v374
    %376 = vmatmul.f32.gmra.mxu0 %v235
    %v377 = vpop.f32.mrf.mxu0
    %v378 = vadd.f32 %v309, %v377
    %379 = vmatmul.f32.gmra.mxu0 %v236
    %v380 = vpop.f32.mrf.mxu0
    %v381 = vadd.f32 %v309, %v380
    %382 = vmatmul.f32.gmra.mxu0 %v237
    %v383 = vpop.f32.mrf.mxu0
    %v384 = vadd.f32 %v309, %v383
    %385 = vmatmul.f32.gmra.mxu0 %v238
    %v386 = vpop.f32.mrf.mxu0
    %v387 = vadd.f32 %v309, %v386
    %388 = vmatmul.f32.gmra.mxu0 %v239
    %v389 = vpop.f32.mrf.mxu0
    %v390 = vadd.f32 %v309, %v389
    %391 = vmatmul.f32.gmra.mxu0 %v240
    %v392 = vpop.f32.mrf.mxu0
    %v393 = vadd.f32 %v309, %v392
    %394 = vmatmul.f32.gmra.mxu0 %v241
    %v395 = vpop.f32.mrf.mxu0
    %v396 = vadd.f32 %v309, %v395
    %397 = vdwg.mxu0
    %398 = vmatpush.msra.mxu0 %v304
    %399 = vmatpush.msra.mxu0 %v300
    %400 = vmatpush.msra.mxu0 %v296
    %401 = vmatpush.msra.mxu0 %v292
    %402 = vmatpush.msra.mxu0 %v288
    %403 = vmatpush.msra.mxu0 %v284
    %404 = vmatpush.msra.mxu0 %v280
    %405 = vmatpush.msra.mxu0 %v276
    %406 = vmatpush.msra.mxu0 %v272
    %407 = vmatpush.msra.mxu0 %v268
    %408 = vmatpush.msra.mxu0 %v264
    %409 = vmatpush.msra.mxu0 %v260
    %410 = vmatpush.msra.mxu0 %v256
    %411 = vmatpush.msra.mxu0 %v252
    %412 = vmatpush.msra.mxu0 %v248
    %413 = vmatpush.msra.mxu0 %v244
    %414 = vmatmul.f32.gmra.mxu0 %v234
    %v415 = vpop.f32.mrf.mxu0
    %v416 = vadd.f32 %v310, %v415
    %417 = vmatmul.f32.gmra.mxu0 %v235
    %v418 = vpop.f32.mrf.mxu0
    %v419 = vadd.f32 %v310, %v418
    %420 = vmatmul.f32.gmra.mxu0 %v236
    %v421 = vpop.f32.mrf.mxu0
    %v422 = vadd.f32 %v310, %v421
    %423 = vmatmul.f32.gmra.mxu0 %v237
    %v424 = vpop.f32.mrf.mxu0
    %v425 = vadd.f32 %v310, %v424
    %426 = vmatmul.f32.gmra.mxu0 %v238
    %v427 = vpop.f32.mrf.mxu0
    %v428 = vadd.f32 %v310, %v427
    %429 = vmatmul.f32.gmra.mxu0 %v239
    %v430 = vpop.f32.mrf.mxu0
    %v431 = vadd.f32 %v310, %v430
    %432 = vmatmul.f32.gmra.mxu0 %v240
    %v433 = vpop.f32.mrf.mxu0
    %v434 = vadd.f32 %v310, %v433
    %435 = vmatmul.f32.gmra.mxu0 %v241
    %v436 = vpop.f32.mrf.mxu0
    %v437 = vadd.f32 %v310, %v436
    %438 = vdwg.mxu0
    %439 = vmatpush.msra.mxu0 %v305
    %440 = vmatpush.msra.mxu0 %v301
    %441 = vmatpush.msra.mxu0 %v297
    %442 = vmatpush.msra.mxu0 %v293
    %443 = vmatpush.msra.mxu0 %v289
    %444 = vmatpush.msra.mxu0 %v285
    %445 = vmatpush.msra.mxu0 %v281
    %446 = vmatpush.msra.mxu0 %v277
    %447 = vmatpush.msra.mxu0 %v273
    %448 = vmatpush.msra.mxu0 %v269
    %449 = vmatpush.msra.mxu0 %v265
    %450 = vmatpush.msra.mxu0 %v261
    %451 = vmatpush.msra.mxu0 %v257
    %452 = vmatpush.msra.mxu0 %v253
    %453 = vmatpush.msra.mxu0 %v249
    %454 = vmatpush.msra.mxu0 %v245
    %455 = vmatmul.f32.gmra.mxu0 %v234
    %v456 = vpop.f32.mrf.mxu0
    %v457 = vadd.f32 %v311, %v456
    %458 = vmatmul.f32.gmra.mxu0 %v235
    %v459 = vpop.f32.mrf.mxu0
    %v460 = vadd.f32 %v311, %v459
    %461 = vmatmul.f32.gmra.mxu0 %v236
    %v462 = vpop.f32.mrf.mxu0
    %v463 = vadd.f32 %v311, %v462
    %464 = vmatmul.f32.gmra.mxu0 %v237
    %v465 = vpop.f32.mrf.mxu0
    %v466 = vadd.f32 %v311, %v465
    %467 = vmatmul.f32.gmra.mxu0 %v238
    %v468 = vpop.f32.mrf.mxu0
    %v469 = vadd.f32 %v311, %v468
    %470 = vmatmul.f32.gmra.mxu0 %v239
    %v471 = vpop.f32.mrf.mxu0
    %v472 = vadd.f32 %v311, %v471
    %473 = vmatmul.f32.gmra.mxu0 %v240
    %v474 = vpop.f32.mrf.mxu0
    %v475 = vadd.f32 %v311, %v474
    %476 = vmatmul.f32.gmra.mxu0 %v241
    %v477 = vpop.f32.mrf.mxu0
    %v478 = vadd.f32 %v311, %v477
    %479 = vdwg.mxu0
    %480 = vst [vmem:[#allocation2] sm:$0xff] %v334
    %481 = vst [vmem:[#allocation2 + $0x8] sm:$0xff] %v375
    %482 = vst [vmem:[#allocation2 + $0x10] sm:$0xff] %v416
    %483 = vst [vmem:[#allocation2 + $0x18] sm:$0xff] %v457
    %484 = vst [vmem:[#allocation2 + $0x20] sm:$0xff] %v337
    %485 = vst [vmem:[#allocation2 + $0x28] sm:$0xff] %v378
    %486 = vst [vmem:[#allocation2 + $0x30] sm:$0xff] %v419
    %487 = vst [vmem:[#allocation2 + $0x38] sm:$0xff] %v460
    %488 = vst [vmem:[#allocation2 + $0x40] sm:$0xff] %v340
    %489 = vst [vmem:[#allocation2 + $0x48] sm:$0xff] %v381
    %490 = vst [vmem:[#allocation2 + $0x50] sm:$0xff] %v422
    %491 = vst [vmem:[#allocation2 + $0x58] sm:$0xff] %v463
    %492 = vst [vmem:[#allocation2 + $0x60] sm:$0xff] %v343
    %493 = vst [vmem:[#allocation2 + $0x68] sm:$0xff] %v384
    %494 = vst [vmem:[#allocation2 + $0x70] sm:$0xff] %v425
    %495 = vst [vmem:[#allocation2 + $0x78] sm:$0xff] %v466
    %496 = vst [vmem:[#allocation2 + $0x80] sm:$0xff] %v346
    %497 = vst [vmem:[#allocation2 + $0x88] sm:$0xff] %v387
    %498 = vst [vmem:[#allocation2 + $0x90] sm:$0xff] %v428
    %499 = vst [vmem:[#allocation2 + $0x98] sm:$0xff] %v469
    %500 = vst [vmem:[#allocation2 + $0xa0] sm:$0xff] %v349
    %501 = vst [vmem:[#allocation2 + $0xa8] sm:$0xff] %v390
    %502 = vst [vmem:[#allocation2 + $0xb0] sm:$0xff] %v431
    %503 = vst [vmem:[#allocation2 + $0xb8] sm:$0xff] %v472
    %504 = vst [vmem:[#allocation2 + $0xc0] sm:$0xff] %v352
    %505 = vst [vmem:[#allocation2 + $0xc8] sm:$0xff] %v393
    %506 = vst [vmem:[#allocation2 + $0xd0] sm:$0xff] %v434
    %507 = vst [vmem:[#allocation2 + $0xd8] sm:$0xff] %v475
    %508 = vst [vmem:[#allocation2 + $0xe0] sm:$0xff] %v355
    %509 = vst [vmem:[#allocation2 + $0xe8] sm:$0xff] %v396
    %510 = vst [vmem:[#allocation2 + $0xf0] sm:$0xff] %v437
    %511 = vst [vmem:[#allocation2 + $0xf8] sm:$0xff] %v478
    loop: start=0, step=1, limit=8
    $region122: #{tpu_custom_call.1} parent=1 // loop_pre_header
      _
    $region123: #{tpu_custom_call.1} parent=1 // loop_header
      %s513 = sphi 0, %s517
      %p514 = scmp.ge.s32.totalorder %s513, 8
      %v518 = vphi 0.0, %v740
      %v519 = vphi 0.0, %v738
    $region124: #{tpu_custom_call.1} parent=1 // loop_header_branch
      %516 = sbr.rel (%p514) target = $region128
    $region125: #{tpu_custom_call.1} parent=1 // loop_body
      %s520 = smul.u32 %s513, 8
      %s521 = sshra.s32 %s520, 3
      %s522 = sand.u32 %s520, 7
      %s523 = smul.u32 %s521, 4
      %s524 = smul.addr %s523, 8
      %s525 = scalar_lea.vmem [#allocation2], %s524
      %v526 = vld [vmem:[%s525] sm:$0xff]
      %v527 = vld [vmem:[%s525 + $0x8] sm:$0xff]
      %v528 = vld [vmem:[%s525 + $0x10] sm:$0xff]
      %v529 = vld [vmem:[%s525 + $0x18] sm:$0xff]
      %v530 = vld [vmem:[#allocation11] sm:$0xff]
      %v531 = vld [vmem:[#allocation11 + $0x8] sm:$0xff]
      %v532 = vld [vmem:[#allocation11 + $0x10] sm:$0xff]
      %v533 = vld [vmem:[#allocation11 + $0x18] sm:$0xff]
      %v534 = vld [vmem:[#allocation11 + $0x20] sm:$0xff]
      %v535 = vld [vmem:[#allocation11 + $0x28] sm:$0xff]
      %v536 = vld [vmem:[#allocation11 + $0x30] sm:$0xff]
      %v537 = vld [vmem:[#allocation11 + $0x38] sm:$0xff]
      %v538 = vld [vmem:[#allocation11 + $0x40] sm:$0xff]
      %v539 = vld [vmem:[#allocation11 + $0x48] sm:$0xff]
      %v540 = vld [vmem:[#allocation11 + $0x50] sm:$0xff]
      %v541 = vld [vmem:[#allocation11 + $0x58] sm:$0xff]
      %v542 = vld [vmem:[#allocation11 + $0x60] sm:$0xff]
      %v543 = vld [vmem:[#allocation11 + $0x68] sm:$0xff]
      %v544 = vld [vmem:[#allocation11 + $0x70] sm:$0xff]
      %v545 = vld [vmem:[#allocation11 + $0x78] sm:$0xff]
      %v546 = vld [vmem:[#allocation11 + $0x80] sm:$0xff]
      %v547 = vld [vmem:[#allocation11 + $0x88] sm:$0xff]
      %v548 = vld [vmem:[#allocation11 + $0x90] sm:$0xff]
      %v549 = vld [vmem:[#allocation11 + $0x98] sm:$0xff]
      %v550 = vld [vmem:[#allocation11 + $0xa0] sm:$0xff]
      %v551 = vld [vmem:[#allocation11 + $0xa8] sm:$0xff]
      %v552 = vld [vmem:[#allocation11 + $0xb0] sm:$0xff]
      %v553 = vld [vmem:[#allocation11 + $0xb8] sm:$0xff]
      %v554 = vld [vmem:[#allocation11 + $0xc0] sm:$0xff]
      %v555 = vld [vmem:[#allocation11 + $0xc8] sm:$0xff]
      %v556 = vld [vmem:[#allocation11 + $0xd0] sm:$0xff]
      %v557 = vld [vmem:[#allocation11 + $0xd8] sm:$0xff]
      %v558 = vld [vmem:[#allocation11 + $0xe0] sm:$0xff]
      %v559 = vld [vmem:[#allocation11 + $0xe8] sm:$0xff]
      %v560 = vld [vmem:[#allocation11 + $0xf0] sm:$0xff]
      %v561 = vld [vmem:[#allocation11 + $0xf8] sm:$0xff]
      %v562 = vld [vmem:[#allocation11 + $0x100] sm:$0xff]
      %v563 = vld [vmem:[#allocation11 + $0x108] sm:$0xff]
      %v564 = vld [vmem:[#allocation11 + $0x110] sm:$0xff]
      %v565 = vld [vmem:[#allocation11 + $0x118] sm:$0xff]
      %v566 = vld [vmem:[#allocation11 + $0x120] sm:$0xff]
      %v567 = vld [vmem:[#allocation11 + $0x128] sm:$0xff]
      %v568 = vld [vmem:[#allocation11 + $0x130] sm:$0xff]
      %v569 = vld [vmem:[#allocation11 + $0x138] sm:$0xff]
      %v570 = vld [vmem:[#allocation11 + $0x140] sm:$0xff]
      %v571 = vld [vmem:[#allocation11 + $0x148] sm:$0xff]
      %v572 = vld [vmem:[#allocation11 + $0x150] sm:$0xff]
      %v573 = vld [vmem:[#allocation11 + $0x158] sm:$0xff]
      %v574 = vld [vmem:[#allocation11 + $0x160] sm:$0xff]
      %v575 = vld [vmem:[#allocation11 + $0x168] sm:$0xff]
      %v576 = vld [vmem:[#allocation11 + $0x170] sm:$0xff]
      %v577 = vld [vmem:[#allocation11 + $0x178] sm:$0xff]
      %v578 = vld [vmem:[#allocation11 + $0x180] sm:$0xff]
      %v579 = vld [vmem:[#allocation11 + $0x188] sm:$0xff]
      %v580 = vld [vmem:[#allocation11 + $0x190] sm:$0xff]
      %v581 = vld [vmem:[#allocation11 + $0x198] sm:$0xff]
      %v582 = vld [vmem:[#allocation11 + $0x1a0] sm:$0xff]
      %v583 = vld [vmem:[#allocation11 + $0x1a8] sm:$0xff]
      %v584 = vld [vmem:[#allocation11 + $0x1b0] sm:$0xff]
      %v585 = vld [vmem:[#allocation11 + $0x1b8] sm:$0xff]
      %v586 = vld [vmem:[#allocation11 + $0x1c0] sm:$0xff]
      %v587 = vld [vmem:[#allocation11 + $0x1c8] sm:$0xff]
      %v588 = vld [vmem:[#allocation11 + $0x1d0] sm:$0xff]
      %v589 = vld [vmem:[#allocation11 + $0x1d8] sm:$0xff]
      %v590 = vld [vmem:[#allocation11 + $0x1e0] sm:$0xff]
      %v591 = vld [vmem:[#allocation11 + $0x1e8] sm:$0xff]
      %v592 = vld [vmem:[#allocation11 + $0x1f0] sm:$0xff]
      %v593 = vld [vmem:[#allocation11 + $0x1f8] sm:$0xff]
      %594 = vmatpush.msra.mxu0 %v590
      %595 = vmatpush.msra.mxu0 %v586
      %596 = vmatpush.msra.mxu0 %v582
      %597 = vmatpush.msra.mxu0 %v578
      %598 = vmatpush.msra.mxu0 %v574
      %599 = vmatpush.msra.mxu0 %v570
      %600 = vmatpush.msra.mxu0 %v566
      %601 = vmatpush.msra.mxu0 %v562
      %602 = vmatpush.msra.mxu0 %v558
      %603 = vmatpush.msra.mxu0 %v554
      %604 = vmatpush.msra.mxu0 %v550
      %605 = vmatpush.msra.mxu0 %v546
      %606 = vmatpush.msra.mxu0 %v542
      %607 = vmatpush.msra.mxu0 %v538
      %608 = vmatpush.msra.mxu0 %v534
      %609 = vmatpush.msra.mxu0 %v530
      %610 = vmatmul.f32.gmra.mxu0 %v518
      %v611 = vpop.f32.mrf.mxu0
      %v612 = vadd.f32 0.0, %v611
      %613 = vdwg.mxu0
      %614 = vmatpush.msra.mxu0 %v591
      %615 = vmatpush.msra.mxu0 %v587
      %616 = vmatpush.msra.mxu0 %v583
      %617 = vmatpush.msra.mxu0 %v579
      %618 = vmatpush.msra.mxu0 %v575
      %619 = vmatpush.msra.mxu0 %v571
      %620 = vmatpush.msra.mxu0 %v567
      %621 = vmatpush.msra.mxu0 %v563
      %622 = vmatpush.msra.mxu0 %v559
      %623 = vmatpush.msra.mxu0 %v555
      %624 = vmatpush.msra.mxu0 %v551
      %625 = vmatpush.msra.mxu0 %v547
      %626 = vmatpush.msra.mxu0 %v543
      %627 = vmatpush.msra.mxu0 %v539
      %628 = vmatpush.msra.mxu0 %v535
      %629 = vmatpush.msra.mxu0 %v531
      %630 = vmatmul.f32.gmra.mxu0 %v518
      %v631 = vpop.f32.mrf.mxu0
      %v632 = vadd.f32 0.0, %v631
      %633 = vdwg.mxu0
      %634 = vmatpush.msra.mxu0 %v592
      %635 = vmatpush.msra.mxu0 %v588
      %636 = vmatpush.msra.mxu0 %v584
      %637 = vmatpush.msra.mxu0 %v580
      %638 = vmatpush.msra.mxu0 %v576
      %639 = vmatpush.msra.mxu0 %v572
      %640 = vmatpush.msra.mxu0 %v568
      %641 = vmatpush.msra.mxu0 %v564
      %642 = vmatpush.msra.mxu0 %v560
      %643 = vmatpush.msra.mxu0 %v556
      %644 = vmatpush.msra.mxu0 %v552
      %645 = vmatpush.msra.mxu0 %v548
      %646 = vmatpush.msra.mxu0 %v544
      %647 = vmatpush.msra.mxu0 %v540
      %648 = vmatpush.msra.mxu0 %v536
      %649 = vmatpush.msra.mxu0 %v532
      %650 = vmatmul.f32.gmra.mxu0 %v518
      %v651 = vpop.f32.mrf.mxu0
      %v652 = vadd.f32 0.0, %v651
      %653 = vdwg.mxu0
      %654 = vmatpush.msra.mxu0 %v593
      %655 = vmatpush.msra.mxu0 %v589
      %656 = vmatpush.msra.mxu0 %v585
      %657 = vmatpush.msra.mxu0 %v581
      %658 = vmatpush.msra.mxu0 %v577
      %659 = vmatpush.msra.mxu0 %v573
      %660 = vmatpush.msra.mxu0 %v569
      %661 = vmatpush.msra.mxu0 %v565
      %662 = vmatpush.msra.mxu0 %v561
      %663 = vmatpush.msra.mxu0 %v557
      %664 = vmatpush.msra.mxu0 %v553
      %665 = vmatpush.msra.mxu0 %v549
      %666 = vmatpush.msra.mxu0 %v545
      %667 = vmatpush.msra.mxu0 %v541
      %668 = vmatpush.msra.mxu0 %v537
      %669 = vmatpush.msra.mxu0 %v533
      %670 = vmatmul.f32.gmra.mxu0 %v518
      %v671 = vpop.f32.mrf.mxu0
      %v672 = vadd.f32 0.0, %v671
      %673 = vdwg.mxu0
      %v674 = vadd.f32 %v526, %v612
      %v675 = vadd.f32 %v527, %v632
      %v676 = vadd.f32 %v528, %v652
      %v677 = vadd.f32 %v529, %v672
      %v678 = vxor.u32 %v674, 2147483648
      %v679 = vmul.f32 %v678, 1.442695
      %v680 = vpow.pop %v679
      %v681 = vadd.f32 %v680, 1.0
      %v682 = vrcp.pop %v681
      %v683 = vmul.f32 %v681, %v682
      %v684 = vsub.f32 1.0, %v683
      %v685 = vmul.f32 %v682, %v684
      %v686 = vadd.f32 %v682, %v685
      %vm687 = vweird.f32 %v681
      %vm688 = vweird.f32 %v682
      %vm689 = vmor %vm687, %vm688
      %v690 = vsel %vm689, %v682, %v686
      %v691 = vand.u32 2147483647, %v681
      %vm692 = vcmp.eq.f32.partialorder %v691, 8.507059e+37
      %v693 = vand.u32 %v681, 2147483648
      %v694 = vor.u32 1.1754944e-38, %v693
      %v695 = vsel %vm692, %v694, %v690
      %v696 = vmul.f32 1.0, %v695
      %v697 = vxor.u32 %v675, 2147483648
      %v698 = vmul.f32 %v697, 1.442695
      %v699 = vpow.pop %v698
      %v700 = vadd.f32 %v699, 1.0
      %v701 = vrcp.pop %v700
      %v702 = vmul.f32 %v700, %v701
      %v703 = vsub.f32 1.0, %v702
      %v704 = vmul.f32 %v701, %v703
      %v705 = vadd.f32 %v701, %v704
      %vm706 = vweird.f32 %v700
      %vm707 = vweird.f32 %v701
      %vm708 = vmor %vm706, %vm707
      %v709 = vsel %vm708, %v701, %v705
      %v710 = vand.u32 2147483647, %v700
      %vm711 = vcmp.eq.f32.partialorder %v710, 8.507059e+37
      %v712 = vand.u32 %v700, 2147483648
      %v713 = vor.u32 1.1754944e-38, %v712
      %v714 = vsel %vm711, %v713, %v709
      %v715 = vmul.f32 1.0, %v714
      %v716 = vtanh.pop %v676
      %v717 = vxor.u32 %v677, 2147483648
      %v718 = vmul.f32 %v717, 1.442695
      %v719 = vpow.pop %v718
      %v720 = vadd.f32 %v719, 1.0
      %v721 = vrcp.pop %v720
      %v722 = vmul.f32 %v720, %v721
      %v723 = vsub.f32 1.0, %v722
      %v724 = vmul.f32 %v721, %v723
      %v725 = vadd.f32 %v721, %v724
      %vm726 = vweird.f32 %v720
      %vm727 = vweird.f32 %v721
      %vm728 = vmor %vm726, %vm727
      %v729 = vsel %vm728, %v721, %v725
      %v730 = vand.u32 2147483647, %v720
      %vm731 = vcmp.eq.f32.partialorder %v730, 8.507059e+37
      %v732 = vand.u32 %v720, 2147483648
      %v733 = vor.u32 1.1754944e-38, %v732
      %v734 = vsel %vm731, %v733, %v729
      %v735 = vmul.f32 1.0, %v734
      %v736 = vmul.f32 %v715, %v519
      %v737 = vmul.f32 %v696, %v716
      %v738 = vadd.f32 %v736, %v737
      %v739 = vtanh.pop %v738
      %v740 = vmul.f32 %v735, %v739
      %s741 = scalar_lea.vmem [#allocation3], %s520
      %742 = vst [vmem:[%s741] sm:$0xff] %v740
    $region126: #{tpu_custom_call.1} parent=1 // loop_footer
      %s517 = sadd.s32 1, %s513
    $region127: #{tpu_custom_call.1} parent=1 // loop_footer_branch
      %512 = sbr.rel target = $region123
    $region128: #{tpu_custom_call.1} parent=1 // loop_exit
      _
    %v743 = vld [vmem:[#allocation3] sm:$0xff]
    %v744 = vld [vmem:[#allocation3 + $0x8] sm:$0xff]
    %v745 = vld [vmem:[#allocation3 + $0x10] sm:$0xff]
    %v746 = vld [vmem:[#allocation3 + $0x18] sm:$0xff]
    %v747 = vld [vmem:[#allocation3 + $0x20] sm:$0xff]
    %v748 = vld [vmem:[#allocation3 + $0x28] sm:$0xff]
    %v749 = vld [vmem:[#allocation3 + $0x30] sm:$0xff]
    %v750 = vld [vmem:[#allocation3 + $0x38] sm:$0xff]
    %v751 = vld [vmem:[#allocation12] sm:$0xff]
    %v752 = vld [vmem:[#allocation12 + $0x8] sm:$0xff]
    %v753 = vld [vmem:[#allocation12 + $0x10] sm:$0xff]
    %v754 = vld [vmem:[#allocation12 + $0x18] sm:$0xff]
    %v755 = vld [vmem:[#allocation12 + $0x20] sm:$0xff]
    %v756 = vld [vmem:[#allocation12 + $0x28] sm:$0xff]
    %v757 = vld [vmem:[#allocation12 + $0x30] sm:$0xff]
    %v758 = vld [vmem:[#allocation12 + $0x38] sm:$0xff]
    %v759 = vld [vmem:[#allocation12 + $0x40] sm:$0xff]
    %v760 = vld [vmem:[#allocation12 + $0x48] sm:$0xff]
    %v761 = vld [vmem:[#allocation12 + $0x50] sm:$0xff]
    %v762 = vld [vmem:[#allocation12 + $0x58] sm:$0xff]
    %v763 = vld [vmem:[#allocation12 + $0x60] sm:$0xff]
    %v764 = vld [vmem:[#allocation12 + $0x68] sm:$0xff]
    %v765 = vld [vmem:[#allocation12 + $0x70] sm:$0xff]
    %v766 = vld [vmem:[#allocation12 + $0x78] sm:$0xff]
    %v767 = vld [vmem:[#allocation12 + $0x80] sm:$0xff]
    %v768 = vld [vmem:[#allocation12 + $0x88] sm:$0xff]
    %v769 = vld [vmem:[#allocation12 + $0x90] sm:$0xff]
    %v770 = vld [vmem:[#allocation12 + $0x98] sm:$0xff]
    %v771 = vld [vmem:[#allocation12 + $0xa0] sm:$0xff]
    %v772 = vld [vmem:[#allocation12 + $0xa8] sm:$0xff]
    %v773 = vld [vmem:[#allocation12 + $0xb0] sm:$0xff]
    %v774 = vld [vmem:[#allocation12 + $0xb8] sm:$0xff]
    %v775 = vld [vmem:[#allocation12 + $0xc0] sm:$0xff]
    %v776 = vld [vmem:[#allocation12 + $0xc8] sm:$0xff]
    %v777 = vld [vmem:[#allocation12 + $0xd0] sm:$0xff]
    %v778 = vld [vmem:[#allocation12 + $0xd8] sm:$0xff]
    %v779 = vld [vmem:[#allocation12 + $0xe0] sm:$0xff]
    %v780 = vld [vmem:[#allocation12 + $0xe8] sm:$0xff]
    %v781 = vld [vmem:[#allocation12 + $0xf0] sm:$0xff]
    %v782 = vld [vmem:[#allocation12 + $0xf8] sm:$0xff]
    %v783 = vld [vmem:[#allocation12 + $0x100] sm:$0xff]
    %v784 = vld [vmem:[#allocation12 + $0x108] sm:$0xff]
    %v785 = vld [vmem:[#allocation12 + $0x110] sm:$0xff]
    %v786 = vld [vmem:[#allocation12 + $0x118] sm:$0xff]
    %v787 = vld [vmem:[#allocation12 + $0x120] sm:$0xff]
    %v788 = vld [vmem:[#allocation12 + $0x128] sm:$0xff]
    %v789 = vld [vmem:[#allocation12 + $0x130] sm:$0xff]
    %v790 = vld [vmem:[#allocation12 + $0x138] sm:$0xff]
    %v791 = vld [vmem:[#allocation12 + $0x140] sm:$0xff]
    %v792 = vld [vmem:[#allocation12 + $0x148] sm:$0xff]
    %v793 = vld [vmem:[#allocation12 + $0x150] sm:$0xff]
    %v794 = vld [vmem:[#allocation12 + $0x158] sm:$0xff]
    %v795 = vld [vmem:[#allocation12 + $0x160] sm:$0xff]
    %v796 = vld [vmem:[#allocation12 + $0x168] sm:$0xff]
    %v797 = vld [vmem:[#allocation12 + $0x170] sm:$0xff]
    %v798 = vld [vmem:[#allocation12 + $0x178] sm:$0xff]
    %v799 = vld [vmem:[#allocation12 + $0x180] sm:$0xff]
    %v800 = vld [vmem:[#allocation12 + $0x188] sm:$0xff]
    %v801 = vld [vmem:[#allocation12 + $0x190] sm:$0xff]
    %v802 = vld [vmem:[#allocation12 + $0x198] sm:$0xff]
    %v803 = vld [vmem:[#allocation12 + $0x1a0] sm:$0xff]
    %v804 = vld [vmem:[#allocation12 + $0x1a8] sm:$0xff]
    %v805 = vld [vmem:[#allocation12 + $0x1b0] sm:$0xff]
    %v806 = vld [vmem:[#allocation12 + $0x1b8] sm:$0xff]
    %v807 = vld [vmem:[#allocation12 + $0x1c0] sm:$0xff]
    %v808 = vld [vmem:[#allocation12 + $0x1c8] sm:$0xff]
    %v809 = vld [vmem:[#allocation12 + $0x1d0] sm:$0xff]
    %v810 = vld [vmem:[#allocation12 + $0x1d8] sm:$0xff]
    %v811 = vld [vmem:[#allocation12 + $0x1e0] sm:$0xff]
    %v812 = vld [vmem:[#allocation12 + $0x1e8] sm:$0xff]
    %v813 = vld [vmem:[#allocation12 + $0x1f0] sm:$0xff]
    %v814 = vld [vmem:[#allocation12 + $0x1f8] sm:$0xff]
    %v815 = vld [vmem:[%s6] sm:$0xf]
    %v817 = vperm.slane %v815, 0
    %v818 = vperm.slane %v815, 1
    %v819 = vperm.slane %v815, 2
    %v820 = vperm.slane %v815, 3
    %825 = vmatpush.msra.mxu0 %v811
    %826 = vmatpush.msra.mxu0 %v807
    %827 = vmatpush.msra.mxu0 %v803
    %828 = vmatpush.msra.mxu0 %v799
    %829 = vmatpush.msra.mxu0 %v795
    %830 = vmatpush.msra.mxu0 %v791
    %831 = vmatpush.msra.mxu0 %v787
    %832 = vmatpush.msra.mxu0 %v783
    %833 = vmatpush.msra.mxu0 %v779
    %834 = vmatpush.msra.mxu0 %v775
    %835 = vmatpush.msra.mxu0 %v771
    %836 = vmatpush.msra.mxu0 %v767
    %837 = vmatpush.msra.mxu0 %v763
    %838 = vmatpush.msra.mxu0 %v759
    %839 = vmatpush.msra.mxu0 %v755
    %840 = vmatpush.msra.mxu0 %v751
    %841 = vmatmul.f32.gmra.mxu0 %v743
    %v842 = vpop.f32.mrf.mxu0
    %v843 = vadd.f32 %v817, %v842
    %844 = vmatmul.f32.gmra.mxu0 %v744
    %v845 = vpop.f32.mrf.mxu0
    %v846 = vadd.f32 %v817, %v845
    %847 = vmatmul.f32.gmra.mxu0 %v745
    %v848 = vpop.f32.mrf.mxu0
    %v849 = vadd.f32 %v817, %v848
    %850 = vmatmul.f32.gmra.mxu0 %v746
    %v851 = vpop.f32.mrf.mxu0
    %v852 = vadd.f32 %v817, %v851
    %853 = vmatmul.f32.gmra.mxu0 %v747
    %v854 = vpop.f32.mrf.mxu0
    %v855 = vadd.f32 %v817, %v854
    %856 = vmatmul.f32.gmra.mxu0 %v748
    %v857 = vpop.f32.mrf.mxu0
    %v858 = vadd.f32 %v817, %v857
    %859 = vmatmul.f32.gmra.mxu0 %v749
    %v860 = vpop.f32.mrf.mxu0
    %v861 = vadd.f32 %v817, %v860
    %862 = vmatmul.f32.gmra.mxu0 %v750
    %v863 = vpop.f32.mrf.mxu0
    %v864 = vadd.f32 %v817, %v863
    %865 = vdwg.mxu0
    %866 = vmatpush.msra.mxu0 %v812
    %867 = vmatpush.msra.mxu0 %v808
    %868 = vmatpush.msra.mxu0 %v804
    %869 = vmatpush.msra.mxu0 %v800
    %870 = vmatpush.msra.mxu0 %v796
    %871 = vmatpush.msra.mxu0 %v792
    %872 = vmatpush.msra.mxu0 %v788
    %873 = vmatpush.msra.mxu0 %v784
    %874 = vmatpush.msra.mxu0 %v780
    %875 = vmatpush.msra.mxu0 %v776
    %876 = vmatpush.msra.mxu0 %v772
    %877 = vmatpush.msra.mxu0 %v768
    %878 = vmatpush.msra.mxu0 %v764
    %879 = vmatpush.msra.mxu0 %v760
    %880 = vmatpush.msra.mxu0 %v756
    %881 = vmatpush.msra.mxu0 %v752
    %882 = vmatmul.f32.gmra.mxu0 %v743
    %v883 = vpop.f32.mrf.mxu0
    %v884 = vadd.f32 %v818, %v883
    %885 = vmatmul.f32.gmra.mxu0 %v744
    %v886 = vpop.f32.mrf.mxu0
    %v887 = vadd.f32 %v818, %v886
    %888 = vmatmul.f32.gmra.mxu0 %v745
    %v889 = vpop.f32.mrf.mxu0
    %v890 = vadd.f32 %v818, %v889
    %891 = vmatmul.f32.gmra.mxu0 %v746
    %v892 = vpop.f32.mrf.mxu0
    %v893 = vadd.f32 %v818, %v892
    %894 = vmatmul.f32.gmra.mxu0 %v747
    %v895 = vpop.f32.mrf.mxu0
    %v896 = vadd.f32 %v818, %v895
    %897 = vmatmul.f32.gmra.mxu0 %v748
    %v898 = vpop.f32.mrf.mxu0
    %v899 = vadd.f32 %v818, %v898
    %900 = vmatmul.f32.gmra.mxu0 %v749
    %v901 = vpop.f32.mrf.mxu0
    %v902 = vadd.f32 %v818, %v901
    %903 = vmatmul.f32.gmra.mxu0 %v750
    %v904 = vpop.f32.mrf.mxu0
    %v905 = vadd.f32 %v818, %v904
    %906 = vdwg.mxu0
    %907 = vmatpush.msra.mxu0 %v813
    %908 = vmatpush.msra.mxu0 %v809
    %909 = vmatpush.msra.mxu0 %v805
    %910 = vmatpush.msra.mxu0 %v801
    %911 = vmatpush.msra.mxu0 %v797
    %912 = vmatpush.msra.mxu0 %v793
    %913 = vmatpush.msra.mxu0 %v789
    %914 = vmatpush.msra.mxu0 %v785
    %915 = vmatpush.msra.mxu0 %v781
    %916 = vmatpush.msra.mxu0 %v777
    %917 = vmatpush.msra.mxu0 %v773
    %918 = vmatpush.msra.mxu0 %v769
    %919 = vmatpush.msra.mxu0 %v765
    %920 = vmatpush.msra.mxu0 %v761
    %921 = vmatpush.msra.mxu0 %v757
    %922 = vmatpush.msra.mxu0 %v753
    %923 = vmatmul.f32.gmra.mxu0 %v743
    %v924 = vpop.f32.mrf.mxu0
    %v925 = vadd.f32 %v819, %v924
    %926 = vmatmul.f32.gmra.mxu0 %v744
    %v927 = vpop.f32.mrf.mxu0
    %v928 = vadd.f32 %v819, %v927
    %929 = vmatmul.f32.gmra.mxu0 %v745
    %v930 = vpop.f32.mrf.mxu0
    %v931 = vadd.f32 %v819, %v930
    %932 = vmatmul.f32.gmra.mxu0 %v746
    %v933 = vpop.f32.mrf.mxu0
    %v934 = vadd.f32 %v819, %v933
    %935 = vmatmul.f32.gmra.mxu0 %v747
    %v936 = vpop.f32.mrf.mxu0
    %v937 = vadd.f32 %v819, %v936
    %938 = vmatmul.f32.gmra.mxu0 %v748
    %v939 = vpop.f32.mrf.mxu0
    %v940 = vadd.f32 %v819, %v939
    %941 = vmatmul.f32.gmra.mxu0 %v749
    %v942 = vpop.f32.mrf.mxu0
    %v943 = vadd.f32 %v819, %v942
    %944 = vmatmul.f32.gmra.mxu0 %v750
    %v945 = vpop.f32.mrf.mxu0
    %v946 = vadd.f32 %v819, %v945
    %947 = vdwg.mxu0
    %948 = vmatpush.msra.mxu0 %v814
    %949 = vmatpush.msra.mxu0 %v810
    %950 = vmatpush.msra.mxu0 %v806
    %951 = vmatpush.msra.mxu0 %v802
    %952 = vmatpush.msra.mxu0 %v798
    %953 = vmatpush.msra.mxu0 %v794
    %954 = vmatpush.msra.mxu0 %v790
    %955 = vmatpush.msra.mxu0 %v786
    %956 = vmatpush.msra.mxu0 %v782
    %957 = vmatpush.msra.mxu0 %v778
    %958 = vmatpush.msra.mxu0 %v774
    %959 = vmatpush.msra.mxu0 %v770
    %960 = vmatpush.msra.mxu0 %v766
    %961 = vmatpush.msra.mxu0 %v762
    %962 = vmatpush.msra.mxu0 %v758
    %963 = vmatpush.msra.mxu0 %v754
    %964 = vmatmul.f32.gmra.mxu0 %v743
    %v965 = vpop.f32.mrf.mxu0
    %v966 = vadd.f32 %v820, %v965
    %967 = vmatmul.f32.gmra.mxu0 %v744
    %v968 = vpop.f32.mrf.mxu0
    %v969 = vadd.f32 %v820, %v968
    %970 = vmatmul.f32.gmra.mxu0 %v745
    %v971 = vpop.f32.mrf.mxu0
    %v972 = vadd.f32 %v820, %v971
    %973 = vmatmul.f32.gmra.mxu0 %v746
    %v974 = vpop.f32.mrf.mxu0
    %v975 = vadd.f32 %v820, %v974
    %976 = vmatmul.f32.gmra.mxu0 %v747
    %v977 = vpop.f32.mrf.mxu0
    %v978 = vadd.f32 %v820, %v977
    %979 = vmatmul.f32.gmra.mxu0 %v748
    %v980 = vpop.f32.mrf.mxu0
    %v981 = vadd.f32 %v820, %v980
    %982 = vmatmul.f32.gmra.mxu0 %v749
    %v983 = vpop.f32.mrf.mxu0
    %v984 = vadd.f32 %v820, %v983
    %985 = vmatmul.f32.gmra.mxu0 %v750
    %v986 = vpop.f32.mrf.mxu0
    %v987 = vadd.f32 %v820, %v986
    %988 = vdwg.mxu0
    %989 = vst [vmem:[#allocation2] sm:$0xff] %v843
    %990 = vst [vmem:[#allocation2 + $0x8] sm:$0xff] %v884
    %991 = vst [vmem:[#allocation2 + $0x10] sm:$0xff] %v925
    %992 = vst [vmem:[#allocation2 + $0x18] sm:$0xff] %v966
    %993 = vst [vmem:[#allocation2 + $0x20] sm:$0xff] %v846
    %994 = vst [vmem:[#allocation2 + $0x28] sm:$0xff] %v887
    %995 = vst [vmem:[#allocation2 + $0x30] sm:$0xff] %v928
    %996 = vst [vmem:[#allocation2 + $0x38] sm:$0xff] %v969
    %997 = vst [vmem:[#allocation2 + $0x40] sm:$0xff] %v849
    %998 = vst [vmem:[#allocation2 + $0x48] sm:$0xff] %v890
    %999 = vst [vmem:[#allocation2 + $0x50] sm:$0xff] %v931
    %1000 = vst [vmem:[#allocation2 + $0x58] sm:$0xff] %v972
    %1001 = vst [vmem:[#allocation2 + $0x60] sm:$0xff] %v852
    %1002 = vst [vmem:[#allocation2 + $0x68] sm:$0xff] %v893
    %1003 = vst [vmem:[#allocation2 + $0x70] sm:$0xff] %v934
    %1004 = vst [vmem:[#allocation2 + $0x78] sm:$0xff] %v975
    %1005 = vst [vmem:[#allocation2 + $0x80] sm:$0xff] %v855
    %1006 = vst [vmem:[#allocation2 + $0x88] sm:$0xff] %v896
    %1007 = vst [vmem:[#allocation2 + $0x90] sm:$0xff] %v937
    %1008 = vst [vmem:[#allocation2 + $0x98] sm:$0xff] %v978
    %1009 = vst [vmem:[#allocation2 + $0xa0] sm:$0xff] %v858
    %1010 = vst [vmem:[#allocation2 + $0xa8] sm:$0xff] %v899
    %1011 = vst [vmem:[#allocation2 + $0xb0] sm:$0xff] %v940
    %1012 = vst [vmem:[#allocation2 + $0xb8] sm:$0xff] %v981
    %1013 = vst [vmem:[#allocation2 + $0xc0] sm:$0xff] %v861
    %1014 = vst [vmem:[#allocation2 + $0xc8] sm:$0xff] %v902
    %1015 = vst [vmem:[#allocation2 + $0xd0] sm:$0xff] %v943
    %1016 = vst [vmem:[#allocation2 + $0xd8] sm:$0xff] %v984
    %1017 = vst [vmem:[#allocation2 + $0xe0] sm:$0xff] %v864
    %1018 = vst [vmem:[#allocation2 + $0xe8] sm:$0xff] %v905
    %1019 = vst [vmem:[#allocation2 + $0xf0] sm:$0xff] %v946
    %1020 = vst [vmem:[#allocation2 + $0xf8] sm:$0xff] %v987
    loop: start=0, step=1, limit=8
    $region129: #{tpu_custom_call.1} parent=1 // loop_pre_header
      _
    $region130: #{tpu_custom_call.1} parent=1 // loop_header
      %s1022 = sphi 0, %s1026
      %p1023 = scmp.ge.s32.totalorder %s1022, 8
      %v1027 = vphi 0.0, %v1249
      %v1028 = vphi 0.0, %v1247
    $region131: #{tpu_custom_call.1} parent=1 // loop_header_branch
      %1025 = sbr.rel (%p1023) target = $region135
    $region132: #{tpu_custom_call.1} parent=1 // loop_body
      %s1029 = smul.u32 %s1022, 8
      %s1030 = sshra.s32 %s1029, 3
      %s1031 = sand.u32 %s1029, 7
      %s1032 = smul.u32 %s1030, 4
      %s1033 = smul.addr %s1032, 8
      %s1034 = scalar_lea.vmem [#allocation2], %s1033
      %v1035 = vld [vmem:[%s1034] sm:$0xff]
      %v1036 = vld [vmem:[%s1034 + $0x8] sm:$0xff]
      %v1037 = vld [vmem:[%s1034 + $0x10] sm:$0xff]
      %v1038 = vld [vmem:[%s1034 + $0x18] sm:$0xff]
      %v1039 = vld [vmem:[#allocation14] sm:$0xff]
      %v1040 = vld [vmem:[#allocation14 + $0x8] sm:$0xff]
      %v1041 = vld [vmem:[#allocation14 + $0x10] sm:$0xff]
      %v1042 = vld [vmem:[#allocation14 + $0x18] sm:$0xff]
      %v1043 = vld [vmem:[#allocation14 + $0x20] sm:$0xff]
      %v1044 = vld [vmem:[#allocation14 + $0x28] sm:$0xff]
      %v1045 = vld [vmem:[#allocation14 + $0x30] sm:$0xff]
      %v1046 = vld [vmem:[#allocation14 + $0x38] sm:$0xff]
      %v1047 = vld [vmem:[#allocation14 + $0x40] sm:$0xff]
      %v1048 = vld [vmem:[#allocation14 + $0x48] sm:$0xff]
      %v1049 = vld [vmem:[#allocation14 + $0x50] sm:$0xff]
      %v1050 = vld [vmem:[#allocation14 + $0x58] sm:$0xff]
      %v1051 = vld [vmem:[#allocation14 + $0x60] sm:$0xff]
      %v1052 = vld [vmem:[#allocation14 + $0x68] sm:$0xff]
      %v1053 = vld [vmem:[#allocation14 + $0x70] sm:$0xff]
      %v1054 = vld [vmem:[#allocation14 + $0x78] sm:$0xff]
      %v1055 = vld [vmem:[#allocation14 + $0x80] sm:$0xff]
      %v1056 = vld [vmem:[#allocation14 + $0x88] sm:$0xff]
      %v1057 = vld [vmem:[#allocation14 + $0x90] sm:$0xff]
      %v1058 = vld [vmem:[#allocation14 + $0x98] sm:$0xff]
      %v1059 = vld [vmem:[#allocation14 + $0xa0] sm:$0xff]
      %v1060 = vld [vmem:[#allocation14 + $0xa8] sm:$0xff]
      %v1061 = vld [vmem:[#allocation14 + $0xb0] sm:$0xff]
      %v1062 = vld [vmem:[#allocation14 + $0xb8] sm:$0xff]
      %v1063 = vld [vmem:[#allocation14 + $0xc0] sm:$0xff]
      %v1064 = vld [vmem:[#allocation14 + $0xc8] sm:$0xff]
      %v1065 = vld [vmem:[#allocation14 + $0xd0] sm:$0xff]
      %v1066 = vld [vmem:[#allocation14 + $0xd8] sm:$0xff]
      %v1067 = vld [vmem:[#allocation14 + $0xe0] sm:$0xff]
      %v1068 = vld [vmem:[#allocation14 + $0xe8] sm:$0xff]
      %v1069 = vld [vmem:[#allocation14 + $0xf0] sm:$0xff]
      %v1070 = vld [vmem:[#allocation14 + $0xf8] sm:$0xff]
      %v1071 = vld [vmem:[#allocation14 + $0x100] sm:$0xff]
      %v1072 = vld [vmem:[#allocation14 + $0x108] sm:$0xff]
      %v1073 = vld [vmem:[#allocation14 + $0x110] sm:$0xff]
      %v1074 = vld [vmem:[#allocation14 + $0x118] sm:$0xff]
      %v1075 = vld [vmem:[#allocation14 + $0x120] sm:$0xff]
      %v1076 = vld [vmem:[#allocation14 + $0x128] sm:$0xff]
      %v1077 = vld [vmem:[#allocation14 + $0x130] sm:$0xff]
      %v1078 = vld [vmem:[#allocation14 + $0x138] sm:$0xff]
      %v1079 = vld [vmem:[#allocation14 + $0x140] sm:$0xff]
      %v1080 = vld [vmem:[#allocation14 + $0x148] sm:$0xff]
      %v1081 = vld [vmem:[#allocation14 + $0x150] sm:$0xff]
      %v1082 = vld [vmem:[#allocation14 + $0x158] sm:$0xff]
      %v1083 = vld [vmem:[#allocation14 + $0x160] sm:$0xff]
      %v1084 = vld [vmem:[#allocation14 + $0x168] sm:$0xff]
      %v1085 = vld [vmem:[#allocation14 + $0x170] sm:$0xff]
      %v1086 = vld [vmem:[#allocation14 + $0x178] sm:$0xff]
      %v1087 = vld [vmem:[#allocation14 + $0x180] sm:$0xff]
      %v1088 = vld [vmem:[#allocation14 + $0x188] sm:$0xff]
      %v1089 = vld [vmem:[#allocation14 + $0x190] sm:$0xff]
      %v1090 = vld [vmem:[#allocation14 + $0x198] sm:$0xff]
      %v1091 = vld [vmem:[#allocation14 + $0x1a0] sm:$0xff]
      %v1092 = vld [vmem:[#allocation14 + $0x1a8] sm:$0xff]
      %v1093 = vld [vmem:[#allocation14 + $0x1b0] sm:$0xff]
      %v1094 = vld [vmem:[#allocation14 + $0x1b8] sm:$0xff]
      %v1095 = vld [vmem:[#allocation14 + $0x1c0] sm:$0xff]
      %v1096 = vld [vmem:[#allocation14 + $0x1c8] sm:$0xff]
      %v1097 = vld [vmem:[#allocation14 + $0x1d0] sm:$0xff]
      %v1098 = vld [vmem:[#allocation14 + $0x1d8] sm:$0xff]
      %v1099 = vld [vmem:[#allocation14 + $0x1e0] sm:$0xff]
      %v1100 = vld [vmem:[#allocation14 + $0x1e8] sm:$0xff]
      %v1101 = vld [vmem:[#allocation14 + $0x1f0] sm:$0xff]
      %v1102 = vld [vmem:[#allocation14 + $0x1f8] sm:$0xff]
      %1103 = vmatpush.msra.mxu0 %v1099
      %1104 = vmatpush.msra.mxu0 %v1095
      %1105 = vmatpush.msra.mxu0 %v1091
      %1106 = vmatpush.msra.mxu0 %v1087
      %1107 = vmatpush.msra.mxu0 %v1083
      %1108 = vmatpush.msra.mxu0 %v1079
      %1109 = vmatpush.msra.mxu0 %v1075
      %1110 = vmatpush.msra.mxu0 %v1071
      %1111 = vmatpush.msra.mxu0 %v1067
      %1112 = vmatpush.msra.mxu0 %v1063
      %1113 = vmatpush.msra.mxu0 %v1059
      %1114 = vmatpush.msra.mxu0 %v1055
      %1115 = vmatpush.msra.mxu0 %v1051
      %1116 = vmatpush.msra.mxu0 %v1047
      %1117 = vmatpush.msra.mxu0 %v1043
      %1118 = vmatpush.msra.mxu0 %v1039
      %1119 = vmatmul.f32.gmra.mxu0 %v1027
      %v1120 = vpop.f32.mrf.mxu0
      %v1121 = vadd.f32 0.0, %v1120
      %1122 = vdwg.mxu0
      %1123 = vmatpush.msra.mxu0 %v1100
      %1124 = vmatpush.msra.mxu0 %v1096
      %1125 = vmatpush.msra.mxu0 %v1092
      %1126 = vmatpush.msra.mxu0 %v1088
      %1127 = vmatpush.msra.mxu0 %v1084
      %1128 = vmatpush.msra.mxu0 %v1080
      %1129 = vmatpush.msra.mxu0 %v1076
      %1130 = vmatpush.msra.mxu0 %v1072
      %1131 = vmatpush.msra.mxu0 %v1068
      %1132 = vmatpush.msra.mxu0 %v1064
      %1133 = vmatpush.msra.mxu0 %v1060
      %1134 = vmatpush.msra.mxu0 %v1056
      %1135 = vmatpush.msra.mxu0 %v1052
      %1136 = vmatpush.msra.mxu0 %v1048
      %1137 = vmatpush.msra.mxu0 %v1044
      %1138 = vmatpush.msra.mxu0 %v1040
      %1139 = vmatmul.f32.gmra.mxu0 %v1027
      %v1140 = vpop.f32.mrf.mxu0
      %v1141 = vadd.f32 0.0, %v1140
      %1142 = vdwg.mxu0
      %1143 = vmatpush.msra.mxu0 %v1101
      %1144 = vmatpush.msra.mxu0 %v1097
      %1145 = vmatpush.msra.mxu0 %v1093
      %1146 = vmatpush.msra.mxu0 %v1089
      %1147 = vmatpush.msra.mxu0 %v1085
      %1148 = vmatpush.msra.mxu0 %v1081
      %1149 = vmatpush.msra.mxu0 %v1077
      %1150 = vmatpush.msra.mxu0 %v1073
      %1151 = vmatpush.msra.mxu0 %v1069
      %1152 = vmatpush.msra.mxu0 %v1065
      %1153 = vmatpush.msra.mxu0 %v1061
      %1154 = vmatpush.msra.mxu0 %v1057
      %1155 = vmatpush.msra.mxu0 %v1053
      %1156 = vmatpush.msra.mxu0 %v1049
      %1157 = vmatpush.msra.mxu0 %v1045
      %1158 = vmatpush.msra.mxu0 %v1041
      %1159 = vmatmul.f32.gmra.mxu0 %v1027
      %v1160 = vpop.f32.mrf.mxu0
      %v1161 = vadd.f32 0.0, %v1160
      %1162 = vdwg.mxu0
      %1163 = vmatpush.msra.mxu0 %v1102
      %1164 = vmatpush.msra.mxu0 %v1098
      %1165 = vmatpush.msra.mxu0 %v1094
      %1166 = vmatpush.msra.mxu0 %v1090
      %1167 = vmatpush.msra.mxu0 %v1086
      %1168 = vmatpush.msra.mxu0 %v1082
      %1169 = vmatpush.msra.mxu0 %v1078
      %1170 = vmatpush.msra.mxu0 %v1074
      %1171 = vmatpush.msra.mxu0 %v1070
      %1172 = vmatpush.msra.mxu0 %v1066
      %1173 = vmatpush.msra.mxu0 %v1062
      %1174 = vmatpush.msra.mxu0 %v1058
      %1175 = vmatpush.msra.mxu0 %v1054
      %1176 = vmatpush.msra.mxu0 %v1050
      %1177 = vmatpush.msra.mxu0 %v1046
      %1178 = vmatpush.msra.mxu0 %v1042
      %1179 = vmatmul.f32.gmra.mxu0 %v1027
      %v1180 = vpop.f32.mrf.mxu0
      %v1181 = vadd.f32 0.0, %v1180
      %1182 = vdwg.mxu0
      %v1183 = vadd.f32 %v1035, %v1121
      %v1184 = vadd.f32 %v1036, %v1141
      %v1185 = vadd.f32 %v1037, %v1161
      %v1186 = vadd.f32 %v1038, %v1181
      %v1187 = vxor.u32 %v1183, 2147483648
      %v1188 = vmul.f32 %v1187, 1.442695
      %v1189 = vpow.pop %v1188
      %v1190 = vadd.f32 %v1189, 1.0
      %v1191 = vrcp.pop %v1190
      %v1192 = vmul.f32 %v1190, %v1191
      %v1193 = vsub.f32 1.0, %v1192
      %v1194 = vmul.f32 %v1191, %v1193
      %v1195 = vadd.f32 %v1191, %v1194
      %vm1196 = vweird.f32 %v1190
      %vm1197 = vweird.f32 %v1191
      %vm1198 = vmor %vm1196, %vm1197
      %v1199 = vsel %vm1198, %v1191, %v1195
      %v1200 = vand.u32 2147483647, %v1190
      %vm1201 = vcmp.eq.f32.partialorder %v1200, 8.507059e+37
      %v1202 = vand.u32 %v1190, 2147483648
      %v1203 = vor.u32 1.1754944e-38, %v1202
      %v1204 = vsel %vm1201, %v1203, %v1199
      %v1205 = vmul.f32 1.0, %v1204
      %v1206 = vxor.u32 %v1184, 2147483648
      %v1207 = vmul.f32 %v1206, 1.442695
      %v1208 = vpow.pop %v1207
      %v1209 = vadd.f32 %v1208, 1.0
      %v1210 = vrcp.pop %v1209
      %v1211 = vmul.f32 %v1209, %v1210
      %v1212 = vsub.f32 1.0, %v1211
      %v1213 = vmul.f32 %v1210, %v1212
      %v1214 = vadd.f32 %v1210, %v1213
      %vm1215 = vweird.f32 %v1209
      %vm1216 = vweird.f32 %v1210
      %vm1217 = vmor %vm1215, %vm1216
      %v1218 = vsel %vm1217, %v1210, %v1214
      %v1219 = vand.u32 2147483647, %v1209
      %vm1220 = vcmp.eq.f32.partialorder %v1219, 8.507059e+37
      %v1221 = vand.u32 %v1209, 2147483648
      %v1222 = vor.u32 1.1754944e-38, %v1221
      %v1223 = vsel %vm1220, %v1222, %v1218
      %v1224 = vmul.f32 1.0, %v1223
      %v1225 = vtanh.pop %v1185
      %v1226 = vxor.u32 %v1186, 2147483648
      %v1227 = vmul.f32 %v1226, 1.442695
      %v1228 = vpow.pop %v1227
      %v1229 = vadd.f32 %v1228, 1.0
      %v1230 = vrcp.pop %v1229
      %v1231 = vmul.f32 %v1229, %v1230
      %v1232 = vsub.f32 1.0, %v1231
      %v1233 = vmul.f32 %v1230, %v1232
      %v1234 = vadd.f32 %v1230, %v1233
      %vm1235 = vweird.f32 %v1229
      %vm1236 = vweird.f32 %v1230
      %vm1237 = vmor %vm1235, %vm1236
      %v1238 = vsel %vm1237, %v1230, %v1234
      %v1239 = vand.u32 2147483647, %v1229
      %vm1240 = vcmp.eq.f32.partialorder %v1239, 8.507059e+37
      %v1241 = vand.u32 %v1229, 2147483648
      %v1242 = vor.u32 1.1754944e-38, %v1241
      %v1243 = vsel %vm1240, %v1242, %v1238
      %v1244 = vmul.f32 1.0, %v1243
      %v1245 = vmul.f32 %v1224, %v1028
      %v1246 = vmul.f32 %v1205, %v1225
      %v1247 = vadd.f32 %v1245, %v1246
      %v1248 = vtanh.pop %v1247
      %v1249 = vmul.f32 %v1244, %v1248
      %s1250 = scalar_lea.vmem [#allocation3], %s1029
      %1251 = vst [vmem:[%s1250] sm:$0xff] %v1249
    $region133: #{tpu_custom_call.1} parent=1 // loop_footer
      %s1026 = sadd.s32 1, %s1022
    $region134: #{tpu_custom_call.1} parent=1 // loop_footer_branch
      %1021 = sbr.rel target = $region130
    $region135: #{tpu_custom_call.1} parent=1 // loop_exit
      _
    %v1252 = vld [vmem:[#allocation3] sm:$0xff]
    %v1253 = vld [vmem:[#allocation3 + $0x8] sm:$0xff]
    %v1254 = vld [vmem:[#allocation3 + $0x10] sm:$0xff]
    %v1255 = vld [vmem:[#allocation3 + $0x18] sm:$0xff]
    %v1256 = vld [vmem:[#allocation3 + $0x20] sm:$0xff]
    %v1257 = vld [vmem:[#allocation3 + $0x28] sm:$0xff]
    %v1258 = vld [vmem:[#allocation3 + $0x30] sm:$0xff]
    %v1259 = vld [vmem:[#allocation3 + $0x38] sm:$0xff]
    %v1260 = vld [vmem:[#allocation15] sm:$0xff]
    %v1261 = vld [vmem:[#allocation15 + $0x8] sm:$0xff]
    %v1262 = vld [vmem:[#allocation15 + $0x10] sm:$0xff]
    %v1263 = vld [vmem:[#allocation15 + $0x18] sm:$0xff]
    %v1264 = vld [vmem:[#allocation15 + $0x20] sm:$0xff]
    %v1265 = vld [vmem:[#allocation15 + $0x28] sm:$0xff]
    %v1266 = vld [vmem:[#allocation15 + $0x30] sm:$0xff]
    %v1267 = vld [vmem:[#allocation15 + $0x38] sm:$0xff]
    %v1268 = vld [vmem:[#allocation15 + $0x40] sm:$0xff]
    %v1269 = vld [vmem:[#allocation15 + $0x48] sm:$0xff]
    %v1270 = vld [vmem:[#allocation15 + $0x50] sm:$0xff]
    %v1271 = vld [vmem:[#allocation15 + $0x58] sm:$0xff]
    %v1272 = vld [vmem:[#allocation15 + $0x60] sm:$0xff]
    %v1273 = vld [vmem:[#allocation15 + $0x68] sm:$0xff]
    %v1274 = vld [vmem:[#allocation15 + $0x70] sm:$0xff]
    %v1275 = vld [vmem:[#allocation15 + $0x78] sm:$0xff]
    %v1276 = vld [vmem:[#allocation15 + $0x80] sm:$0xff]
    %v1277 = vld [vmem:[#allocation15 + $0x88] sm:$0xff]
    %v1278 = vld [vmem:[#allocation15 + $0x90] sm:$0xff]
    %v1279 = vld [vmem:[#allocation15 + $0x98] sm:$0xff]
    %v1280 = vld [vmem:[#allocation15 + $0xa0] sm:$0xff]
    %v1281 = vld [vmem:[#allocation15 + $0xa8] sm:$0xff]
    %v1282 = vld [vmem:[#allocation15 + $0xb0] sm:$0xff]
    %v1283 = vld [vmem:[#allocation15 + $0xb8] sm:$0xff]
    %v1284 = vld [vmem:[#allocation15 + $0xc0] sm:$0xff]
    %v1285 = vld [vmem:[#allocation15 + $0xc8] sm:$0xff]
    %v1286 = vld [vmem:[#allocation15 + $0xd0] sm:$0xff]
    %v1287 = vld [vmem:[#allocation15 + $0xd8] sm:$0xff]
    %v1288 = vld [vmem:[#allocation15 + $0xe0] sm:$0xff]
    %v1289 = vld [vmem:[#allocation15 + $0xe8] sm:$0xff]
    %v1290 = vld [vmem:[#allocation15 + $0xf0] sm:$0xff]
    %v1291 = vld [vmem:[#allocation15 + $0xf8] sm:$0xff]
    %v1292 = vld [vmem:[#allocation15 + $0x100] sm:$0xff]
    %v1293 = vld [vmem:[#allocation15 + $0x108] sm:$0xff]
    %v1294 = vld [vmem:[#allocation15 + $0x110] sm:$0xff]
    %v1295 = vld [vmem:[#allocation15 + $0x118] sm:$0xff]
    %v1296 = vld [vmem:[#allocation15 + $0x120] sm:$0xff]
    %v1297 = vld [vmem:[#allocation15 + $0x128] sm:$0xff]
    %v1298 = vld [vmem:[#allocation15 + $0x130] sm:$0xff]
    %v1299 = vld [vmem:[#allocation15 + $0x138] sm:$0xff]
    %v1300 = vld [vmem:[#allocation15 + $0x140] sm:$0xff]
    %v1301 = vld [vmem:[#allocation15 + $0x148] sm:$0xff]
    %v1302 = vld [vmem:[#allocation15 + $0x150] sm:$0xff]
    %v1303 = vld [vmem:[#allocation15 + $0x158] sm:$0xff]
    %v1304 = vld [vmem:[#allocation15 + $0x160] sm:$0xff]
    %v1305 = vld [vmem:[#allocation15 + $0x168] sm:$0xff]
    %v1306 = vld [vmem:[#allocation15 + $0x170] sm:$0xff]
    %v1307 = vld [vmem:[#allocation15 + $0x178] sm:$0xff]
    %v1308 = vld [vmem:[#allocation15 + $0x180] sm:$0xff]
    %v1309 = vld [vmem:[#allocation15 + $0x188] sm:$0xff]
    %v1310 = vld [vmem:[#allocation15 + $0x190] sm:$0xff]
    %v1311 = vld [vmem:[#allocation15 + $0x198] sm:$0xff]
    %v1312 = vld [vmem:[#allocation15 + $0x1a0] sm:$0xff]
    %v1313 = vld [vmem:[#allocation15 + $0x1a8] sm:$0xff]
    %v1314 = vld [vmem:[#allocation15 + $0x1b0] sm:$0xff]
    %v1315 = vld [vmem:[#allocation15 + $0x1b8] sm:$0xff]
    %v1316 = vld [vmem:[#allocation15 + $0x1c0] sm:$0xff]
    %v1317 = vld [vmem:[#allocation15 + $0x1c8] sm:$0xff]
    %v1318 = vld [vmem:[#allocation15 + $0x1d0] sm:$0xff]
    %v1319 = vld [vmem:[#allocation15 + $0x1d8] sm:$0xff]
    %v1320 = vld [vmem:[#allocation15 + $0x1e0] sm:$0xff]
    %v1321 = vld [vmem:[#allocation15 + $0x1e8] sm:$0xff]
    %v1322 = vld [vmem:[#allocation15 + $0x1f0] sm:$0xff]
    %v1323 = vld [vmem:[#allocation15 + $0x1f8] sm:$0xff]
    %v1324 = vld [vmem:[%s9] sm:$0xf]
    %v1326 = vperm.slane %v1324, 0
    %v1327 = vperm.slane %v1324, 1
    %v1328 = vperm.slane %v1324, 2
    %v1329 = vperm.slane %v1324, 3
    %1334 = vmatpush.msra.mxu0 %v1320
    %1335 = vmatpush.msra.mxu0 %v1316
    %1336 = vmatpush.msra.mxu0 %v1312
    %1337 = vmatpush.msra.mxu0 %v1308
    %1338 = vmatpush.msra.mxu0 %v1304
    %1339 = vmatpush.msra.mxu0 %v1300
    %1340 = vmatpush.msra.mxu0 %v1296
    %1341 = vmatpush.msra.mxu0 %v1292
    %1342 = vmatpush.msra.mxu0 %v1288
    %1343 = vmatpush.msra.mxu0 %v1284
    %1344 = vmatpush.msra.mxu0 %v1280
    %1345 = vmatpush.msra.mxu0 %v1276
    %1346 = vmatpush.msra.mxu0 %v1272
    %1347 = vmatpush.msra.mxu0 %v1268
    %1348 = vmatpush.msra.mxu0 %v1264
    %1349 = vmatpush.msra.mxu0 %v1260
    %1350 = vmatmul.f32.gmra.mxu0 %v1252
    %v1351 = vpop.f32.mrf.mxu0
    %v1352 = vadd.f32 %v1326, %v1351
    %1353 = vmatmul.f32.gmra.mxu0 %v1253
    %v1354 = vpop.f32.mrf.mxu0
    %v1355 = vadd.f32 %v1326, %v1354
    %1356 = vmatmul.f32.gmra.mxu0 %v1254
    %v1357 = vpop.f32.mrf.mxu0
    %v1358 = vadd.f32 %v1326, %v1357
    %1359 = vmatmul.f32.gmra.mxu0 %v1255
    %v1360 = vpop.f32.mrf.mxu0
    %v1361 = vadd.f32 %v1326, %v1360
    %1362 = vmatmul.f32.gmra.mxu0 %v1256
    %v1363 = vpop.f32.mrf.mxu0
    %v1364 = vadd.f32 %v1326, %v1363
    %1365 = vmatmul.f32.gmra.mxu0 %v1257
    %v1366 = vpop.f32.mrf.mxu0
    %v1367 = vadd.f32 %v1326, %v1366
    %1368 = vmatmul.f32.gmra.mxu0 %v1258
    %v1369 = vpop.f32.mrf.mxu0
    %v1370 = vadd.f32 %v1326, %v1369
    %1371 = vmatmul.f32.gmra.mxu0 %v1259
    %v1372 = vpop.f32.mrf.mxu0
    %v1373 = vadd.f32 %v1326, %v1372
    %1374 = vdwg.mxu0
    %1375 = vmatpush.msra.mxu0 %v1321
    %1376 = vmatpush.msra.mxu0 %v1317
    %1377 = vmatpush.msra.mxu0 %v1313
    %1378 = vmatpush.msra.mxu0 %v1309
    %1379 = vmatpush.msra.mxu0 %v1305
    %1380 = vmatpush.msra.mxu0 %v1301
    %1381 = vmatpush.msra.mxu0 %v1297
    %1382 = vmatpush.msra.mxu0 %v1293
    %1383 = vmatpush.msra.mxu0 %v1289
    %1384 = vmatpush.msra.mxu0 %v1285
    %1385 = vmatpush.msra.mxu0 %v1281
    %1386 = vmatpush.msra.mxu0 %v1277
    %1387 = vmatpush.msra.mxu0 %v1273
    %1388 = vmatpush.msra.mxu0 %v1269
    %1389 = vmatpush.msra.mxu0 %v1265
    %1390 = vmatpush.msra.mxu0 %v1261
    %1391 = vmatmul.f32.gmra.mxu0 %v1252
    %v1392 = vpop.f32.mrf.mxu0
    %v1393 = vadd.f32 %v1327, %v1392
    %1394 = vmatmul.f32.gmra.mxu0 %v1253
    %v1395 = vpop.f32.mrf.mxu0
    %v1396 = vadd.f32 %v1327, %v1395
    %1397 = vmatmul.f32.gmra.mxu0 %v1254
    %v1398 = vpop.f32.mrf.mxu0
    %v1399 = vadd.f32 %v1327, %v1398
    %1400 = vmatmul.f32.gmra.mxu0 %v1255
    %v1401 = vpop.f32.mrf.mxu0
    %v1402 = vadd.f32 %v1327, %v1401
    %1403 = vmatmul.f32.gmra.mxu0 %v1256
    %v1404 = vpop.f32.mrf.mxu0
    %v1405 = vadd.f32 %v1327, %v1404
    %1406 = vmatmul.f32.gmra.mxu0 %v1257
    %v1407 = vpop.f32.mrf.mxu0
    %v1408 = vadd.f32 %v1327, %v1407
    %1409 = vmatmul.f32.gmra.mxu0 %v1258
    %v1410 = vpop.f32.mrf.mxu0
    %v1411 = vadd.f32 %v1327, %v1410
    %1412 = vmatmul.f32.gmra.mxu0 %v1259
    %v1413 = vpop.f32.mrf.mxu0
    %v1414 = vadd.f32 %v1327, %v1413
    %1415 = vdwg.mxu0
    %1416 = vmatpush.msra.mxu0 %v1322
    %1417 = vmatpush.msra.mxu0 %v1318
    %1418 = vmatpush.msra.mxu0 %v1314
    %1419 = vmatpush.msra.mxu0 %v1310
    %1420 = vmatpush.msra.mxu0 %v1306
    %1421 = vmatpush.msra.mxu0 %v1302
    %1422 = vmatpush.msra.mxu0 %v1298
    %1423 = vmatpush.msra.mxu0 %v1294
    %1424 = vmatpush.msra.mxu0 %v1290
    %1425 = vmatpush.msra.mxu0 %v1286
    %1426 = vmatpush.msra.mxu0 %v1282
    %1427 = vmatpush.msra.mxu0 %v1278
    %1428 = vmatpush.msra.mxu0 %v1274
    %1429 = vmatpush.msra.mxu0 %v1270
    %1430 = vmatpush.msra.mxu0 %v1266
    %1431 = vmatpush.msra.mxu0 %v1262
    %1432 = vmatmul.f32.gmra.mxu0 %v1252
    %v1433 = vpop.f32.mrf.mxu0
    %v1434 = vadd.f32 %v1328, %v1433
    %1435 = vmatmul.f32.gmra.mxu0 %v1253
    %v1436 = vpop.f32.mrf.mxu0
    %v1437 = vadd.f32 %v1328, %v1436
    %1438 = vmatmul.f32.gmra.mxu0 %v1254
    %v1439 = vpop.f32.mrf.mxu0
    %v1440 = vadd.f32 %v1328, %v1439
    %1441 = vmatmul.f32.gmra.mxu0 %v1255
    %v1442 = vpop.f32.mrf.mxu0
    %v1443 = vadd.f32 %v1328, %v1442
    %1444 = vmatmul.f32.gmra.mxu0 %v1256
    %v1445 = vpop.f32.mrf.mxu0
    %v1446 = vadd.f32 %v1328, %v1445
    %1447 = vmatmul.f32.gmra.mxu0 %v1257
    %v1448 = vpop.f32.mrf.mxu0
    %v1449 = vadd.f32 %v1328, %v1448
    %1450 = vmatmul.f32.gmra.mxu0 %v1258
    %v1451 = vpop.f32.mrf.mxu0
    %v1452 = vadd.f32 %v1328, %v1451
    %1453 = vmatmul.f32.gmra.mxu0 %v1259
    %v1454 = vpop.f32.mrf.mxu0
    %v1455 = vadd.f32 %v1328, %v1454
    %1456 = vdwg.mxu0
    %1457 = vmatpush.msra.mxu0 %v1323
    %1458 = vmatpush.msra.mxu0 %v1319
    %1459 = vmatpush.msra.mxu0 %v1315
    %1460 = vmatpush.msra.mxu0 %v1311
    %1461 = vmatpush.msra.mxu0 %v1307
    %1462 = vmatpush.msra.mxu0 %v1303
    %1463 = vmatpush.msra.mxu0 %v1299
    %1464 = vmatpush.msra.mxu0 %v1295
    %1465 = vmatpush.msra.mxu0 %v1291
    %1466 = vmatpush.msra.mxu0 %v1287
    %1467 = vmatpush.msra.mxu0 %v1283
    %1468 = vmatpush.msra.mxu0 %v1279
    %1469 = vmatpush.msra.mxu0 %v1275
    %1470 = vmatpush.msra.mxu0 %v1271
    %1471 = vmatpush.msra.mxu0 %v1267
    %1472 = vmatpush.msra.mxu0 %v1263
    %1473 = vmatmul.f32.gmra.mxu0 %v1252
    %v1474 = vpop.f32.mrf.mxu0
    %v1475 = vadd.f32 %v1329, %v1474
    %1476 = vmatmul.f32.gmra.mxu0 %v1253
    %v1477 = vpop.f32.mrf.mxu0
    %v1478 = vadd.f32 %v1329, %v1477
    %1479 = vmatmul.f32.gmra.mxu0 %v1254
    %v1480 = vpop.f32.mrf.mxu0
    %v1481 = vadd.f32 %v1329, %v1480
    %1482 = vmatmul.f32.gmra.mxu0 %v1255
    %v1483 = vpop.f32.mrf.mxu0
    %v1484 = vadd.f32 %v1329, %v1483
    %1485 = vmatmul.f32.gmra.mxu0 %v1256
    %v1486 = vpop.f32.mrf.mxu0
    %v1487 = vadd.f32 %v1329, %v1486
    %1488 = vmatmul.f32.gmra.mxu0 %v1257
    %v1489 = vpop.f32.mrf.mxu0
    %v1490 = vadd.f32 %v1329, %v1489
    %1491 = vmatmul.f32.gmra.mxu0 %v1258
    %v1492 = vpop.f32.mrf.mxu0
    %v1493 = vadd.f32 %v1329, %v1492
    %1494 = vmatmul.f32.gmra.mxu0 %v1259
    %v1495 = vpop.f32.mrf.mxu0
    %v1496 = vadd.f32 %v1329, %v1495
    %1497 = vdwg.mxu0
    %1498 = vst [vmem:[#allocation2] sm:$0xff] %v1352
    %1499 = vst [vmem:[#allocation2 + $0x8] sm:$0xff] %v1393
    %1500 = vst [vmem:[#allocation2 + $0x10] sm:$0xff] %v1434
    %1501 = vst [vmem:[#allocation2 + $0x18] sm:$0xff] %v1475
    %1502 = vst [vmem:[#allocation2 + $0x20] sm:$0xff] %v1355
    %1503 = vst [vmem:[#allocation2 + $0x28] sm:$0xff] %v1396
    %1504 = vst [vmem:[#allocation2 + $0x30] sm:$0xff] %v1437
    %1505 = vst [vmem:[#allocation2 + $0x38] sm:$0xff] %v1478
    %1506 = vst [vmem:[#allocation2 + $0x40] sm:$0xff] %v1358
    %1507 = vst [vmem:[#allocation2 + $0x48] sm:$0xff] %v1399
    %1508 = vst [vmem:[#allocation2 + $0x50] sm:$0xff] %v1440
    %1509 = vst [vmem:[#allocation2 + $0x58] sm:$0xff] %v1481
    %1510 = vst [vmem:[#allocation2 + $0x60] sm:$0xff] %v1361
    %1511 = vst [vmem:[#allocation2 + $0x68] sm:$0xff] %v1402
    %1512 = vst [vmem:[#allocation2 + $0x70] sm:$0xff] %v1443
    %1513 = vst [vmem:[#allocation2 + $0x78] sm:$0xff] %v1484
    %1514 = vst [vmem:[#allocation2 + $0x80] sm:$0xff] %v1364
    %1515 = vst [vmem:[#allocation2 + $0x88] sm:$0xff] %v1405
    %1516 = vst [vmem:[#allocation2 + $0x90] sm:$0xff] %v1446
    %1517 = vst [vmem:[#allocation2 + $0x98] sm:$0xff] %v1487
    %1518 = vst [vmem:[#allocation2 + $0xa0] sm:$0xff] %v1367
    %1519 = vst [vmem:[#allocation2 + $0xa8] sm:$0xff] %v1408
    %1520 = vst [vmem:[#allocation2 + $0xb0] sm:$0xff] %v1449
    %1521 = vst [vmem:[#allocation2 + $0xb8] sm:$0xff] %v1490
    %1522 = vst [vmem:[#allocation2 + $0xc0] sm:$0xff] %v1370
    %1523 = vst [vmem:[#allocation2 + $0xc8] sm:$0xff] %v1411
    %1524 = vst [vmem:[#allocation2 + $0xd0] sm:$0xff] %v1452
    %1525 = vst [vmem:[#allocation2 + $0xd8] sm:$0xff] %v1493
    %1526 = vst [vmem:[#allocation2 + $0xe0] sm:$0xff] %v1373
    %1527 = vst [vmem:[#allocation2 + $0xe8] sm:$0xff] %v1414
    %1528 = vst [vmem:[#allocation2 + $0xf0] sm:$0xff] %v1455
    %1529 = vst [vmem:[#allocation2 + $0xf8] sm:$0xff] %v1496
    loop: start=0, step=1, limit=8
    $region136: #{tpu_custom_call.1} parent=1 // loop_pre_header
      _
    $region137: #{tpu_custom_call.1} parent=1 // loop_header
      %s1531 = sphi 0, %s1535
      %p1532 = scmp.ge.s32.totalorder %s1531, 8
      %v1536 = vphi 0.0, %v1758
      %v1537 = vphi 0.0, %v1756
    $region138: #{tpu_custom_call.1} parent=1 // loop_header_branch
      %1534 = sbr.rel (%p1532) target = $region142
    $region139: #{tpu_custom_call.1} parent=1 // loop_body
      %s1538 = smul.u32 %s1531, 8
      %s1539 = sshra.s32 %s1538, 3
      %s1540 = sand.u32 %s1538, 7
      %s1541 = smul.u32 %s1539, 4
      %s1542 = smul.addr %s1541, 8
      %s1543 = scalar_lea.vmem [#allocation2], %s1542
      %v1544 = vld [vmem:[%s1543] sm:$0xff]
      %v1545 = vld [vmem:[%s1543 + $0x8] sm:$0xff]
      %v1546 = vld [vmem:[%s1543 + $0x10] sm:$0xff]
      %v1547 = vld [vmem:[%s1543 + $0x18] sm:$0xff]
      %v1548 = vld [vmem:[#allocation17] sm:$0xff]
      %v1549 = vld [vmem:[#allocation17 + $0x8] sm:$0xff]
      %v1550 = vld [vmem:[#allocation17 + $0x10] sm:$0xff]
      %v1551 = vld [vmem:[#allocation17 + $0x18] sm:$0xff]
      %v1552 = vld [vmem:[#allocation17 + $0x20] sm:$0xff]
      %v1553 = vld [vmem:[#allocation17 + $0x28] sm:$0xff]
      %v1554 = vld [vmem:[#allocation17 + $0x30] sm:$0xff]
      %v1555 = vld [vmem:[#allocation17 + $0x38] sm:$0xff]
      %v1556 = vld [vmem:[#allocation17 + $0x40] sm:$0xff]
      %v1557 = vld [vmem:[#allocation17 + $0x48] sm:$0xff]
      %v1558 = vld [vmem:[#allocation17 + $0x50] sm:$0xff]
      %v1559 = vld [vmem:[#allocation17 + $0x58] sm:$0xff]
      %v1560 = vld [vmem:[#allocation17 + $0x60] sm:$0xff]
      %v1561 = vld [vmem:[#allocation17 + $0x68] sm:$0xff]
      %v1562 = vld [vmem:[#allocation17 + $0x70] sm:$0xff]
      %v1563 = vld [vmem:[#allocation17 + $0x78] sm:$0xff]
      %v1564 = vld [vmem:[#allocation17 + $0x80] sm:$0xff]
      %v1565 = vld [vmem:[#allocation17 + $0x88] sm:$0xff]
      %v1566 = vld [vmem:[#allocation17 + $0x90] sm:$0xff]
      %v1567 = vld [vmem:[#allocation17 + $0x98] sm:$0xff]
      %v1568 = vld [vmem:[#allocation17 + $0xa0] sm:$0xff]
      %v1569 = vld [vmem:[#allocation17 + $0xa8] sm:$0xff]
      %v1570 = vld [vmem:[#allocation17 + $0xb0] sm:$0xff]
      %v1571 = vld [vmem:[#allocation17 + $0xb8] sm:$0xff]
      %v1572 = vld [vmem:[#allocation17 + $0xc0] sm:$0xff]
      %v1573 = vld [vmem:[#allocation17 + $0xc8] sm:$0xff]
      %v1574 = vld [vmem:[#allocation17 + $0xd0] sm:$0xff]
      %v1575 = vld [vmem:[#allocation17 + $0xd8] sm:$0xff]
      %v1576 = vld [vmem:[#allocation17 + $0xe0] sm:$0xff]
      %v1577 = vld [vmem:[#allocation17 + $0xe8] sm:$0xff]
      %v1578 = vld [vmem:[#allocation17 + $0xf0] sm:$0xff]
      %v1579 = vld [vmem:[#allocation17 + $0xf8] sm:$0xff]
      %v1580 = vld [vmem:[#allocation17 + $0x100] sm:$0xff]
      %v1581 = vld [vmem:[#allocation17 + $0x108] sm:$0xff]
      %v1582 = vld [vmem:[#allocation17 + $0x110] sm:$0xff]
      %v1583 = vld [vmem:[#allocation17 + $0x118] sm:$0xff]
      %v1584 = vld [vmem:[#allocation17 + $0x120] sm:$0xff]
      %v1585 = vld [vmem:[#allocation17 + $0x128] sm:$0xff]
      %v1586 = vld [vmem:[#allocation17 + $0x130] sm:$0xff]
      %v1587 = vld [vmem:[#allocation17 + $0x138] sm:$0xff]
      %v1588 = vld [vmem:[#allocation17 + $0x140] sm:$0xff]
      %v1589 = vld [vmem:[#allocation17 + $0x148] sm:$0xff]
      %v1590 = vld [vmem:[#allocation17 + $0x150] sm:$0xff]
      %v1591 = vld [vmem:[#allocation17 + $0x158] sm:$0xff]
      %v1592 = vld [vmem:[#allocation17 + $0x160] sm:$0xff]
      %v1593 = vld [vmem:[#allocation17 + $0x168] sm:$0xff]
      %v1594 = vld [vmem:[#allocation17 + $0x170] sm:$0xff]
      %v1595 = vld [vmem:[#allocation17 + $0x178] sm:$0xff]
      %v1596 = vld [vmem:[#allocation17 + $0x180] sm:$0xff]
      %v1597 = vld [vmem:[#allocation17 + $0x188] sm:$0xff]
      %v1598 = vld [vmem:[#allocation17 + $0x190] sm:$0xff]
      %v1599 = vld [vmem:[#allocation17 + $0x198] sm:$0xff]
      %v1600 = vld [vmem:[#allocation17 + $0x1a0] sm:$0xff]
      %v1601 = vld [vmem:[#allocation17 + $0x1a8] sm:$0xff]
      %v1602 = vld [vmem:[#allocation17 + $0x1b0] sm:$0xff]
      %v1603 = vld [vmem:[#allocation17 + $0x1b8] sm:$0xff]
      %v1604 = vld [vmem:[#allocation17 + $0x1c0] sm:$0xff]
      %v1605 = vld [vmem:[#allocation17 + $0x1c8] sm:$0xff]
      %v1606 = vld [vmem:[#allocation17 + $0x1d0] sm:$0xff]
      %v1607 = vld [vmem:[#allocation17 + $0x1d8] sm:$0xff]
      %v1608 = vld [vmem:[#allocation17 + $0x1e0] sm:$0xff]
      %v1609 = vld [vmem:[#allocation17 + $0x1e8] sm:$0xff]
      %v1610 = vld [vmem:[#allocation17 + $0x1f0] sm:$0xff]
      %v1611 = vld [vmem:[#allocation17 + $0x1f8] sm:$0xff]
      %1612 = vmatpush.msra.mxu0 %v1608
      %1613 = vmatpush.msra.mxu0 %v1604
      %1614 = vmatpush.msra.mxu0 %v1600
      %1615 = vmatpush.msra.mxu0 %v1596
      %1616 = vmatpush.msra.mxu0 %v1592
      %1617 = vmatpush.msra.mxu0 %v1588
      %1618 = vmatpush.msra.mxu0 %v1584
      %1619 = vmatpush.msra.mxu0 %v1580
      %1620 = vmatpush.msra.mxu0 %v1576
      %1621 = vmatpush.msra.mxu0 %v1572
      %1622 = vmatpush.msra.mxu0 %v1568
      %1623 = vmatpush.msra.mxu0 %v1564
      %1624 = vmatpush.msra.mxu0 %v1560
      %1625 = vmatpush.msra.mxu0 %v1556
      %1626 = vmatpush.msra.mxu0 %v1552
      %1627 = vmatpush.msra.mxu0 %v1548
      %1628 = vmatmul.f32.gmra.mxu0 %v1536
      %v1629 = vpop.f32.mrf.mxu0
      %v1630 = vadd.f32 0.0, %v1629
      %1631 = vdwg.mxu0
      %1632 = vmatpush.msra.mxu0 %v1609
      %1633 = vmatpush.msra.mxu0 %v1605
      %1634 = vmatpush.msra.mxu0 %v1601
      %1635 = vmatpush.msra.mxu0 %v1597
      %1636 = vmatpush.msra.mxu0 %v1593
      %1637 = vmatpush.msra.mxu0 %v1589
      %1638 = vmatpush.msra.mxu0 %v1585
      %1639 = vmatpush.msra.mxu0 %v1581
      %1640 = vmatpush.msra.mxu0 %v1577
      %1641 = vmatpush.msra.mxu0 %v1573
      %1642 = vmatpush.msra.mxu0 %v1569
      %1643 = vmatpush.msra.mxu0 %v1565
      %1644 = vmatpush.msra.mxu0 %v1561
      %1645 = vmatpush.msra.mxu0 %v1557
      %1646 = vmatpush.msra.mxu0 %v1553
      %1647 = vmatpush.msra.mxu0 %v1549
      %1648 = vmatmul.f32.gmra.mxu0 %v1536
      %v1649 = vpop.f32.mrf.mxu0
      %v1650 = vadd.f32 0.0, %v1649
      %1651 = vdwg.mxu0
      %1652 = vmatpush.msra.mxu0 %v1610
      %1653 = vmatpush.msra.mxu0 %v1606
      %1654 = vmatpush.msra.mxu0 %v1602
      %1655 = vmatpush.msra.mxu0 %v1598
      %1656 = vmatpush.msra.mxu0 %v1594
      %1657 = vmatpush.msra.mxu0 %v1590
      %1658 = vmatpush.msra.mxu0 %v1586
      %1659 = vmatpush.msra.mxu0 %v1582
      %1660 = vmatpush.msra.mxu0 %v1578
      %1661 = vmatpush.msra.mxu0 %v1574
      %1662 = vmatpush.msra.mxu0 %v1570
      %1663 = vmatpush.msra.mxu0 %v1566
      %1664 = vmatpush.msra.mxu0 %v1562
      %1665 = vmatpush.msra.mxu0 %v1558
      %1666 = vmatpush.msra.mxu0 %v1554
      %1667 = vmatpush.msra.mxu0 %v1550
      %1668 = vmatmul.f32.gmra.mxu0 %v1536
      %v1669 = vpop.f32.mrf.mxu0
      %v1670 = vadd.f32 0.0, %v1669
      %1671 = vdwg.mxu0
      %1672 = vmatpush.msra.mxu0 %v1611
      %1673 = vmatpush.msra.mxu0 %v1607
      %1674 = vmatpush.msra.mxu0 %v1603
      %1675 = vmatpush.msra.mxu0 %v1599
      %1676 = vmatpush.msra.mxu0 %v1595
      %1677 = vmatpush.msra.mxu0 %v1591
      %1678 = vmatpush.msra.mxu0 %v1587
      %1679 = vmatpush.msra.mxu0 %v1583
      %1680 = vmatpush.msra.mxu0 %v1579
      %1681 = vmatpush.msra.mxu0 %v1575
      %1682 = vmatpush.msra.mxu0 %v1571
      %1683 = vmatpush.msra.mxu0 %v1567
      %1684 = vmatpush.msra.mxu0 %v1563
      %1685 = vmatpush.msra.mxu0 %v1559
      %1686 = vmatpush.msra.mxu0 %v1555
      %1687 = vmatpush.msra.mxu0 %v1551
      %1688 = vmatmul.f32.gmra.mxu0 %v1536
      %v1689 = vpop.f32.mrf.mxu0
      %v1690 = vadd.f32 0.0, %v1689
      %1691 = vdwg.mxu0
      %v1692 = vadd.f32 %v1544, %v1630
      %v1693 = vadd.f32 %v1545, %v1650
      %v1694 = vadd.f32 %v1546, %v1670
      %v1695 = vadd.f32 %v1547, %v1690
      %v1696 = vxor.u32 %v1692, 2147483648
      %v1697 = vmul.f32 %v1696, 1.442695
      %v1698 = vpow.pop %v1697
      %v1699 = vadd.f32 %v1698, 1.0
      %v1700 = vrcp.pop %v1699
      %v1701 = vmul.f32 %v1699, %v1700
      %v1702 = vsub.f32 1.0, %v1701
      %v1703 = vmul.f32 %v1700, %v1702
      %v1704 = vadd.f32 %v1700, %v1703
      %vm1705 = vweird.f32 %v1699
      %vm1706 = vweird.f32 %v1700
      %vm1707 = vmor %vm1705, %vm1706
      %v1708 = vsel %vm1707, %v1700, %v1704
      %v1709 = vand.u32 2147483647, %v1699
      %vm1710 = vcmp.eq.f32.partialorder %v1709, 8.507059e+37
      %v1711 = vand.u32 %v1699, 2147483648
      %v1712 = vor.u32 1.1754944e-38, %v1711
      %v1713 = vsel %vm1710, %v1712, %v1708
      %v1714 = vmul.f32 1.0, %v1713
      %v1715 = vxor.u32 %v1693, 2147483648
      %v1716 = vmul.f32 %v1715, 1.442695
      %v1717 = vpow.pop %v1716
      %v1718 = vadd.f32 %v1717, 1.0
      %v1719 = vrcp.pop %v1718
      %v1720 = vmul.f32 %v1718, %v1719
      %v1721 = vsub.f32 1.0, %v1720
      %v1722 = vmul.f32 %v1719, %v1721
      %v1723 = vadd.f32 %v1719, %v1722
      %vm1724 = vweird.f32 %v1718
      %vm1725 = vweird.f32 %v1719
      %vm1726 = vmor %vm1724, %vm1725
      %v1727 = vsel %vm1726, %v1719, %v1723
      %v1728 = vand.u32 2147483647, %v1718
      %vm1729 = vcmp.eq.f32.partialorder %v1728, 8.507059e+37
      %v1730 = vand.u32 %v1718, 2147483648
      %v1731 = vor.u32 1.1754944e-38, %v1730
      %v1732 = vsel %vm1729, %v1731, %v1727
      %v1733 = vmul.f32 1.0, %v1732
      %v1734 = vtanh.pop %v1694
      %v1735 = vxor.u32 %v1695, 2147483648
      %v1736 = vmul.f32 %v1735, 1.442695
      %v1737 = vpow.pop %v1736
      %v1738 = vadd.f32 %v1737, 1.0
      %v1739 = vrcp.pop %v1738
      %v1740 = vmul.f32 %v1738, %v1739
      %v1741 = vsub.f32 1.0, %v1740
      %v1742 = vmul.f32 %v1739, %v1741
      %v1743 = vadd.f32 %v1739, %v1742
      %vm1744 = vweird.f32 %v1738
      %vm1745 = vweird.f32 %v1739
      %vm1746 = vmor %vm1744, %vm1745
      %v1747 = vsel %vm1746, %v1739, %v1743
      %v1748 = vand.u32 2147483647, %v1738
      %vm1749 = vcmp.eq.f32.partialorder %v1748, 8.507059e+37
      %v1750 = vand.u32 %v1738, 2147483648
      %v1751 = vor.u32 1.1754944e-38, %v1750
      %v1752 = vsel %vm1749, %v1751, %v1747
      %v1753 = vmul.f32 1.0, %v1752
      %v1754 = vmul.f32 %v1733, %v1537
      %v1755 = vmul.f32 %v1714, %v1734
      %v1756 = vadd.f32 %v1754, %v1755
      %v1757 = vtanh.pop %v1756
      %v1758 = vmul.f32 %v1753, %v1757
      %s1759 = scalar_lea.vmem [#allocation3], %s1538
      %1760 = vst [vmem:[%s1759] sm:$0xff] %v1758
    $region140: #{tpu_custom_call.1} parent=1 // loop_footer
      %s1535 = sadd.s32 1, %s1531
    $region141: #{tpu_custom_call.1} parent=1 // loop_footer_branch
      %1530 = sbr.rel target = $region137
    $region142: #{tpu_custom_call.1} parent=1 // loop_exit
      _
    %v1761 = vld [vmem:[#allocation3] sm:$0xff]
    %v1762 = vld [vmem:[#allocation3 + $0x8] sm:$0xff]
    %v1763 = vld [vmem:[#allocation3 + $0x10] sm:$0xff]
    %v1764 = vld [vmem:[#allocation3 + $0x18] sm:$0xff]
    %v1765 = vld [vmem:[#allocation3 + $0x20] sm:$0xff]
    %v1766 = vld [vmem:[#allocation3 + $0x28] sm:$0xff]
    %v1767 = vld [vmem:[#allocation3 + $0x30] sm:$0xff]
    %v1768 = vld [vmem:[#allocation3 + $0x38] sm:$0xff]
    %v1769 = vld [vmem:[#allocation18] sm:$0xff]
    %v1770 = vld [vmem:[#allocation18 + $0x8] sm:$0xff]
    %v1771 = vld [vmem:[#allocation18 + $0x10] sm:$0xff]
    %v1772 = vld [vmem:[#allocation18 + $0x18] sm:$0xff]
    %v1773 = vld [vmem:[#allocation18 + $0x20] sm:$0xff]
    %v1774 = vld [vmem:[#allocation18 + $0x28] sm:$0xff]
    %v1775 = vld [vmem:[#allocation18 + $0x30] sm:$0xff]
    %v1776 = vld [vmem:[#allocation18 + $0x38] sm:$0xff]
    %v1777 = vld [vmem:[#allocation18 + $0x40] sm:$0xff]
    %v1778 = vld [vmem:[#allocation18 + $0x48] sm:$0xff]
    %v1779 = vld [vmem:[#allocation18 + $0x50] sm:$0xff]
    %v1780 = vld [vmem:[#allocation18 + $0x58] sm:$0xff]
    %v1781 = vld [vmem:[#allocation18 + $0x60] sm:$0xff]
    %v1782 = vld [vmem:[#allocation18 + $0x68] sm:$0xff]
    %v1783 = vld [vmem:[#allocation18 + $0x70] sm:$0xff]
    %v1784 = vld [vmem:[#allocation18 + $0x78] sm:$0xff]
    %v1785 = vld [vmem:[#allocation18 + $0x80] sm:$0xff]
    %v1786 = vld [vmem:[#allocation18 + $0x88] sm:$0xff]
    %v1787 = vld [vmem:[#allocation18 + $0x90] sm:$0xff]
    %v1788 = vld [vmem:[#allocation18 + $0x98] sm:$0xff]
    %v1789 = vld [vmem:[#allocation18 + $0xa0] sm:$0xff]
    %v1790 = vld [vmem:[#allocation18 + $0xa8] sm:$0xff]
    %v1791 = vld [vmem:[#allocation18 + $0xb0] sm:$0xff]
    %v1792 = vld [vmem:[#allocation18 + $0xb8] sm:$0xff]
    %v1793 = vld [vmem:[#allocation18 + $0xc0] sm:$0xff]
    %v1794 = vld [vmem:[#allocation18 + $0xc8] sm:$0xff]
    %v1795 = vld [vmem:[#allocation18 + $0xd0] sm:$0xff]
    %v1796 = vld [vmem:[#allocation18 + $0xd8] sm:$0xff]
    %v1797 = vld [vmem:[#allocation18 + $0xe0] sm:$0xff]
    %v1798 = vld [vmem:[#allocation18 + $0xe8] sm:$0xff]
    %v1799 = vld [vmem:[#allocation18 + $0xf0] sm:$0xff]
    %v1800 = vld [vmem:[#allocation18 + $0xf8] sm:$0xff]
    %v1801 = vld [vmem:[#allocation18 + $0x100] sm:$0xff]
    %v1802 = vld [vmem:[#allocation18 + $0x108] sm:$0xff]
    %v1803 = vld [vmem:[#allocation18 + $0x110] sm:$0xff]
    %v1804 = vld [vmem:[#allocation18 + $0x118] sm:$0xff]
    %v1805 = vld [vmem:[#allocation18 + $0x120] sm:$0xff]
    %v1806 = vld [vmem:[#allocation18 + $0x128] sm:$0xff]
    %v1807 = vld [vmem:[#allocation18 + $0x130] sm:$0xff]
    %v1808 = vld [vmem:[#allocation18 + $0x138] sm:$0xff]
    %v1809 = vld [vmem:[#allocation18 + $0x140] sm:$0xff]
    %v1810 = vld [vmem:[#allocation18 + $0x148] sm:$0xff]
    %v1811 = vld [vmem:[#allocation18 + $0x150] sm:$0xff]
    %v1812 = vld [vmem:[#allocation18 + $0x158] sm:$0xff]
    %v1813 = vld [vmem:[#allocation18 + $0x160] sm:$0xff]
    %v1814 = vld [vmem:[#allocation18 + $0x168] sm:$0xff]
    %v1815 = vld [vmem:[#allocation18 + $0x170] sm:$0xff]
    %v1816 = vld [vmem:[#allocation18 + $0x178] sm:$0xff]
    %v1817 = vld [vmem:[#allocation18 + $0x180] sm:$0xff]
    %v1818 = vld [vmem:[#allocation18 + $0x188] sm:$0xff]
    %v1819 = vld [vmem:[#allocation18 + $0x190] sm:$0xff]
    %v1820 = vld [vmem:[#allocation18 + $0x198] sm:$0xff]
    %v1821 = vld [vmem:[#allocation18 + $0x1a0] sm:$0xff]
    %v1822 = vld [vmem:[#allocation18 + $0x1a8] sm:$0xff]
    %v1823 = vld [vmem:[#allocation18 + $0x1b0] sm:$0xff]
    %v1824 = vld [vmem:[#allocation18 + $0x1b8] sm:$0xff]
    %v1825 = vld [vmem:[#allocation18 + $0x1c0] sm:$0xff]
    %v1826 = vld [vmem:[#allocation18 + $0x1c8] sm:$0xff]
    %v1827 = vld [vmem:[#allocation18 + $0x1d0] sm:$0xff]
    %v1828 = vld [vmem:[#allocation18 + $0x1d8] sm:$0xff]
    %v1829 = vld [vmem:[#allocation18 + $0x1e0] sm:$0xff]
    %v1830 = vld [vmem:[#allocation18 + $0x1e8] sm:$0xff]
    %v1831 = vld [vmem:[#allocation18 + $0x1f0] sm:$0xff]
    %v1832 = vld [vmem:[#allocation18 + $0x1f8] sm:$0xff]
    %v1833 = vld [vmem:[%s12] sm:$0xf]
    %v1835 = vperm.slane %v1833, 0
    %v1836 = vperm.slane %v1833, 1
    %v1837 = vperm.slane %v1833, 2
    %v1838 = vperm.slane %v1833, 3
    %1843 = vmatpush.msra.mxu0 %v1829
    %1844 = vmatpush.msra.mxu0 %v1825
    %1845 = vmatpush.msra.mxu0 %v1821
    %1846 = vmatpush.msra.mxu0 %v1817
    %1847 = vmatpush.msra.mxu0 %v1813
    %1848 = vmatpush.msra.mxu0 %v1809
    %1849 = vmatpush.msra.mxu0 %v1805
    %1850 = vmatpush.msra.mxu0 %v1801
    %1851 = vmatpush.msra.mxu0 %v1797
    %1852 = vmatpush.msra.mxu0 %v1793
    %1853 = vmatpush.msra.mxu0 %v1789
    %1854 = vmatpush.msra.mxu0 %v1785
    %1855 = vmatpush.msra.mxu0 %v1781
    %1856 = vmatpush.msra.mxu0 %v1777
    %1857 = vmatpush.msra.mxu0 %v1773
    %1858 = vmatpush.msra.mxu0 %v1769
    %1859 = vmatmul.f32.gmra.mxu0 %v1761
    %v1860 = vpop.f32.mrf.mxu0
    %v1861 = vadd.f32 %v1835, %v1860
    %1862 = vmatmul.f32.gmra.mxu0 %v1762
    %v1863 = vpop.f32.mrf.mxu0
    %v1864 = vadd.f32 %v1835, %v1863
    %1865 = vmatmul.f32.gmra.mxu0 %v1763
    %v1866 = vpop.f32.mrf.mxu0
    %v1867 = vadd.f32 %v1835, %v1866
    %1868 = vmatmul.f32.gmra.mxu0 %v1764
    %v1869 = vpop.f32.mrf.mxu0
    %v1870 = vadd.f32 %v1835, %v1869
    %1871 = vmatmul.f32.gmra.mxu0 %v1765
    %v1872 = vpop.f32.mrf.mxu0
    %v1873 = vadd.f32 %v1835, %v1872
    %1874 = vmatmul.f32.gmra.mxu0 %v1766
    %v1875 = vpop.f32.mrf.mxu0
    %v1876 = vadd.f32 %v1835, %v1875
    %1877 = vmatmul.f32.gmra.mxu0 %v1767
    %v1878 = vpop.f32.mrf.mxu0
    %v1879 = vadd.f32 %v1835, %v1878
    %1880 = vmatmul.f32.gmra.mxu0 %v1768
    %v1881 = vpop.f32.mrf.mxu0
    %v1882 = vadd.f32 %v1835, %v1881
    %1883 = vdwg.mxu0
    %1884 = vmatpush.msra.mxu0 %v1830
    %1885 = vmatpush.msra.mxu0 %v1826
    %1886 = vmatpush.msra.mxu0 %v1822
    %1887 = vmatpush.msra.mxu0 %v1818
    %1888 = vmatpush.msra.mxu0 %v1814
    %1889 = vmatpush.msra.mxu0 %v1810
    %1890 = vmatpush.msra.mxu0 %v1806
    %1891 = vmatpush.msra.mxu0 %v1802
    %1892 = vmatpush.msra.mxu0 %v1798
    %1893 = vmatpush.msra.mxu0 %v1794
    %1894 = vmatpush.msra.mxu0 %v1790
    %1895 = vmatpush.msra.mxu0 %v1786
    %1896 = vmatpush.msra.mxu0 %v1782
    %1897 = vmatpush.msra.mxu0 %v1778
    %1898 = vmatpush.msra.mxu0 %v1774
    %1899 = vmatpush.msra.mxu0 %v1770
    %1900 = vmatmul.f32.gmra.mxu0 %v1761
    %v1901 = vpop.f32.mrf.mxu0
    %v1902 = vadd.f32 %v1836, %v1901
    %1903 = vmatmul.f32.gmra.mxu0 %v1762
    %v1904 = vpop.f32.mrf.mxu0
    %v1905 = vadd.f32 %v1836, %v1904
    %1906 = vmatmul.f32.gmra.mxu0 %v1763
    %v1907 = vpop.f32.mrf.mxu0
    %v1908 = vadd.f32 %v1836, %v1907
    %1909 = vmatmul.f32.gmra.mxu0 %v1764
    %v1910 = vpop.f32.mrf.mxu0
    %v1911 = vadd.f32 %v1836, %v1910
    %1912 = vmatmul.f32.gmra.mxu0 %v1765
    %v1913 = vpop.f32.mrf.mxu0
    %v1914 = vadd.f32 %v1836, %v1913
    %1915 = vmatmul.f32.gmra.mxu0 %v1766
    %v1916 = vpop.f32.mrf.mxu0
    %v1917 = vadd.f32 %v1836, %v1916
    %1918 = vmatmul.f32.gmra.mxu0 %v1767
    %v1919 = vpop.f32.mrf.mxu0
    %v1920 = vadd.f32 %v1836, %v1919
    %1921 = vmatmul.f32.gmra.mxu0 %v1768
    %v1922 = vpop.f32.mrf.mxu0
    %v1923 = vadd.f32 %v1836, %v1922
    %1924 = vdwg.mxu0
    %1925 = vmatpush.msra.mxu0 %v1831
    %1926 = vmatpush.msra.mxu0 %v1827
    %1927 = vmatpush.msra.mxu0 %v1823
    %1928 = vmatpush.msra.mxu0 %v1819
    %1929 = vmatpush.msra.mxu0 %v1815
    %1930 = vmatpush.msra.mxu0 %v1811
    %1931 = vmatpush.msra.mxu0 %v1807
    %1932 = vmatpush.msra.mxu0 %v1803
    %1933 = vmatpush.msra.mxu0 %v1799
    %1934 = vmatpush.msra.mxu0 %v1795
    %1935 = vmatpush.msra.mxu0 %v1791
    %1936 = vmatpush.msra.mxu0 %v1787
    %1937 = vmatpush.msra.mxu0 %v1783
    %1938 = vmatpush.msra.mxu0 %v1779
    %1939 = vmatpush.msra.mxu0 %v1775
    %1940 = vmatpush.msra.mxu0 %v1771
    %1941 = vmatmul.f32.gmra.mxu0 %v1761
    %v1942 = vpop.f32.mrf.mxu0
    %v1943 = vadd.f32 %v1837, %v1942
    %1944 = vmatmul.f32.gmra.mxu0 %v1762
    %v1945 = vpop.f32.mrf.mxu0
    %v1946 = vadd.f32 %v1837, %v1945
    %1947 = vmatmul.f32.gmra.mxu0 %v1763
    %v1948 = vpop.f32.mrf.mxu0
    %v1949 = vadd.f32 %v1837, %v1948
    %1950 = vmatmul.f32.gmra.mxu0 %v1764
    %v1951 = vpop.f32.mrf.mxu0
    %v1952 = vadd.f32 %v1837, %v1951
    %1953 = vmatmul.f32.gmra.mxu0 %v1765
    %v1954 = vpop.f32.mrf.mxu0
    %v1955 = vadd.f32 %v1837, %v1954
    %1956 = vmatmul.f32.gmra.mxu0 %v1766
    %v1957 = vpop.f32.mrf.mxu0
    %v1958 = vadd.f32 %v1837, %v1957
    %1959 = vmatmul.f32.gmra.mxu0 %v1767
    %v1960 = vpop.f32.mrf.mxu0
    %v1961 = vadd.f32 %v1837, %v1960
    %1962 = vmatmul.f32.gmra.mxu0 %v1768
    %v1963 = vpop.f32.mrf.mxu0
    %v1964 = vadd.f32 %v1837, %v1963
    %1965 = vdwg.mxu0
    %1966 = vmatpush.msra.mxu0 %v1832
    %1967 = vmatpush.msra.mxu0 %v1828
    %1968 = vmatpush.msra.mxu0 %v1824
    %1969 = vmatpush.msra.mxu0 %v1820
    %1970 = vmatpush.msra.mxu0 %v1816
    %1971 = vmatpush.msra.mxu0 %v1812
    %1972 = vmatpush.msra.mxu0 %v1808
    %1973 = vmatpush.msra.mxu0 %v1804
    %1974 = vmatpush.msra.mxu0 %v1800
    %1975 = vmatpush.msra.mxu0 %v1796
    %1976 = vmatpush.msra.mxu0 %v1792
    %1977 = vmatpush.msra.mxu0 %v1788
    %1978 = vmatpush.msra.mxu0 %v1784
    %1979 = vmatpush.msra.mxu0 %v1780
    %1980 = vmatpush.msra.mxu0 %v1776
    %1981 = vmatpush.msra.mxu0 %v1772
    %1982 = vmatmul.f32.gmra.mxu0 %v1761
    %v1983 = vpop.f32.mrf.mxu0
    %v1984 = vadd.f32 %v1838, %v1983
    %1985 = vmatmul.f32.gmra.mxu0 %v1762
    %v1986 = vpop.f32.mrf.mxu0
    %v1987 = vadd.f32 %v1838, %v1986
    %1988 = vmatmul.f32.gmra.mxu0 %v1763
    %v1989 = vpop.f32.mrf.mxu0
    %v1990 = vadd.f32 %v1838, %v1989
    %1991 = vmatmul.f32.gmra.mxu0 %v1764
    %v1992 = vpop.f32.mrf.mxu0
    %v1993 = vadd.f32 %v1838, %v1992
    %1994 = vmatmul.f32.gmra.mxu0 %v1765
    %v1995 = vpop.f32.mrf.mxu0
    %v1996 = vadd.f32 %v1838, %v1995
    %1997 = vmatmul.f32.gmra.mxu0 %v1766
    %v1998 = vpop.f32.mrf.mxu0
    %v1999 = vadd.f32 %v1838, %v1998
    %2000 = vmatmul.f32.gmra.mxu0 %v1767
    %v2001 = vpop.f32.mrf.mxu0
    %v2002 = vadd.f32 %v1838, %v2001
    %2003 = vmatmul.f32.gmra.mxu0 %v1768
    %v2004 = vpop.f32.mrf.mxu0
    %v2005 = vadd.f32 %v1838, %v2004
    %2006 = vdwg.mxu0
    %2007 = vst [vmem:[#allocation2] sm:$0xff] %v1861
    %2008 = vst [vmem:[#allocation2 + $0x8] sm:$0xff] %v1902
    %2009 = vst [vmem:[#allocation2 + $0x10] sm:$0xff] %v1943
    %2010 = vst [vmem:[#allocation2 + $0x18] sm:$0xff] %v1984
    %2011 = vst [vmem:[#allocation2 + $0x20] sm:$0xff] %v1864
    %2012 = vst [vmem:[#allocation2 + $0x28] sm:$0xff] %v1905
    %2013 = vst [vmem:[#allocation2 + $0x30] sm:$0xff] %v1946
    %2014 = vst [vmem:[#allocation2 + $0x38] sm:$0xff] %v1987
    %2015 = vst [vmem:[#allocation2 + $0x40] sm:$0xff] %v1867
    %2016 = vst [vmem:[#allocation2 + $0x48] sm:$0xff] %v1908
    %2017 = vst [vmem:[#allocation2 + $0x50] sm:$0xff] %v1949
    %2018 = vst [vmem:[#allocation2 + $0x58] sm:$0xff] %v1990
    %2019 = vst [vmem:[#allocation2 + $0x60] sm:$0xff] %v1870
    %2020 = vst [vmem:[#allocation2 + $0x68] sm:$0xff] %v1911
    %2021 = vst [vmem:[#allocation2 + $0x70] sm:$0xff] %v1952
    %2022 = vst [vmem:[#allocation2 + $0x78] sm:$0xff] %v1993
    %2023 = vst [vmem:[#allocation2 + $0x80] sm:$0xff] %v1873
    %2024 = vst [vmem:[#allocation2 + $0x88] sm:$0xff] %v1914
    %2025 = vst [vmem:[#allocation2 + $0x90] sm:$0xff] %v1955
    %2026 = vst [vmem:[#allocation2 + $0x98] sm:$0xff] %v1996
    %2027 = vst [vmem:[#allocation2 + $0xa0] sm:$0xff] %v1876
    %2028 = vst [vmem:[#allocation2 + $0xa8] sm:$0xff] %v1917
    %2029 = vst [vmem:[#allocation2 + $0xb0] sm:$0xff] %v1958
    %2030 = vst [vmem:[#allocation2 + $0xb8] sm:$0xff] %v1999
    %2031 = vst [vmem:[#allocation2 + $0xc0] sm:$0xff] %v1879
    %2032 = vst [vmem:[#allocation2 + $0xc8] sm:$0xff] %v1920
    %2033 = vst [vmem:[#allocation2 + $0xd0] sm:$0xff] %v1961
    %2034 = vst [vmem:[#allocation2 + $0xd8] sm:$0xff] %v2002
    %2035 = vst [vmem:[#allocation2 + $0xe0] sm:$0xff] %v1882
    %2036 = vst [vmem:[#allocation2 + $0xe8] sm:$0xff] %v1923
    %2037 = vst [vmem:[#allocation2 + $0xf0] sm:$0xff] %v1964
    %2038 = vst [vmem:[#allocation2 + $0xf8] sm:$0xff] %v2005
    loop: start=0, step=1, limit=8
    $region143: #{tpu_custom_call.1} parent=1 // loop_pre_header
      _
    $region144: #{tpu_custom_call.1} parent=1 // loop_header
      %s2040 = sphi 0, %s2044
      %p2041 = scmp.ge.s32.totalorder %s2040, 8
      %v2045 = vphi 0.0, %v2267
      %v2046 = vphi 0.0, %v2265
    $region145: #{tpu_custom_call.1} parent=1 // loop_header_branch
      %2043 = sbr.rel (%p2041) target = $region149
    $region146: #{tpu_custom_call.1} parent=1 // loop_body
      %s2047 = smul.u32 %s2040, 8
      %s2048 = sshra.s32 %s2047, 3
      %s2049 = sand.u32 %s2047, 7
      %s2050 = smul.u32 %s2048, 4
      %s2051 = smul.addr %s2050, 8
      %s2052 = scalar_lea.vmem [#allocation2], %s2051
      %v2053 = vld [vmem:[%s2052] sm:$0xff]
      %v2054 = vld [vmem:[%s2052 + $0x8] sm:$0xff]
      %v2055 = vld [vmem:[%s2052 + $0x10] sm:$0xff]
      %v2056 = vld [vmem:[%s2052 + $0x18] sm:$0xff]
      %v2057 = vld [vmem:[#allocation20] sm:$0xff]
      %v2058 = vld [vmem:[#allocation20 + $0x8] sm:$0xff]
      %v2059 = vld [vmem:[#allocation20 + $0x10] sm:$0xff]
      %v2060 = vld [vmem:[#allocation20 + $0x18] sm:$0xff]
      %v2061 = vld [vmem:[#allocation20 + $0x20] sm:$0xff]
      %v2062 = vld [vmem:[#allocation20 + $0x28] sm:$0xff]
      %v2063 = vld [vmem:[#allocation20 + $0x30] sm:$0xff]
      %v2064 = vld [vmem:[#allocation20 + $0x38] sm:$0xff]
      %v2065 = vld [vmem:[#allocation20 + $0x40] sm:$0xff]
      %v2066 = vld [vmem:[#allocation20 + $0x48] sm:$0xff]
      %v2067 = vld [vmem:[#allocation20 + $0x50] sm:$0xff]
      %v2068 = vld [vmem:[#allocation20 + $0x58] sm:$0xff]
      %v2069 = vld [vmem:[#allocation20 + $0x60] sm:$0xff]
      %v2070 = vld [vmem:[#allocation20 + $0x68] sm:$0xff]
      %v2071 = vld [vmem:[#allocation20 + $0x70] sm:$0xff]
      %v2072 = vld [vmem:[#allocation20 + $0x78] sm:$0xff]
      %v2073 = vld [vmem:[#allocation20 + $0x80] sm:$0xff]
      %v2074 = vld [vmem:[#allocation20 + $0x88] sm:$0xff]
      %v2075 = vld [vmem:[#allocation20 + $0x90] sm:$0xff]
      %v2076 = vld [vmem:[#allocation20 + $0x98] sm:$0xff]
      %v2077 = vld [vmem:[#allocation20 + $0xa0] sm:$0xff]
      %v2078 = vld [vmem:[#allocation20 + $0xa8] sm:$0xff]
      %v2079 = vld [vmem:[#allocation20 + $0xb0] sm:$0xff]
      %v2080 = vld [vmem:[#allocation20 + $0xb8] sm:$0xff]
      %v2081 = vld [vmem:[#allocation20 + $0xc0] sm:$0xff]
      %v2082 = vld [vmem:[#allocation20 + $0xc8] sm:$0xff]
      %v2083 = vld [vmem:[#allocation20 + $0xd0] sm:$0xff]
      %v2084 = vld [vmem:[#allocation20 + $0xd8] sm:$0xff]
      %v2085 = vld [vmem:[#allocation20 + $0xe0] sm:$0xff]
      %v2086 = vld [vmem:[#allocation20 + $0xe8] sm:$0xff]
      %v2087 = vld [vmem:[#allocation20 + $0xf0] sm:$0xff]
      %v2088 = vld [vmem:[#allocation20 + $0xf8] sm:$0xff]
      %v2089 = vld [vmem:[#allocation20 + $0x100] sm:$0xff]
      %v2090 = vld [vmem:[#allocation20 + $0x108] sm:$0xff]
      %v2091 = vld [vmem:[#allocation20 + $0x110] sm:$0xff]
      %v2092 = vld [vmem:[#allocation20 + $0x118] sm:$0xff]
      %v2093 = vld [vmem:[#allocation20 + $0x120] sm:$0xff]
      %v2094 = vld [vmem:[#allocation20 + $0x128] sm:$0xff]
      %v2095 = vld [vmem:[#allocation20 + $0x130] sm:$0xff]
      %v2096 = vld [vmem:[#allocation20 + $0x138] sm:$0xff]
      %v2097 = vld [vmem:[#allocation20 + $0x140] sm:$0xff]
      %v2098 = vld [vmem:[#allocation20 + $0x148] sm:$0xff]
      %v2099 = vld [vmem:[#allocation20 + $0x150] sm:$0xff]
      %v2100 = vld [vmem:[#allocation20 + $0x158] sm:$0xff]
      %v2101 = vld [vmem:[#allocation20 + $0x160] sm:$0xff]
      %v2102 = vld [vmem:[#allocation20 + $0x168] sm:$0xff]
      %v2103 = vld [vmem:[#allocation20 + $0x170] sm:$0xff]
      %v2104 = vld [vmem:[#allocation20 + $0x178] sm:$0xff]
      %v2105 = vld [vmem:[#allocation20 + $0x180] sm:$0xff]
      %v2106 = vld [vmem:[#allocation20 + $0x188] sm:$0xff]
      %v2107 = vld [vmem:[#allocation20 + $0x190] sm:$0xff]
      %v2108 = vld [vmem:[#allocation20 + $0x198] sm:$0xff]
      %v2109 = vld [vmem:[#allocation20 + $0x1a0] sm:$0xff]
      %v2110 = vld [vmem:[#allocation20 + $0x1a8] sm:$0xff]
      %v2111 = vld [vmem:[#allocation20 + $0x1b0] sm:$0xff]
      %v2112 = vld [vmem:[#allocation20 + $0x1b8] sm:$0xff]
      %v2113 = vld [vmem:[#allocation20 + $0x1c0] sm:$0xff]
      %v2114 = vld [vmem:[#allocation20 + $0x1c8] sm:$0xff]
      %v2115 = vld [vmem:[#allocation20 + $0x1d0] sm:$0xff]
      %v2116 = vld [vmem:[#allocation20 + $0x1d8] sm:$0xff]
      %v2117 = vld [vmem:[#allocation20 + $0x1e0] sm:$0xff]
      %v2118 = vld [vmem:[#allocation20 + $0x1e8] sm:$0xff]
      %v2119 = vld [vmem:[#allocation20 + $0x1f0] sm:$0xff]
      %v2120 = vld [vmem:[#allocation20 + $0x1f8] sm:$0xff]
      %2121 = vmatpush.msra.mxu0 %v2117
      %2122 = vmatpush.msra.mxu0 %v2113
      %2123 = vmatpush.msra.mxu0 %v2109
      %2124 = vmatpush.msra.mxu0 %v2105
      %2125 = vmatpush.msra.mxu0 %v2101
      %2126 = vmatpush.msra.mxu0 %v2097
      %2127 = vmatpush.msra.mxu0 %v2093
      %2128 = vmatpush.msra.mxu0 %v2089
      %2129 = vmatpush.msra.mxu0 %v2085
      %2130 = vmatpush.msra.mxu0 %v2081
      %2131 = vmatpush.msra.mxu0 %v2077
      %2132 = vmatpush.msra.mxu0 %v2073
      %2133 = vmatpush.msra.mxu0 %v2069
      %2134 = vmatpush.msra.mxu0 %v2065
      %2135 = vmatpush.msra.mxu0 %v2061
      %2136 = vmatpush.msra.mxu0 %v2057
      %2137 = vmatmul.f32.gmra.mxu0 %v2045
      %v2138 = vpop.f32.mrf.mxu0
      %v2139 = vadd.f32 0.0, %v2138
      %2140 = vdwg.mxu0
      %2141 = vmatpush.msra.mxu0 %v2118
      %2142 = vmatpush.msra.mxu0 %v2114
      %2143 = vmatpush.msra.mxu0 %v2110
      %2144 = vmatpush.msra.mxu0 %v2106
      %2145 = vmatpush.msra.mxu0 %v2102
      %2146 = vmatpush.msra.mxu0 %v2098
      %2147 = vmatpush.msra.mxu0 %v2094
      %2148 = vmatpush.msra.mxu0 %v2090
      %2149 = vmatpush.msra.mxu0 %v2086
      %2150 = vmatpush.msra.mxu0 %v2082
      %2151 = vmatpush.msra.mxu0 %v2078
      %2152 = vmatpush.msra.mxu0 %v2074
      %2153 = vmatpush.msra.mxu0 %v2070
      %2154 = vmatpush.msra.mxu0 %v2066
      %2155 = vmatpush.msra.mxu0 %v2062
      %2156 = vmatpush.msra.mxu0 %v2058
      %2157 = vmatmul.f32.gmra.mxu0 %v2045
      %v2158 = vpop.f32.mrf.mxu0
      %v2159 = vadd.f32 0.0, %v2158
      %2160 = vdwg.mxu0
      %2161 = vmatpush.msra.mxu0 %v2119
      %2162 = vmatpush.msra.mxu0 %v2115
      %2163 = vmatpush.msra.mxu0 %v2111
      %2164 = vmatpush.msra.mxu0 %v2107
      %2165 = vmatpush.msra.mxu0 %v2103
      %2166 = vmatpush.msra.mxu0 %v2099
      %2167 = vmatpush.msra.mxu0 %v2095
      %2168 = vmatpush.msra.mxu0 %v2091
      %2169 = vmatpush.msra.mxu0 %v2087
      %2170 = vmatpush.msra.mxu0 %v2083
      %2171 = vmatpush.msra.mxu0 %v2079
      %2172 = vmatpush.msra.mxu0 %v2075
      %2173 = vmatpush.msra.mxu0 %v2071
      %2174 = vmatpush.msra.mxu0 %v2067
      %2175 = vmatpush.msra.mxu0 %v2063
      %2176 = vmatpush.msra.mxu0 %v2059
      %2177 = vmatmul.f32.gmra.mxu0 %v2045
      %v2178 = vpop.f32.mrf.mxu0
      %v2179 = vadd.f32 0.0, %v2178
      %2180 = vdwg.mxu0
      %2181 = vmatpush.msra.mxu0 %v2120
      %2182 = vmatpush.msra.mxu0 %v2116
      %2183 = vmatpush.msra.mxu0 %v2112
      %2184 = vmatpush.msra.mxu0 %v2108
      %2185 = vmatpush.msra.mxu0 %v2104
      %2186 = vmatpush.msra.mxu0 %v2100
      %2187 = vmatpush.msra.mxu0 %v2096
      %2188 = vmatpush.msra.mxu0 %v2092
      %2189 = vmatpush.msra.mxu0 %v2088
      %2190 = vmatpush.msra.mxu0 %v2084
      %2191 = vmatpush.msra.mxu0 %v2080
      %2192 = vmatpush.msra.mxu0 %v2076
      %2193 = vmatpush.msra.mxu0 %v2072
      %2194 = vmatpush.msra.mxu0 %v2068
      %2195 = vmatpush.msra.mxu0 %v2064
      %2196 = vmatpush.msra.mxu0 %v2060
      %2197 = vmatmul.f32.gmra.mxu0 %v2045
      %v2198 = vpop.f32.mrf.mxu0
      %v2199 = vadd.f32 0.0, %v2198
      %2200 = vdwg.mxu0
      %v2201 = vadd.f32 %v2053, %v2139
      %v2202 = vadd.f32 %v2054, %v2159
      %v2203 = vadd.f32 %v2055, %v2179
      %v2204 = vadd.f32 %v2056, %v2199
      %v2205 = vxor.u32 %v2201, 2147483648
      %v2206 = vmul.f32 %v2205, 1.442695
      %v2207 = vpow.pop %v2206
      %v2208 = vadd.f32 %v2207, 1.0
      %v2209 = vrcp.pop %v2208
      %v2210 = vmul.f32 %v2208, %v2209
      %v2211 = vsub.f32 1.0, %v2210
      %v2212 = vmul.f32 %v2209, %v2211
      %v2213 = vadd.f32 %v2209, %v2212
      %vm2214 = vweird.f32 %v2208
      %vm2215 = vweird.f32 %v2209
      %vm2216 = vmor %vm2214, %vm2215
      %v2217 = vsel %vm2216, %v2209, %v2213
      %v2218 = vand.u32 2147483647, %v2208
      %vm2219 = vcmp.eq.f32.partialorder %v2218, 8.507059e+37
      %v2220 = vand.u32 %v2208, 2147483648
      %v2221 = vor.u32 1.1754944e-38, %v2220
      %v2222 = vsel %vm2219, %v2221, %v2217
      %v2223 = vmul.f32 1.0, %v2222
      %v2224 = vxor.u32 %v2202, 2147483648
      %v2225 = vmul.f32 %v2224, 1.442695
      %v2226 = vpow.pop %v2225
      %v2227 = vadd.f32 %v2226, 1.0
      %v2228 = vrcp.pop %v2227
      %v2229 = vmul.f32 %v2227, %v2228
      %v2230 = vsub.f32 1.0, %v2229
      %v2231 = vmul.f32 %v2228, %v2230
      %v2232 = vadd.f32 %v2228, %v2231
      %vm2233 = vweird.f32 %v2227
      %vm2234 = vweird.f32 %v2228
      %vm2235 = vmor %vm2233, %vm2234
      %v2236 = vsel %vm2235, %v2228, %v2232
      %v2237 = vand.u32 2147483647, %v2227
      %vm2238 = vcmp.eq.f32.partialorder %v2237, 8.507059e+37
      %v2239 = vand.u32 %v2227, 2147483648
      %v2240 = vor.u32 1.1754944e-38, %v2239
      %v2241 = vsel %vm2238, %v2240, %v2236
      %v2242 = vmul.f32 1.0, %v2241
      %v2243 = vtanh.pop %v2203
      %v2244 = vxor.u32 %v2204, 2147483648
      %v2245 = vmul.f32 %v2244, 1.442695
      %v2246 = vpow.pop %v2245
      %v2247 = vadd.f32 %v2246, 1.0
      %v2248 = vrcp.pop %v2247
      %v2249 = vmul.f32 %v2247, %v2248
      %v2250 = vsub.f32 1.0, %v2249
      %v2251 = vmul.f32 %v2248, %v2250
      %v2252 = vadd.f32 %v2248, %v2251
      %vm2253 = vweird.f32 %v2247
      %vm2254 = vweird.f32 %v2248
      %vm2255 = vmor %vm2253, %vm2254
      %v2256 = vsel %vm2255, %v2248, %v2252
      %v2257 = vand.u32 2147483647, %v2247
      %vm2258 = vcmp.eq.f32.partialorder %v2257, 8.507059e+37
      %v2259 = vand.u32 %v2247, 2147483648
      %v2260 = vor.u32 1.1754944e-38, %v2259
      %v2261 = vsel %vm2258, %v2260, %v2256
      %v2262 = vmul.f32 1.0, %v2261
      %v2263 = vmul.f32 %v2242, %v2046
      %v2264 = vmul.f32 %v2223, %v2243
      %v2265 = vadd.f32 %v2263, %v2264
      %v2266 = vtanh.pop %v2265
      %v2267 = vmul.f32 %v2262, %v2266
      %s2268 = scalar_lea.vmem [#allocation3], %s2047
      %2269 = vst [vmem:[%s2268] sm:$0xff] %v2267
    $region147: #{tpu_custom_call.1} parent=1 // loop_footer
      %s2044 = sadd.s32 1, %s2040
    $region148: #{tpu_custom_call.1} parent=1 // loop_footer_branch
      %2039 = sbr.rel target = $region144
    $region149: #{tpu_custom_call.1} parent=1 // loop_exit
      _
    %2270 = vst [vmem:[#allocation4] sm:$0xff] 0.0
    %2271 = vst [vmem:[#allocation4 + $0x8] sm:$0xff] 0.0
    %2272 = vst [vmem:[#allocation4 + $0x50] sm:$0xff] 0.0
    %2273 = vst [vmem:[#allocation4 + $0x58] sm:$0xff] 0.0
    %2274 = vst [vmem:[#allocation5] sm:$0xff] 0.0
    %2275 = vst [vmem:[#allocation5 + $0x8] sm:$0xff] 0.0
    %2276 = vst [vmem:[#allocation5 + $0x50] sm:$0xff] 0.0
    %2277 = vst [vmem:[#allocation5 + $0x58] sm:$0xff] 0.0
    %v2278 = vld [vmem:[#allocation3] sm:$0xff]
    %v2279 = vld [vmem:[#allocation3 + $0x8] sm:$0xff]
    %v2280 = vld [vmem:[#allocation3 + $0x10] sm:$0xff]
    %v2281 = vld [vmem:[#allocation3 + $0x18] sm:$0xff]
    %v2282 = vld [vmem:[#allocation3 + $0x20] sm:$0xff]
    %v2283 = vld [vmem:[#allocation3 + $0x28] sm:$0xff]
    %v2284 = vld [vmem:[#allocation3 + $0x30] sm:$0xff]
    %v2285 = vld [vmem:[#allocation3 + $0x38] sm:$0xff]
    %v2286 = vld [vmem:[#allocation21] sm:$0xff]
    %v2287 = vld [vmem:[#allocation21 + $0x8] sm:$0xff]
    %v2288 = vld [vmem:[#allocation21 + $0x10] sm:$0xff]
    %v2289 = vld [vmem:[#allocation21 + $0x18] sm:$0xff]
    %v2290 = vld [vmem:[#allocation21 + $0x20] sm:$0xff]
    %v2291 = vld [vmem:[#allocation21 + $0x28] sm:$0xff]
    %v2292 = vld [vmem:[#allocation21 + $0x30] sm:$0xff]
    %v2293 = vld [vmem:[#allocation21 + $0x38] sm:$0xff]
    %v2294 = vld [vmem:[#allocation21 + $0x40] sm:$0xff]
    %v2295 = vld [vmem:[#allocation21 + $0x48] sm:$0xff]
    %v2296 = vld [vmem:[#allocation21 + $0x50] sm:$0xff]
    %v2297 = vld [vmem:[#allocation21 + $0x58] sm:$0xff]
    %v2298 = vld [vmem:[#allocation21 + $0x60] sm:$0xff]
    %v2299 = vld [vmem:[#allocation21 + $0x68] sm:$0xff]
    %v2300 = vld [vmem:[#allocation21 + $0x70] sm:$0xff]
    %v2301 = vld [vmem:[#allocation21 + $0x78] sm:$0xff]
    %v2302 = vld [vmem:[%s14] sm:$0x1]
    %v2304 = vperm.slane %v2302, 0
    %2306 = vmatpush.msra.mxu0 %v2301
    %2307 = vmatpush.msra.mxu0 %v2300
    %2308 = vmatpush.msra.mxu0 %v2299
    %2309 = vmatpush.msra.mxu0 %v2298
    %2310 = vmatpush.msra.mxu0 %v2297
    %2311 = vmatpush.msra.mxu0 %v2296
    %2312 = vmatpush.msra.mxu0 %v2295
    %2313 = vmatpush.msra.mxu0 %v2294
    %2314 = vmatpush.msra.mxu0 %v2293
    %2315 = vmatpush.msra.mxu0 %v2292
    %2316 = vmatpush.msra.mxu0 %v2291
    %2317 = vmatpush.msra.mxu0 %v2290
    %2318 = vmatpush.msra.mxu0 %v2289
    %2319 = vmatpush.msra.mxu0 %v2288
    %2320 = vmatpush.msra.mxu0 %v2287
    %2321 = vmatpush.msra.mxu0 %v2286
    %2322 = vmatmul.f32.gmra.mxu0 %v2278
    %v2323 = vpop.f32.mrf.mxu0
    %v2324 = vadd.f32 %v2304, %v2323
    %2325 = vmatmul.f32.gmra.mxu0 %v2279
    %v2326 = vpop.f32.mrf.mxu0
    %v2327 = vadd.f32 %v2304, %v2326
    %2328 = vmatmul.f32.gmra.mxu0 %v2280
    %v2329 = vpop.f32.mrf.mxu0
    %v2330 = vadd.f32 %v2304, %v2329
    %2331 = vmatmul.f32.gmra.mxu0 %v2281
    %v2332 = vpop.f32.mrf.mxu0
    %v2333 = vadd.f32 %v2304, %v2332
    %2334 = vmatmul.f32.gmra.mxu0 %v2282
    %v2335 = vpop.f32.mrf.mxu0
    %v2336 = vadd.f32 %v2304, %v2335
    %2337 = vmatmul.f32.gmra.mxu0 %v2283
    %v2338 = vpop.f32.mrf.mxu0
    %v2339 = vadd.f32 %v2304, %v2338
    %2340 = vmatmul.f32.gmra.mxu0 %v2284
    %v2341 = vpop.f32.mrf.mxu0
    %v2342 = vadd.f32 %v2304, %v2341
    %2343 = vmatmul.f32.gmra.mxu0 %v2285
    %v2344 = vpop.f32.mrf.mxu0
    %v2345 = vadd.f32 %v2304, %v2344
    %2346 = vdwg.mxu0
    %2347 = vst [vmem:[#allocation4 + $0x10] sm:$0xff] %v2324
    %2348 = vst [vmem:[#allocation4 + $0x18] sm:$0xff] %v2327
    %2349 = vst [vmem:[#allocation4 + $0x20] sm:$0xff] %v2330
    %2350 = vst [vmem:[#allocation4 + $0x28] sm:$0xff] %v2333
    %2351 = vst [vmem:[#allocation4 + $0x30] sm:$0xff] %v2336
    %2352 = vst [vmem:[#allocation4 + $0x38] sm:$0xff] %v2339
    %2353 = vst [vmem:[#allocation4 + $0x40] sm:$0xff] %v2342
    %2354 = vst [vmem:[#allocation4 + $0x48] sm:$0xff] %v2345
    %v2355 = vld [vmem:[%s16] sm:$0x1]
    %v2356 = vperm.slane %v2355, 0
    %v2357 = vadd.f32 %v2356, 0.0
    %v2358 = vld [vmem:[#allocation4] sm:$0xff]
    %v2359 = vld [vmem:[#allocation4 + $0x8] sm:$0xff]
    %v2360 = vld [vmem:[#allocation4 + $0x10] sm:$0xff]
    %v2361 = vld [vmem:[#allocation4 + $0x18] sm:$0xff]
    %v2362 = vld [vmem:[#allocation4 + $0x20] sm:$0xff]
    %v2363 = vld [vmem:[#allocation4 + $0x28] sm:$0xff]
    %v2364 = vld [vmem:[#allocation4 + $0x30] sm:$0xff]
    %v2365 = vld [vmem:[#allocation4 + $0x38] sm:$0xff]
    %v2366 = vld [vmem:[#allocation23] sm:$0xff]
    %v2367 = vld [vmem:[#allocation23 + $0x8] sm:$0xff]
    %v2368 = vld [vmem:[#allocation23 + $0x10] sm:$0xff]
    %v2369 = vld [vmem:[#allocation23 + $0x18] sm:$0xff]
    %v2370 = vld [vmem:[#allocation23 + $0x20] sm:$0xff]
    %v2371 = vld [vmem:[#allocation23 + $0x28] sm:$0xff]
    %v2372 = vld [vmem:[#allocation23 + $0x30] sm:$0xff]
    %v2373 = vld [vmem:[#allocation23 + $0x38] sm:$0xff]
    %v2374 = vld [vmem:[#allocation23 + $0x40] sm:$0xff]
    %v2375 = vld [vmem:[#allocation23 + $0x48] sm:$0xff]
    %v2376 = vld [vmem:[#allocation23 + $0x50] sm:$0xff]
    %v2377 = vld [vmem:[#allocation23 + $0x58] sm:$0xff]
    %v2378 = vld [vmem:[#allocation23 + $0x60] sm:$0xff]
    %v2379 = vld [vmem:[#allocation23 + $0x68] sm:$0xff]
    %v2380 = vld [vmem:[#allocation23 + $0x70] sm:$0xff]
    %v2381 = vld [vmem:[#allocation23 + $0x78] sm:$0xff]
    %2382 = vmatpush.msra.mxu0 %v2381
    %2383 = vmatpush.msra.mxu0 %v2380
    %2384 = vmatpush.msra.mxu0 %v2379
    %2385 = vmatpush.msra.mxu0 %v2378
    %2386 = vmatpush.msra.mxu0 %v2377
    %2387 = vmatpush.msra.mxu0 %v2376
    %2388 = vmatpush.msra.mxu0 %v2375
    %2389 = vmatpush.msra.mxu0 %v2374
    %2390 = vmatpush.msra.mxu0 %v2373
    %2391 = vmatpush.msra.mxu0 %v2372
    %2392 = vmatpush.msra.mxu0 %v2371
    %2393 = vmatpush.msra.mxu0 %v2370
    %2394 = vmatpush.msra.mxu0 %v2369
    %2395 = vmatpush.msra.mxu0 %v2368
    %2396 = vmatpush.msra.mxu0 %v2367
    %2397 = vmatpush.msra.mxu0 %v2366
    %2398 = vmatmul.f32.gmra.mxu0 %v2358
    %v2399 = vpop.f32.mrf.mxu0
    %v2400 = vadd.f32 0.0, %v2399
    %2401 = vmatmul.f32.gmra.mxu0 %v2359
    %v2402 = vpop.f32.mrf.mxu0
    %v2403 = vadd.f32 0.0, %v2402
    %2404 = vmatmul.f32.gmra.mxu0 %v2360
    %v2405 = vpop.f32.mrf.mxu0
    %v2406 = vadd.f32 0.0, %v2405
    %2407 = vmatmul.f32.gmra.mxu0 %v2361
    %v2408 = vpop.f32.mrf.mxu0
    %v2409 = vadd.f32 0.0, %v2408
    %2410 = vmatmul.f32.gmra.mxu0 %v2362
    %v2411 = vpop.f32.mrf.mxu0
    %v2412 = vadd.f32 0.0, %v2411
    %2413 = vmatmul.f32.gmra.mxu0 %v2363
    %v2414 = vpop.f32.mrf.mxu0
    %v2415 = vadd.f32 0.0, %v2414
    %2416 = vmatmul.f32.gmra.mxu0 %v2364
    %v2417 = vpop.f32.mrf.mxu0
    %v2418 = vadd.f32 0.0, %v2417
    %2419 = vmatmul.f32.gmra.mxu0 %v2365
    %v2420 = vpop.f32.mrf.mxu0
    %v2421 = vadd.f32 0.0, %v2420
    %2422 = vdwg.mxu0
    %v2423 = vadd.f32 %v2357, %v2400
    %v2424 = vadd.f32 %v2357, %v2403
    %v2425 = vadd.f32 %v2357, %v2406
    %v2426 = vadd.f32 %v2357, %v2409
    %v2427 = vadd.f32 %v2357, %v2412
    %v2428 = vadd.f32 %v2357, %v2415
    %v2429 = vadd.f32 %v2357, %v2418
    %v2430 = vadd.f32 %v2357, %v2421
    %v2431 = vld [vmem:[#allocation4 + $0x8] sm:$0xff]
    %v2432 = vld [vmem:[#allocation4 + $0x10] sm:$0xff]
    %v2433 = vld [vmem:[#allocation4 + $0x18] sm:$0xff]
    %v2434 = vld [vmem:[#allocation4 + $0x20] sm:$0xff]
    %v2435 = vld [vmem:[#allocation4 + $0x28] sm:$0xff]
    %v2436 = vld [vmem:[#allocation4 + $0x30] sm:$0xff]
    %v2437 = vld [vmem:[#allocation4 + $0x38] sm:$0xff]
    %v2438 = vld [vmem:[#allocation4 + $0x40] sm:$0xff]
    %s2439 = scalar_lea.vmem [#allocation23], 128
    %v2440 = vld [vmem:[%s2439] sm:$0xff]
    %v2441 = vld [vmem:[%s2439 + $0x8] sm:$0xff]
    %v2442 = vld [vmem:[%s2439 + $0x10] sm:$0xff]
    %v2443 = vld [vmem:[%s2439 + $0x18] sm:$0xff]
    %v2444 = vld [vmem:[%s2439 + $0x20] sm:$0xff]
    %v2445 = vld [vmem:[%s2439 + $0x28] sm:$0xff]
    %v2446 = vld [vmem:[%s2439 + $0x30] sm:$0xff]
    %v2447 = vld [vmem:[%s2439 + $0x38] sm:$0xff]
    %v2448 = vld [vmem:[%s2439 + $0x40] sm:$0xff]
    %v2449 = vld [vmem:[%s2439 + $0x48] sm:$0xff]
    %v2450 = vld [vmem:[%s2439 + $0x50] sm:$0xff]
    %v2451 = vld [vmem:[%s2439 + $0x58] sm:$0xff]
    %v2452 = vld [vmem:[%s2439 + $0x60] sm:$0xff]
    %v2453 = vld [vmem:[%s2439 + $0x68] sm:$0xff]
    %v2454 = vld [vmem:[%s2439 + $0x70] sm:$0xff]
    %v2455 = vld [vmem:[%s2439 + $0x78] sm:$0xff]
    %2456 = vmatpush.msra.mxu0 %v2455
    %2457 = vmatpush.msra.mxu0 %v2454
    %2458 = vmatpush.msra.mxu0 %v2453
    %2459 = vmatpush.msra.mxu0 %v2452
    %2460 = vmatpush.msra.mxu0 %v2451
    %2461 = vmatpush.msra.mxu0 %v2450
    %2462 = vmatpush.msra.mxu0 %v2449
    %2463 = vmatpush.msra.mxu0 %v2448
    %2464 = vmatpush.msra.mxu0 %v2447
    %2465 = vmatpush.msra.mxu0 %v2446
    %2466 = vmatpush.msra.mxu0 %v2445
    %2467 = vmatpush.msra.mxu0 %v2444
    %2468 = vmatpush.msra.mxu0 %v2443
    %2469 = vmatpush.msra.mxu0 %v2442
    %2470 = vmatpush.msra.mxu0 %v2441
    %2471 = vmatpush.msra.mxu0 %v2440
    %2472 = vmatmul.f32.gmra.mxu0 %v2431
    %v2473 = vpop.f32.mrf.mxu0
    %v2474 = vadd.f32 0.0, %v2473
    %2475 = vmatmul.f32.gmra.mxu0 %v2432
    %v2476 = vpop.f32.mrf.mxu0
    %v2477 = vadd.f32 0.0, %v2476
    %2478 = vmatmul.f32.gmra.mxu0 %v2433
    %v2479 = vpop.f32.mrf.mxu0
    %v2480 = vadd.f32 0.0, %v2479
    %2481 = vmatmul.f32.gmra.mxu0 %v2434
    %v2482 = vpop.f32.mrf.mxu0
    %v2483 = vadd.f32 0.0, %v2482
    %2484 = vmatmul.f32.gmra.mxu0 %v2435
    %v2485 = vpop.f32.mrf.mxu0
    %v2486 = vadd.f32 0.0, %v2485
    %2487 = vmatmul.f32.gmra.mxu0 %v2436
    %v2488 = vpop.f32.mrf.mxu0
    %v2489 = vadd.f32 0.0, %v2488
    %2490 = vmatmul.f32.gmra.mxu0 %v2437
    %v2491 = vpop.f32.mrf.mxu0
    %v2492 = vadd.f32 0.0, %v2491
    %2493 = vmatmul.f32.gmra.mxu0 %v2438
    %v2494 = vpop.f32.mrf.mxu0
    %v2495 = vadd.f32 0.0, %v2494
    %2496 = vdwg.mxu0
    %v2497 = vadd.f32 %v2423, %v2474
    %v2498 = vadd.f32 %v2424, %v2477
    %v2499 = vadd.f32 %v2425, %v2480
    %v2500 = vadd.f32 %v2426, %v2483
    %v2501 = vadd.f32 %v2427, %v2486
    %v2502 = vadd.f32 %v2428, %v2489
    %v2503 = vadd.f32 %v2429, %v2492
    %v2504 = vadd.f32 %v2430, %v2495
    %v2505 = vld [vmem:[#allocation4 + $0x10] sm:$0xff]
    %v2506 = vld [vmem:[#allocation4 + $0x18] sm:$0xff]
    %v2507 = vld [vmem:[#allocation4 + $0x20] sm:$0xff]
    %v2508 = vld [vmem:[#allocation4 + $0x28] sm:$0xff]
    %v2509 = vld [vmem:[#allocation4 + $0x30] sm:$0xff]
    %v2510 = vld [vmem:[#allocation4 + $0x38] sm:$0xff]
    %v2511 = vld [vmem:[#allocation4 + $0x40] sm:$0xff]
    %v2512 = vld [vmem:[#allocation4 + $0x48] sm:$0xff]
    %s2513 = scalar_lea.vmem [#allocation23], 256
    %v2514 = vld [vmem:[%s2513] sm:$0xff]
    %v2515 = vld [vmem:[%s2513 + $0x8] sm:$0xff]
    %v2516 = vld [vmem:[%s2513 + $0x10] sm:$0xff]
    %v2517 = vld [vmem:[%s2513 + $0x18] sm:$0xff]
    %v2518 = vld [vmem:[%s2513 + $0x20] sm:$0xff]
    %v2519 = vld [vmem:[%s2513 + $0x28] sm:$0xff]
    %v2520 = vld [vmem:[%s2513 + $0x30] sm:$0xff]
    %v2521 = vld [vmem:[%s2513 + $0x38] sm:$0xff]
    %v2522 = vld [vmem:[%s2513 + $0x40] sm:$0xff]
    %v2523 = vld [vmem:[%s2513 + $0x48] sm:$0xff]
    %v2524 = vld [vmem:[%s2513 + $0x50] sm:$0xff]
    %v2525 = vld [vmem:[%s2513 + $0x58] sm:$0xff]
    %v2526 = vld [vmem:[%s2513 + $0x60] sm:$0xff]
    %v2527 = vld [vmem:[%s2513 + $0x68] sm:$0xff]
    %v2528 = vld [vmem:[%s2513 + $0x70] sm:$0xff]
    %v2529 = vld [vmem:[%s2513 + $0x78] sm:$0xff]
    %2530 = vmatpush.msra.mxu0 %v2529
    %2531 = vmatpush.msra.mxu0 %v2528
    %2532 = vmatpush.msra.mxu0 %v2527
    %2533 = vmatpush.msra.mxu0 %v2526
    %2534 = vmatpush.msra.mxu0 %v2525
    %2535 = vmatpush.msra.mxu0 %v2524
    %2536 = vmatpush.msra.mxu0 %v2523
    %2537 = vmatpush.msra.mxu0 %v2522
    %2538 = vmatpush.msra.mxu0 %v2521
    %2539 = vmatpush.msra.mxu0 %v2520
    %2540 = vmatpush.msra.mxu0 %v2519
    %2541 = vmatpush.msra.mxu0 %v2518
    %2542 = vmatpush.msra.mxu0 %v2517
    %2543 = vmatpush.msra.mxu0 %v2516
    %2544 = vmatpush.msra.mxu0 %v2515
    %2545 = vmatpush.msra.mxu0 %v2514
    %2546 = vmatmul.f32.gmra.mxu0 %v2505
    %v2547 = vpop.f32.mrf.mxu0
    %v2548 = vadd.f32 0.0, %v2547
    %2549 = vmatmul.f32.gmra.mxu0 %v2506
    %v2550 = vpop.f32.mrf.mxu0
    %v2551 = vadd.f32 0.0, %v2550
    %2552 = vmatmul.f32.gmra.mxu0 %v2507
    %v2553 = vpop.f32.mrf.mxu0
    %v2554 = vadd.f32 0.0, %v2553
    %2555 = vmatmul.f32.gmra.mxu0 %v2508
    %v2556 = vpop.f32.mrf.mxu0
    %v2557 = vadd.f32 0.0, %v2556
    %2558 = vmatmul.f32.gmra.mxu0 %v2509
    %v2559 = vpop.f32.mrf.mxu0
    %v2560 = vadd.f32 0.0, %v2559
    %2561 = vmatmul.f32.gmra.mxu0 %v2510
    %v2562 = vpop.f32.mrf.mxu0
    %v2563 = vadd.f32 0.0, %v2562
    %2564 = vmatmul.f32.gmra.mxu0 %v2511
    %v2565 = vpop.f32.mrf.mxu0
    %v2566 = vadd.f32 0.0, %v2565
    %2567 = vmatmul.f32.gmra.mxu0 %v2512
    %v2568 = vpop.f32.mrf.mxu0
    %v2569 = vadd.f32 0.0, %v2568
    %2570 = vdwg.mxu0
    %v2571 = vadd.f32 %v2497, %v2548
    %v2572 = vadd.f32 %v2498, %v2551
    %v2573 = vadd.f32 %v2499, %v2554
    %v2574 = vadd.f32 %v2500, %v2557
    %v2575 = vadd.f32 %v2501, %v2560
    %v2576 = vadd.f32 %v2502, %v2563
    %v2577 = vadd.f32 %v2503, %v2566
    %v2578 = vadd.f32 %v2504, %v2569
    %v2579 = vld [vmem:[#allocation4 + $0x18] sm:$0xff]
    %v2580 = vld [vmem:[#allocation4 + $0x20] sm:$0xff]
    %v2581 = vld [vmem:[#allocation4 + $0x28] sm:$0xff]
    %v2582 = vld [vmem:[#allocation4 + $0x30] sm:$0xff]
    %v2583 = vld [vmem:[#allocation4 + $0x38] sm:$0xff]
    %v2584 = vld [vmem:[#allocation4 + $0x40] sm:$0xff]
    %v2585 = vld [vmem:[#allocation4 + $0x48] sm:$0xff]
    %v2586 = vld [vmem:[#allocation4 + $0x50] sm:$0xff]
    %s2587 = scalar_lea.vmem [#allocation23], 384
    %v2588 = vld [vmem:[%s2587] sm:$0xff]
    %v2589 = vld [vmem:[%s2587 + $0x8] sm:$0xff]
    %v2590 = vld [vmem:[%s2587 + $0x10] sm:$0xff]
    %v2591 = vld [vmem:[%s2587 + $0x18] sm:$0xff]
    %v2592 = vld [vmem:[%s2587 + $0x20] sm:$0xff]
    %v2593 = vld [vmem:[%s2587 + $0x28] sm:$0xff]
    %v2594 = vld [vmem:[%s2587 + $0x30] sm:$0xff]
    %v2595 = vld [vmem:[%s2587 + $0x38] sm:$0xff]
    %v2596 = vld [vmem:[%s2587 + $0x40] sm:$0xff]
    %v2597 = vld [vmem:[%s2587 + $0x48] sm:$0xff]
    %v2598 = vld [vmem:[%s2587 + $0x50] sm:$0xff]
    %v2599 = vld [vmem:[%s2587 + $0x58] sm:$0xff]
    %v2600 = vld [vmem:[%s2587 + $0x60] sm:$0xff]
    %v2601 = vld [vmem:[%s2587 + $0x68] sm:$0xff]
    %v2602 = vld [vmem:[%s2587 + $0x70] sm:$0xff]
    %v2603 = vld [vmem:[%s2587 + $0x78] sm:$0xff]
    %2604 = vmatpush.msra.mxu0 %v2603
    %2605 = vmatpush.msra.mxu0 %v2602
    %2606 = vmatpush.msra.mxu0 %v2601
    %2607 = vmatpush.msra.mxu0 %v2600
    %2608 = vmatpush.msra.mxu0 %v2599
    %2609 = vmatpush.msra.mxu0 %v2598
    %2610 = vmatpush.msra.mxu0 %v2597
    %2611 = vmatpush.msra.mxu0 %v2596
    %2612 = vmatpush.msra.mxu0 %v2595
    %2613 = vmatpush.msra.mxu0 %v2594
    %2614 = vmatpush.msra.mxu0 %v2593
    %2615 = vmatpush.msra.mxu0 %v2592
    %2616 = vmatpush.msra.mxu0 %v2591
    %2617 = vmatpush.msra.mxu0 %v2590
    %2618 = vmatpush.msra.mxu0 %v2589
    %2619 = vmatpush.msra.mxu0 %v2588
    %2620 = vmatmul.f32.gmra.mxu0 %v2579
    %v2621 = vpop.f32.mrf.mxu0
    %v2622 = vadd.f32 0.0, %v2621
    %2623 = vmatmul.f32.gmra.mxu0 %v2580
    %v2624 = vpop.f32.mrf.mxu0
    %v2625 = vadd.f32 0.0, %v2624
    %2626 = vmatmul.f32.gmra.mxu0 %v2581
    %v2627 = vpop.f32.mrf.mxu0
    %v2628 = vadd.f32 0.0, %v2627
    %2629 = vmatmul.f32.gmra.mxu0 %v2582
    %v2630 = vpop.f32.mrf.mxu0
    %v2631 = vadd.f32 0.0, %v2630
    %2632 = vmatmul.f32.gmra.mxu0 %v2583
    %v2633 = vpop.f32.mrf.mxu0
    %v2634 = vadd.f32 0.0, %v2633
    %2635 = vmatmul.f32.gmra.mxu0 %v2584
    %v2636 = vpop.f32.mrf.mxu0
    %v2637 = vadd.f32 0.0, %v2636
    %2638 = vmatmul.f32.gmra.mxu0 %v2585
    %v2639 = vpop.f32.mrf.mxu0
    %v2640 = vadd.f32 0.0, %v2639
    %2641 = vmatmul.f32.gmra.mxu0 %v2586
    %v2642 = vpop.f32.mrf.mxu0
    %v2643 = vadd.f32 0.0, %v2642
    %2644 = vdwg.mxu0
    %v2645 = vadd.f32 %v2571, %v2622
    %v2646 = vadd.f32 %v2572, %v2625
    %v2647 = vadd.f32 %v2573, %v2628
    %v2648 = vadd.f32 %v2574, %v2631
    %v2649 = vadd.f32 %v2575, %v2634
    %v2650 = vadd.f32 %v2576, %v2637
    %v2651 = vadd.f32 %v2577, %v2640
    %v2652 = vadd.f32 %v2578, %v2643
    %v2653 = vld [vmem:[#allocation4 + $0x20] sm:$0xff]
    %v2654 = vld [vmem:[#allocation4 + $0x28] sm:$0xff]
    %v2655 = vld [vmem:[#allocation4 + $0x30] sm:$0xff]
    %v2656 = vld [vmem:[#allocation4 + $0x38] sm:$0xff]
    %v2657 = vld [vmem:[#allocation4 + $0x40] sm:$0xff]
    %v2658 = vld [vmem:[#allocation4 + $0x48] sm:$0xff]
    %v2659 = vld [vmem:[#allocation4 + $0x50] sm:$0xff]
    %v2660 = vld [vmem:[#allocation4 + $0x58] sm:$0xff]
    %s2661 = scalar_lea.vmem [#allocation23], 512
    %v2662 = vld [vmem:[%s2661] sm:$0xff]
    %v2663 = vld [vmem:[%s2661 + $0x8] sm:$0xff]
    %v2664 = vld [vmem:[%s2661 + $0x10] sm:$0xff]
    %v2665 = vld [vmem:[%s2661 + $0x18] sm:$0xff]
    %v2666 = vld [vmem:[%s2661 + $0x20] sm:$0xff]
    %v2667 = vld [vmem:[%s2661 + $0x28] sm:$0xff]
    %v2668 = vld [vmem:[%s2661 + $0x30] sm:$0xff]
    %v2669 = vld [vmem:[%s2661 + $0x38] sm:$0xff]
    %v2670 = vld [vmem:[%s2661 + $0x40] sm:$0xff]
    %v2671 = vld [vmem:[%s2661 + $0x48] sm:$0xff]
    %v2672 = vld [vmem:[%s2661 + $0x50] sm:$0xff]
    %v2673 = vld [vmem:[%s2661 + $0x58] sm:$0xff]
    %v2674 = vld [vmem:[%s2661 + $0x60] sm:$0xff]
    %v2675 = vld [vmem:[%s2661 + $0x68] sm:$0xff]
    %v2676 = vld [vmem:[%s2661 + $0x70] sm:$0xff]
    %v2677 = vld [vmem:[%s2661 + $0x78] sm:$0xff]
    %2678 = vmatpush.msra.mxu0 %v2677
    %2679 = vmatpush.msra.mxu0 %v2676
    %2680 = vmatpush.msra.mxu0 %v2675
    %2681 = vmatpush.msra.mxu0 %v2674
    %2682 = vmatpush.msra.mxu0 %v2673
    %2683 = vmatpush.msra.mxu0 %v2672
    %2684 = vmatpush.msra.mxu0 %v2671
    %2685 = vmatpush.msra.mxu0 %v2670
    %2686 = vmatpush.msra.mxu0 %v2669
    %2687 = vmatpush.msra.mxu0 %v2668
    %2688 = vmatpush.msra.mxu0 %v2667
    %2689 = vmatpush.msra.mxu0 %v2666
    %2690 = vmatpush.msra.mxu0 %v2665
    %2691 = vmatpush.msra.mxu0 %v2664
    %2692 = vmatpush.msra.mxu0 %v2663
    %2693 = vmatpush.msra.mxu0 %v2662
    %2694 = vmatmul.f32.gmra.mxu0 %v2653
    %v2695 = vpop.f32.mrf.mxu0
    %v2696 = vadd.f32 0.0, %v2695
    %2697 = vmatmul.f32.gmra.mxu0 %v2654
    %v2698 = vpop.f32.mrf.mxu0
    %v2699 = vadd.f32 0.0, %v2698
    %2700 = vmatmul.f32.gmra.mxu0 %v2655
    %v2701 = vpop.f32.mrf.mxu0
    %v2702 = vadd.f32 0.0, %v2701
    %2703 = vmatmul.f32.gmra.mxu0 %v2656
    %v2704 = vpop.f32.mrf.mxu0
    %v2705 = vadd.f32 0.0, %v2704
    %2706 = vmatmul.f32.gmra.mxu0 %v2657
    %v2707 = vpop.f32.mrf.mxu0
    %v2708 = vadd.f32 0.0, %v2707
    %2709 = vmatmul.f32.gmra.mxu0 %v2658
    %v2710 = vpop.f32.mrf.mxu0
    %v2711 = vadd.f32 0.0, %v2710
    %2712 = vmatmul.f32.gmra.mxu0 %v2659
    %v2713 = vpop.f32.mrf.mxu0
    %v2714 = vadd.f32 0.0, %v2713
    %2715 = vmatmul.f32.gmra.mxu0 %v2660
    %v2716 = vpop.f32.mrf.mxu0
    %v2717 = vadd.f32 0.0, %v2716
    %2718 = vdwg.mxu0
    %v2719 = vadd.f32 %v2645, %v2696
    %v2720 = vadd.f32 %v2646, %v2699
    %v2721 = vadd.f32 %v2647, %v2702
    %v2722 = vadd.f32 %v2648, %v2705
    %v2723 = vadd.f32 %v2649, %v2708
    %v2724 = vadd.f32 %v2650, %v2711
    %v2725 = vadd.f32 %v2651, %v2714
    %v2726 = vadd.f32 %v2652, %v2717
    %v2727 = vadd.f32 %v2719, %v2505
    %v2728 = vadd.f32 %v2720, %v2506
    %v2729 = vadd.f32 %v2721, %v2507
    %v2730 = vadd.f32 %v2722, %v2508
    %v2731 = vadd.f32 %v2723, %v2509
    %v2732 = vadd.f32 %v2724, %v2510
    %v2733 = vadd.f32 %v2725, %v2511
    %v2734 = vadd.f32 %v2726, %v2512
    %2735 = vst [vmem:[#allocation5 + $0x10] sm:$0xff] %v2727
    %2736 = vst [vmem:[#allocation5 + $0x18] sm:$0xff] %v2728
    %2737 = vst [vmem:[#allocation5 + $0x20] sm:$0xff] %v2729
    %2738 = vst [vmem:[#allocation5 + $0x28] sm:$0xff] %v2730
    %2739 = vst [vmem:[#allocation5 + $0x30] sm:$0xff] %v2731
    %2740 = vst [vmem:[#allocation5 + $0x38] sm:$0xff] %v2732
    %2741 = vst [vmem:[#allocation5 + $0x40] sm:$0xff] %v2733
    %2742 = vst [vmem:[#allocation5 + $0x48] sm:$0xff] %v2734
    %v2743 = vld [vmem:[%s16 + $0x1] sm:$0x1]
    %v2744 = vperm.slane %v2743, 0
    %v2745 = vadd.f32 %v2744, 0.0
    %v2746 = vld [vmem:[#allocation5] sm:$0xff]
    %v2747 = vld [vmem:[#allocation5 + $0x8] sm:$0xff]
    %v2748 = vld [vmem:[#allocation5 + $0x10] sm:$0xff]
    %v2749 = vld [vmem:[#allocation5 + $0x18] sm:$0xff]
    %v2750 = vld [vmem:[#allocation5 + $0x20] sm:$0xff]
    %v2751 = vld [vmem:[#allocation5 + $0x28] sm:$0xff]
    %v2752 = vld [vmem:[#allocation5 + $0x30] sm:$0xff]
    %v2753 = vld [vmem:[#allocation5 + $0x38] sm:$0xff]
    %s2754 = scalar_lea.vmem [#allocation23], 640
    %v2755 = vld [vmem:[%s2754] sm:$0xff]
    %v2756 = vld [vmem:[%s2754 + $0x8] sm:$0xff]
    %v2757 = vld [vmem:[%s2754 + $0x10] sm:$0xff]
    %v2758 = vld [vmem:[%s2754 + $0x18] sm:$0xff]
    %v2759 = vld [vmem:[%s2754 + $0x20] sm:$0xff]
    %v2760 = vld [vmem:[%s2754 + $0x28] sm:$0xff]
    %v2761 = vld [vmem:[%s2754 + $0x30] sm:$0xff]
    %v2762 = vld [vmem:[%s2754 + $0x38] sm:$0xff]
    %v2763 = vld [vmem:[%s2754 + $0x40] sm:$0xff]
    %v2764 = vld [vmem:[%s2754 + $0x48] sm:$0xff]
    %v2765 = vld [vmem:[%s2754 + $0x50] sm:$0xff]
    %v2766 = vld [vmem:[%s2754 + $0x58] sm:$0xff]
    %v2767 = vld [vmem:[%s2754 + $0x60] sm:$0xff]
    %v2768 = vld [vmem:[%s2754 + $0x68] sm:$0xff]
    %v2769 = vld [vmem:[%s2754 + $0x70] sm:$0xff]
    %v2770 = vld [vmem:[%s2754 + $0x78] sm:$0xff]
    %2771 = vmatpush.msra.mxu0 %v2770
    %2772 = vmatpush.msra.mxu0 %v2769
    %2773 = vmatpush.msra.mxu0 %v2768
    %2774 = vmatpush.msra.mxu0 %v2767
    %2775 = vmatpush.msra.mxu0 %v2766
    %2776 = vmatpush.msra.mxu0 %v2765
    %2777 = vmatpush.msra.mxu0 %v2764
    %2778 = vmatpush.msra.mxu0 %v2763
    %2779 = vmatpush.msra.mxu0 %v2762
    %2780 = vmatpush.msra.mxu0 %v2761
    %2781 = vmatpush.msra.mxu0 %v2760
    %2782 = vmatpush.msra.mxu0 %v2759
    %2783 = vmatpush.msra.mxu0 %v2758
    %2784 = vmatpush.msra.mxu0 %v2757
    %2785 = vmatpush.msra.mxu0 %v2756
    %2786 = vmatpush.msra.mxu0 %v2755
    %2787 = vmatmul.f32.gmra.mxu0 %v2746
    %v2788 = vpop.f32.mrf.mxu0
    %v2789 = vadd.f32 0.0, %v2788
    %2790 = vmatmul.f32.gmra.mxu0 %v2747
    %v2791 = vpop.f32.mrf.mxu0
    %v2792 = vadd.f32 0.0, %v2791
    %2793 = vmatmul.f32.gmra.mxu0 %v2748
    %v2794 = vpop.f32.mrf.mxu0
    %v2795 = vadd.f32 0.0, %v2794
    %2796 = vmatmul.f32.gmra.mxu0 %v2749
    %v2797 = vpop.f32.mrf.mxu0
    %v2798 = vadd.f32 0.0, %v2797
    %2799 = vmatmul.f32.gmra.mxu0 %v2750
    %v2800 = vpop.f32.mrf.mxu0
    %v2801 = vadd.f32 0.0, %v2800
    %2802 = vmatmul.f32.gmra.mxu0 %v2751
    %v2803 = vpop.f32.mrf.mxu0
    %v2804 = vadd.f32 0.0, %v2803
    %2805 = vmatmul.f32.gmra.mxu0 %v2752
    %v2806 = vpop.f32.mrf.mxu0
    %v2807 = vadd.f32 0.0, %v2806
    %2808 = vmatmul.f32.gmra.mxu0 %v2753
    %v2809 = vpop.f32.mrf.mxu0
    %v2810 = vadd.f32 0.0, %v2809
    %2811 = vdwg.mxu0
    %v2812 = vadd.f32 %v2745, %v2789
    %v2813 = vadd.f32 %v2745, %v2792
    %v2814 = vadd.f32 %v2745, %v2795
    %v2815 = vadd.f32 %v2745, %v2798
    %v2816 = vadd.f32 %v2745, %v2801
    %v2817 = vadd.f32 %v2745, %v2804
    %v2818 = vadd.f32 %v2745, %v2807
    %v2819 = vadd.f32 %v2745, %v2810
    %v2820 = vld [vmem:[#allocation5 + $0x8] sm:$0xff]
    %v2821 = vld [vmem:[#allocation5 + $0x10] sm:$0xff]
    %v2822 = vld [vmem:[#allocation5 + $0x18] sm:$0xff]
    %v2823 = vld [vmem:[#allocation5 + $0x20] sm:$0xff]
    %v2824 = vld [vmem:[#allocation5 + $0x28] sm:$0xff]
    %v2825 = vld [vmem:[#allocation5 + $0x30] sm:$0xff]
    %v2826 = vld [vmem:[#allocation5 + $0x38] sm:$0xff]
    %v2827 = vld [vmem:[#allocation5 + $0x40] sm:$0xff]
    %s2828 = scalar_lea.vmem [#allocation23], 768
    %v2829 = vld [vmem:[%s2828] sm:$0xff]
    %v2830 = vld [vmem:[%s2828 + $0x8] sm:$0xff]
    %v2831 = vld [vmem:[%s2828 + $0x10] sm:$0xff]
    %v2832 = vld [vmem:[%s2828 + $0x18] sm:$0xff]
    %v2833 = vld [vmem:[%s2828 + $0x20] sm:$0xff]
    %v2834 = vld [vmem:[%s2828 + $0x28] sm:$0xff]
    %v2835 = vld [vmem:[%s2828 + $0x30] sm:$0xff]
    %v2836 = vld [vmem:[%s2828 + $0x38] sm:$0xff]
    %v2837 = vld [vmem:[%s2828 + $0x40] sm:$0xff]
    %v2838 = vld [vmem:[%s2828 + $0x48] sm:$0xff]
    %v2839 = vld [vmem:[%s2828 + $0x50] sm:$0xff]
    %v2840 = vld [vmem:[%s2828 + $0x58] sm:$0xff]
    %v2841 = vld [vmem:[%s2828 + $0x60] sm:$0xff]
    %v2842 = vld [vmem:[%s2828 + $0x68] sm:$0xff]
    %v2843 = vld [vmem:[%s2828 + $0x70] sm:$0xff]
    %v2844 = vld [vmem:[%s2828 + $0x78] sm:$0xff]
    %2845 = vmatpush.msra.mxu0 %v2844
    %2846 = vmatpush.msra.mxu0 %v2843
    %2847 = vmatpush.msra.mxu0 %v2842
    %2848 = vmatpush.msra.mxu0 %v2841
    %2849 = vmatpush.msra.mxu0 %v2840
    %2850 = vmatpush.msra.mxu0 %v2839
    %2851 = vmatpush.msra.mxu0 %v2838
    %2852 = vmatpush.msra.mxu0 %v2837
    %2853 = vmatpush.msra.mxu0 %v2836
    %2854 = vmatpush.msra.mxu0 %v2835
    %2855 = vmatpush.msra.mxu0 %v2834
    %2856 = vmatpush.msra.mxu0 %v2833
    %2857 = vmatpush.msra.mxu0 %v2832
    %2858 = vmatpush.msra.mxu0 %v2831
    %2859 = vmatpush.msra.mxu0 %v2830
    %2860 = vmatpush.msra.mxu0 %v2829
    %2861 = vmatmul.f32.gmra.mxu0 %v2820
    %v2862 = vpop.f32.mrf.mxu0
    %v2863 = vadd.f32 0.0, %v2862
    %2864 = vmatmul.f32.gmra.mxu0 %v2821
    %v2865 = vpop.f32.mrf.mxu0
    %v2866 = vadd.f32 0.0, %v2865
    %2867 = vmatmul.f32.gmra.mxu0 %v2822
    %v2868 = vpop.f32.mrf.mxu0
    %v2869 = vadd.f32 0.0, %v2868
    %2870 = vmatmul.f32.gmra.mxu0 %v2823
    %v2871 = vpop.f32.mrf.mxu0
    %v2872 = vadd.f32 0.0, %v2871
    %2873 = vmatmul.f32.gmra.mxu0 %v2824
    %v2874 = vpop.f32.mrf.mxu0
    %v2875 = vadd.f32 0.0, %v2874
    %2876 = vmatmul.f32.gmra.mxu0 %v2825
    %v2877 = vpop.f32.mrf.mxu0
    %v2878 = vadd.f32 0.0, %v2877
    %2879 = vmatmul.f32.gmra.mxu0 %v2826
    %v2880 = vpop.f32.mrf.mxu0
    %v2881 = vadd.f32 0.0, %v2880
    %2882 = vmatmul.f32.gmra.mxu0 %v2827
    %v2883 = vpop.f32.mrf.mxu0
    %v2884 = vadd.f32 0.0, %v2883
    %2885 = vdwg.mxu0
    %v2886 = vadd.f32 %v2812, %v2863
    %v2887 = vadd.f32 %v2813, %v2866
    %v2888 = vadd.f32 %v2814, %v2869
    %v2889 = vadd.f32 %v2815, %v2872
    %v2890 = vadd.f32 %v2816, %v2875
    %v2891 = vadd.f32 %v2817, %v2878
    %v2892 = vadd.f32 %v2818, %v2881
    %v2893 = vadd.f32 %v2819, %v2884
    %v2894 = vld [vmem:[#allocation5 + $0x10] sm:$0xff]
    %v2895 = vld [vmem:[#allocation5 + $0x18] sm:$0xff]
    %v2896 = vld [vmem:[#allocation5 + $0x20] sm:$0xff]
    %v2897 = vld [vmem:[#allocation5 + $0x28] sm:$0xff]
    %v2898 = vld [vmem:[#allocation5 + $0x30] sm:$0xff]
    %v2899 = vld [vmem:[#allocation5 + $0x38] sm:$0xff]
    %v2900 = vld [vmem:[#allocation5 + $0x40] sm:$0xff]
    %v2901 = vld [vmem:[#allocation5 + $0x48] sm:$0xff]
    %s2902 = scalar_lea.vmem [#allocation23], 896
    %v2903 = vld [vmem:[%s2902] sm:$0xff]
    %v2904 = vld [vmem:[%s2902 + $0x8] sm:$0xff]
    %v2905 = vld [vmem:[%s2902 + $0x10] sm:$0xff]
    %v2906 = vld [vmem:[%s2902 + $0x18] sm:$0xff]
    %v2907 = vld [vmem:[%s2902 + $0x20] sm:$0xff]
    %v2908 = vld [vmem:[%s2902 + $0x28] sm:$0xff]
    %v2909 = vld [vmem:[%s2902 + $0x30] sm:$0xff]
    %v2910 = vld [vmem:[%s2902 + $0x38] sm:$0xff]
    %v2911 = vld [vmem:[%s2902 + $0x40] sm:$0xff]
    %v2912 = vld [vmem:[%s2902 + $0x48] sm:$0xff]
    %v2913 = vld [vmem:[%s2902 + $0x50] sm:$0xff]
    %v2914 = vld [vmem:[%s2902 + $0x58] sm:$0xff]
    %v2915 = vld [vmem:[%s2902 + $0x60] sm:$0xff]
    %v2916 = vld [vmem:[%s2902 + $0x68] sm:$0xff]
    %v2917 = vld [vmem:[%s2902 + $0x70] sm:$0xff]
    %v2918 = vld [vmem:[%s2902 + $0x78] sm:$0xff]
    %2919 = vmatpush.msra.mxu0 %v2918
    %2920 = vmatpush.msra.mxu0 %v2917
    %2921 = vmatpush.msra.mxu0 %v2916
    %2922 = vmatpush.msra.mxu0 %v2915
    %2923 = vmatpush.msra.mxu0 %v2914
    %2924 = vmatpush.msra.mxu0 %v2913
    %2925 = vmatpush.msra.mxu0 %v2912
    %2926 = vmatpush.msra.mxu0 %v2911
    %2927 = vmatpush.msra.mxu0 %v2910
    %2928 = vmatpush.msra.mxu0 %v2909
    %2929 = vmatpush.msra.mxu0 %v2908
    %2930 = vmatpush.msra.mxu0 %v2907
    %2931 = vmatpush.msra.mxu0 %v2906
    %2932 = vmatpush.msra.mxu0 %v2905
    %2933 = vmatpush.msra.mxu0 %v2904
    %2934 = vmatpush.msra.mxu0 %v2903
    %2935 = vmatmul.f32.gmra.mxu0 %v2894
    %v2936 = vpop.f32.mrf.mxu0
    %v2937 = vadd.f32 0.0, %v2936
    %2938 = vmatmul.f32.gmra.mxu0 %v2895
    %v2939 = vpop.f32.mrf.mxu0
    %v2940 = vadd.f32 0.0, %v2939
    %2941 = vmatmul.f32.gmra.mxu0 %v2896
    %v2942 = vpop.f32.mrf.mxu0
    %v2943 = vadd.f32 0.0, %v2942
    %2944 = vmatmul.f32.gmra.mxu0 %v2897
    %v2945 = vpop.f32.mrf.mxu0
    %v2946 = vadd.f32 0.0, %v2945
    %2947 = vmatmul.f32.gmra.mxu0 %v2898
    %v2948 = vpop.f32.mrf.mxu0
    %v2949 = vadd.f32 0.0, %v2948
    %2950 = vmatmul.f32.gmra.mxu0 %v2899
    %v2951 = vpop.f32.mrf.mxu0
    %v2952 = vadd.f32 0.0, %v2951
    %2953 = vmatmul.f32.gmra.mxu0 %v2900
    %v2954 = vpop.f32.mrf.mxu0
    %v2955 = vadd.f32 0.0, %v2954
    %2956 = vmatmul.f32.gmra.mxu0 %v2901
    %v2957 = vpop.f32.mrf.mxu0
    %v2958 = vadd.f32 0.0, %v2957
    %2959 = vdwg.mxu0
    %v2960 = vadd.f32 %v2886, %v2937
    %v2961 = vadd.f32 %v2887, %v2940
    %v2962 = vadd.f32 %v2888, %v2943
    %v2963 = vadd.f32 %v2889, %v2946
    %v2964 = vadd.f32 %v2890, %v2949
    %v2965 = vadd.f32 %v2891, %v2952
    %v2966 = vadd.f32 %v2892, %v2955
    %v2967 = vadd.f32 %v2893, %v2958
    %v2968 = vld [vmem:[#allocation5 + $0x18] sm:$0xff]
    %v2969 = vld [vmem:[#allocation5 + $0x20] sm:$0xff]
    %v2970 = vld [vmem:[#allocation5 + $0x28] sm:$0xff]
    %v2971 = vld [vmem:[#allocation5 + $0x30] sm:$0xff]
    %v2972 = vld [vmem:[#allocation5 + $0x38] sm:$0xff]
    %v2973 = vld [vmem:[#allocation5 + $0x40] sm:$0xff]
    %v2974 = vld [vmem:[#allocation5 + $0x48] sm:$0xff]
    %v2975 = vld [vmem:[#allocation5 + $0x50] sm:$0xff]
    %s2976 = scalar_lea.vmem [#allocation23], 1024
    %v2977 = vld [vmem:[%s2976] sm:$0xff]
    %v2978 = vld [vmem:[%s2976 + $0x8] sm:$0xff]
    %v2979 = vld [vmem:[%s2976 + $0x10] sm:$0xff]
    %v2980 = vld [vmem:[%s2976 + $0x18] sm:$0xff]
    %v2981 = vld [vmem:[%s2976 + $0x20] sm:$0xff]
    %v2982 = vld [vmem:[%s2976 + $0x28] sm:$0xff]
    %v2983 = vld [vmem:[%s2976 + $0x30] sm:$0xff]
    %v2984 = vld [vmem:[%s2976 + $0x38] sm:$0xff]
    %v2985 = vld [vmem:[%s2976 + $0x40] sm:$0xff]
    %v2986 = vld [vmem:[%s2976 + $0x48] sm:$0xff]
    %v2987 = vld [vmem:[%s2976 + $0x50] sm:$0xff]
    %v2988 = vld [vmem:[%s2976 + $0x58] sm:$0xff]
    %v2989 = vld [vmem:[%s2976 + $0x60] sm:$0xff]
    %v2990 = vld [vmem:[%s2976 + $0x68] sm:$0xff]
    %v2991 = vld [vmem:[%s2976 + $0x70] sm:$0xff]
    %v2992 = vld [vmem:[%s2976 + $0x78] sm:$0xff]
    %2993 = vmatpush.msra.mxu0 %v2992
    %2994 = vmatpush.msra.mxu0 %v2991
    %2995 = vmatpush.msra.mxu0 %v2990
    %2996 = vmatpush.msra.mxu0 %v2989
    %2997 = vmatpush.msra.mxu0 %v2988
    %2998 = vmatpush.msra.mxu0 %v2987
    %2999 = vmatpush.msra.mxu0 %v2986
    %3000 = vmatpush.msra.mxu0 %v2985
    %3001 = vmatpush.msra.mxu0 %v2984
    %3002 = vmatpush.msra.mxu0 %v2983
    %3003 = vmatpush.msra.mxu0 %v2982
    %3004 = vmatpush.msra.mxu0 %v2981
    %3005 = vmatpush.msra.mxu0 %v2980
    %3006 = vmatpush.msra.mxu0 %v2979
    %3007 = vmatpush.msra.mxu0 %v2978
    %3008 = vmatpush.msra.mxu0 %v2977
    %3009 = vmatmul.f32.gmra.mxu0 %v2968
    %v3010 = vpop.f32.mrf.mxu0
    %v3011 = vadd.f32 0.0, %v3010
    %3012 = vmatmul.f32.gmra.mxu0 %v2969
    %v3013 = vpop.f32.mrf.mxu0
    %v3014 = vadd.f32 0.0, %v3013
    %3015 = vmatmul.f32.gmra.mxu0 %v2970
    %v3016 = vpop.f32.mrf.mxu0
    %v3017 = vadd.f32 0.0, %v3016
    %3018 = vmatmul.f32.gmra.mxu0 %v2971
    %v3019 = vpop.f32.mrf.mxu0
    %v3020 = vadd.f32 0.0, %v3019
    %3021 = vmatmul.f32.gmra.mxu0 %v2972
    %v3022 = vpop.f32.mrf.mxu0
    %v3023 = vadd.f32 0.0, %v3022
    %3024 = vmatmul.f32.gmra.mxu0 %v2973
    %v3025 = vpop.f32.mrf.mxu0
    %v3026 = vadd.f32 0.0, %v3025
    %3027 = vmatmul.f32.gmra.mxu0 %v2974
    %v3028 = vpop.f32.mrf.mxu0
    %v3029 = vadd.f32 0.0, %v3028
    %3030 = vmatmul.f32.gmra.mxu0 %v2975
    %v3031 = vpop.f32.mrf.mxu0
    %v3032 = vadd.f32 0.0, %v3031
    %3033 = vdwg.mxu0
    %v3034 = vadd.f32 %v2960, %v3011
    %v3035 = vadd.f32 %v2961, %v3014
    %v3036 = vadd.f32 %v2962, %v3017
    %v3037 = vadd.f32 %v2963, %v3020
    %v3038 = vadd.f32 %v2964, %v3023
    %v3039 = vadd.f32 %v2965, %v3026
    %v3040 = vadd.f32 %v2966, %v3029
    %v3041 = vadd.f32 %v2967, %v3032
    %v3042 = vld [vmem:[#allocation5 + $0x20] sm:$0xff]
    %v3043 = vld [vmem:[#allocation5 + $0x28] sm:$0xff]
    %v3044 = vld [vmem:[#allocation5 + $0x30] sm:$0xff]
    %v3045 = vld [vmem:[#allocation5 + $0x38] sm:$0xff]
    %v3046 = vld [vmem:[#allocation5 + $0x40] sm:$0xff]
    %v3047 = vld [vmem:[#allocation5 + $0x48] sm:$0xff]
    %v3048 = vld [vmem:[#allocation5 + $0x50] sm:$0xff]
    %v3049 = vld [vmem:[#allocation5 + $0x58] sm:$0xff]
    %s3050 = scalar_lea.vmem [#allocation23], 1152
    %v3051 = vld [vmem:[%s3050] sm:$0xff]
    %v3052 = vld [vmem:[%s3050 + $0x8] sm:$0xff]
    %v3053 = vld [vmem:[%s3050 + $0x10] sm:$0xff]
    %v3054 = vld [vmem:[%s3050 + $0x18] sm:$0xff]
    %v3055 = vld [vmem:[%s3050 + $0x20] sm:$0xff]
    %v3056 = vld [vmem:[%s3050 + $0x28] sm:$0xff]
    %v3057 = vld [vmem:[%s3050 + $0x30] sm:$0xff]
    %v3058 = vld [vmem:[%s3050 + $0x38] sm:$0xff]
    %v3059 = vld [vmem:[%s3050 + $0x40] sm:$0xff]
    %v3060 = vld [vmem:[%s3050 + $0x48] sm:$0xff]
    %v3061 = vld [vmem:[%s3050 + $0x50] sm:$0xff]
    %v3062 = vld [vmem:[%s3050 + $0x58] sm:$0xff]
    %v3063 = vld [vmem:[%s3050 + $0x60] sm:$0xff]
    %v3064 = vld [vmem:[%s3050 + $0x68] sm:$0xff]
    %v3065 = vld [vmem:[%s3050 + $0x70] sm:$0xff]
    %v3066 = vld [vmem:[%s3050 + $0x78] sm:$0xff]
    %3067 = vmatpush.msra.mxu0 %v3066
    %3068 = vmatpush.msra.mxu0 %v3065
    %3069 = vmatpush.msra.mxu0 %v3064
    %3070 = vmatpush.msra.mxu0 %v3063
    %3071 = vmatpush.msra.mxu0 %v3062
    %3072 = vmatpush.msra.mxu0 %v3061
    %3073 = vmatpush.msra.mxu0 %v3060
    %3074 = vmatpush.msra.mxu0 %v3059
    %3075 = vmatpush.msra.mxu0 %v3058
    %3076 = vmatpush.msra.mxu0 %v3057
    %3077 = vmatpush.msra.mxu0 %v3056
    %3078 = vmatpush.msra.mxu0 %v3055
    %3079 = vmatpush.msra.mxu0 %v3054
    %3080 = vmatpush.msra.mxu0 %v3053
    %3081 = vmatpush.msra.mxu0 %v3052
    %3082 = vmatpush.msra.mxu0 %v3051
    %3083 = vmatmul.f32.gmra.mxu0 %v3042
    %v3084 = vpop.f32.mrf.mxu0
    %v3085 = vadd.f32 0.0, %v3084
    %3086 = vmatmul.f32.gmra.mxu0 %v3043
    %v3087 = vpop.f32.mrf.mxu0
    %v3088 = vadd.f32 0.0, %v3087
    %3089 = vmatmul.f32.gmra.mxu0 %v3044
    %v3090 = vpop.f32.mrf.mxu0
    %v3091 = vadd.f32 0.0, %v3090
    %3092 = vmatmul.f32.gmra.mxu0 %v3045
    %v3093 = vpop.f32.mrf.mxu0
    %v3094 = vadd.f32 0.0, %v3093
    %3095 = vmatmul.f32.gmra.mxu0 %v3046
    %v3096 = vpop.f32.mrf.mxu0
    %v3097 = vadd.f32 0.0, %v3096
    %3098 = vmatmul.f32.gmra.mxu0 %v3047
    %v3099 = vpop.f32.mrf.mxu0
    %v3100 = vadd.f32 0.0, %v3099
    %3101 = vmatmul.f32.gmra.mxu0 %v3048
    %v3102 = vpop.f32.mrf.mxu0
    %v3103 = vadd.f32 0.0, %v3102
    %3104 = vmatmul.f32.gmra.mxu0 %v3049
    %v3105 = vpop.f32.mrf.mxu0
    %v3106 = vadd.f32 0.0, %v3105
    %3107 = vdwg.mxu0
    %v3108 = vadd.f32 %v3034, %v3085
    %v3109 = vadd.f32 %v3035, %v3088
    %v3110 = vadd.f32 %v3036, %v3091
    %v3111 = vadd.f32 %v3037, %v3094
    %v3112 = vadd.f32 %v3038, %v3097
    %v3113 = vadd.f32 %v3039, %v3100
    %v3114 = vadd.f32 %v3040, %v3103
    %v3115 = vadd.f32 %v3041, %v3106
    %v3116 = vadd.f32 %v3108, %v2894
    %v3117 = vadd.f32 %v3109, %v2895
    %v3118 = vadd.f32 %v3110, %v2896
    %v3119 = vadd.f32 %v3111, %v2897
    %v3120 = vadd.f32 %v3112, %v2898
    %v3121 = vadd.f32 %v3113, %v2899
    %v3122 = vadd.f32 %v3114, %v2900
    %v3123 = vadd.f32 %v3115, %v2901
    %3124 = vst [vmem:[#allocation5 + $0x10] sm:$0xff] %v3116
    %3125 = vst [vmem:[#allocation5 + $0x18] sm:$0xff] %v3117
    %3126 = vst [vmem:[#allocation5 + $0x20] sm:$0xff] %v3118
    %3127 = vst [vmem:[#allocation5 + $0x28] sm:$0xff] %v3119
    %3128 = vst [vmem:[#allocation5 + $0x30] sm:$0xff] %v3120
    %3129 = vst [vmem:[#allocation5 + $0x38] sm:$0xff] %v3121
    %3130 = vst [vmem:[#allocation5 + $0x40] sm:$0xff] %v3122
    %3131 = vst [vmem:[#allocation5 + $0x48] sm:$0xff] %v3123
    %v3132 = vld [vmem:[%s16 + $0x2] sm:$0x1]
    %v3133 = vperm.slane %v3132, 0
    %v3134 = vadd.f32 %v3133, 0.0
    %v3135 = vld [vmem:[#allocation5] sm:$0xff]
    %v3136 = vld [vmem:[#allocation5 + $0x8] sm:$0xff]
    %v3137 = vld [vmem:[#allocation5 + $0x10] sm:$0xff]
    %v3138 = vld [vmem:[#allocation5 + $0x18] sm:$0xff]
    %v3139 = vld [vmem:[#allocation5 + $0x20] sm:$0xff]
    %v3140 = vld [vmem:[#allocation5 + $0x28] sm:$0xff]
    %v3141 = vld [vmem:[#allocation5 + $0x30] sm:$0xff]
    %v3142 = vld [vmem:[#allocation5 + $0x38] sm:$0xff]
    %s3143 = scalar_lea.vmem [#allocation23], 1280
    %v3144 = vld [vmem:[%s3143] sm:$0xff]
    %v3145 = vld [vmem:[%s3143 + $0x8] sm:$0xff]
    %v3146 = vld [vmem:[%s3143 + $0x10] sm:$0xff]
    %v3147 = vld [vmem:[%s3143 + $0x18] sm:$0xff]
    %v3148 = vld [vmem:[%s3143 + $0x20] sm:$0xff]
    %v3149 = vld [vmem:[%s3143 + $0x28] sm:$0xff]
    %v3150 = vld [vmem:[%s3143 + $0x30] sm:$0xff]
    %v3151 = vld [vmem:[%s3143 + $0x38] sm:$0xff]
    %v3152 = vld [vmem:[%s3143 + $0x40] sm:$0xff]
    %v3153 = vld [vmem:[%s3143 + $0x48] sm:$0xff]
    %v3154 = vld [vmem:[%s3143 + $0x50] sm:$0xff]
    %v3155 = vld [vmem:[%s3143 + $0x58] sm:$0xff]
    %v3156 = vld [vmem:[%s3143 + $0x60] sm:$0xff]
    %v3157 = vld [vmem:[%s3143 + $0x68] sm:$0xff]
    %v3158 = vld [vmem:[%s3143 + $0x70] sm:$0xff]
    %v3159 = vld [vmem:[%s3143 + $0x78] sm:$0xff]
    %3160 = vmatpush.msra.mxu0 %v3159
    %3161 = vmatpush.msra.mxu0 %v3158
    %3162 = vmatpush.msra.mxu0 %v3157
    %3163 = vmatpush.msra.mxu0 %v3156
    %3164 = vmatpush.msra.mxu0 %v3155
    %3165 = vmatpush.msra.mxu0 %v3154
    %3166 = vmatpush.msra.mxu0 %v3153
    %3167 = vmatpush.msra.mxu0 %v3152
    %3168 = vmatpush.msra.mxu0 %v3151
    %3169 = vmatpush.msra.mxu0 %v3150
    %3170 = vmatpush.msra.mxu0 %v3149
    %3171 = vmatpush.msra.mxu0 %v3148
    %3172 = vmatpush.msra.mxu0 %v3147
    %3173 = vmatpush.msra.mxu0 %v3146
    %3174 = vmatpush.msra.mxu0 %v3145
    %3175 = vmatpush.msra.mxu0 %v3144
    %3176 = vmatmul.f32.gmra.mxu0 %v3135
    %v3177 = vpop.f32.mrf.mxu0
    %v3178 = vadd.f32 0.0, %v3177
    %3179 = vmatmul.f32.gmra.mxu0 %v3136
    %v3180 = vpop.f32.mrf.mxu0
    %v3181 = vadd.f32 0.0, %v3180
    %3182 = vmatmul.f32.gmra.mxu0 %v3137
    %v3183 = vpop.f32.mrf.mxu0
    %v3184 = vadd.f32 0.0, %v3183
    %3185 = vmatmul.f32.gmra.mxu0 %v3138
    %v3186 = vpop.f32.mrf.mxu0
    %v3187 = vadd.f32 0.0, %v3186
    %3188 = vmatmul.f32.gmra.mxu0 %v3139
    %v3189 = vpop.f32.mrf.mxu0
    %v3190 = vadd.f32 0.0, %v3189
    %3191 = vmatmul.f32.gmra.mxu0 %v3140
    %v3192 = vpop.f32.mrf.mxu0
    %v3193 = vadd.f32 0.0, %v3192
    %3194 = vmatmul.f32.gmra.mxu0 %v3141
    %v3195 = vpop.f32.mrf.mxu0
    %v3196 = vadd.f32 0.0, %v3195
    %3197 = vmatmul.f32.gmra.mxu0 %v3142
    %v3198 = vpop.f32.mrf.mxu0
    %v3199 = vadd.f32 0.0, %v3198
    %3200 = vdwg.mxu0
    %v3201 = vadd.f32 %v3134, %v3178
    %v3202 = vadd.f32 %v3134, %v3181
    %v3203 = vadd.f32 %v3134, %v3184
    %v3204 = vadd.f32 %v3134, %v3187
    %v3205 = vadd.f32 %v3134, %v3190
    %v3206 = vadd.f32 %v3134, %v3193
    %v3207 = vadd.f32 %v3134, %v3196
    %v3208 = vadd.f32 %v3134, %v3199
    %v3209 = vld [vmem:[#allocation5 + $0x8] sm:$0xff]
    %v3210 = vld [vmem:[#allocation5 + $0x10] sm:$0xff]
    %v3211 = vld [vmem:[#allocation5 + $0x18] sm:$0xff]
    %v3212 = vld [vmem:[#allocation5 + $0x20] sm:$0xff]
    %v3213 = vld [vmem:[#allocation5 + $0x28] sm:$0xff]
    %v3214 = vld [vmem:[#allocation5 + $0x30] sm:$0xff]
    %v3215 = vld [vmem:[#allocation5 + $0x38] sm:$0xff]
    %v3216 = vld [vmem:[#allocation5 + $0x40] sm:$0xff]
    %s3217 = scalar_lea.vmem [#allocation23], 1408
    %v3218 = vld [vmem:[%s3217] sm:$0xff]
    %v3219 = vld [vmem:[%s3217 + $0x8] sm:$0xff]
    %v3220 = vld [vmem:[%s3217 + $0x10] sm:$0xff]
    %v3221 = vld [vmem:[%s3217 + $0x18] sm:$0xff]
    %v3222 = vld [vmem:[%s3217 + $0x20] sm:$0xff]
    %v3223 = vld [vmem:[%s3217 + $0x28] sm:$0xff]
    %v3224 = vld [vmem:[%s3217 + $0x30] sm:$0xff]
    %v3225 = vld [vmem:[%s3217 + $0x38] sm:$0xff]
    %v3226 = vld [vmem:[%s3217 + $0x40] sm:$0xff]
    %v3227 = vld [vmem:[%s3217 + $0x48] sm:$0xff]
    %v3228 = vld [vmem:[%s3217 + $0x50] sm:$0xff]
    %v3229 = vld [vmem:[%s3217 + $0x58] sm:$0xff]
    %v3230 = vld [vmem:[%s3217 + $0x60] sm:$0xff]
    %v3231 = vld [vmem:[%s3217 + $0x68] sm:$0xff]
    %v3232 = vld [vmem:[%s3217 + $0x70] sm:$0xff]
    %v3233 = vld [vmem:[%s3217 + $0x78] sm:$0xff]
    %3234 = vmatpush.msra.mxu0 %v3233
    %3235 = vmatpush.msra.mxu0 %v3232
    %3236 = vmatpush.msra.mxu0 %v3231
    %3237 = vmatpush.msra.mxu0 %v3230
    %3238 = vmatpush.msra.mxu0 %v3229
    %3239 = vmatpush.msra.mxu0 %v3228
    %3240 = vmatpush.msra.mxu0 %v3227
    %3241 = vmatpush.msra.mxu0 %v3226
    %3242 = vmatpush.msra.mxu0 %v3225
    %3243 = vmatpush.msra.mxu0 %v3224
    %3244 = vmatpush.msra.mxu0 %v3223
    %3245 = vmatpush.msra.mxu0 %v3222
    %3246 = vmatpush.msra.mxu0 %v3221
    %3247 = vmatpush.msra.mxu0 %v3220
    %3248 = vmatpush.msra.mxu0 %v3219
    %3249 = vmatpush.msra.mxu0 %v3218
    %3250 = vmatmul.f32.gmra.mxu0 %v3209
    %v3251 = vpop.f32.mrf.mxu0
    %v3252 = vadd.f32 0.0, %v3251
    %3253 = vmatmul.f32.gmra.mxu0 %v3210
    %v3254 = vpop.f32.mrf.mxu0
    %v3255 = vadd.f32 0.0, %v3254
    %3256 = vmatmul.f32.gmra.mxu0 %v3211
    %v3257 = vpop.f32.mrf.mxu0
    %v3258 = vadd.f32 0.0, %v3257
    %3259 = vmatmul.f32.gmra.mxu0 %v3212
    %v3260 = vpop.f32.mrf.mxu0
    %v3261 = vadd.f32 0.0, %v3260
    %3262 = vmatmul.f32.gmra.mxu0 %v3213
    %v3263 = vpop.f32.mrf.mxu0
    %v3264 = vadd.f32 0.0, %v3263
    %3265 = vmatmul.f32.gmra.mxu0 %v3214
    %v3266 = vpop.f32.mrf.mxu0
    %v3267 = vadd.f32 0.0, %v3266
    %3268 = vmatmul.f32.gmra.mxu0 %v3215
    %v3269 = vpop.f32.mrf.mxu0
    %v3270 = vadd.f32 0.0, %v3269
    %3271 = vmatmul.f32.gmra.mxu0 %v3216
    %v3272 = vpop.f32.mrf.mxu0
    %v3273 = vadd.f32 0.0, %v3272
    %3274 = vdwg.mxu0
    %v3275 = vadd.f32 %v3201, %v3252
    %v3276 = vadd.f32 %v3202, %v3255
    %v3277 = vadd.f32 %v3203, %v3258
    %v3278 = vadd.f32 %v3204, %v3261
    %v3279 = vadd.f32 %v3205, %v3264
    %v3280 = vadd.f32 %v3206, %v3267
    %v3281 = vadd.f32 %v3207, %v3270
    %v3282 = vadd.f32 %v3208, %v3273
    %v3283 = vld [vmem:[#allocation5 + $0x10] sm:$0xff]
    %v3284 = vld [vmem:[#allocation5 + $0x18] sm:$0xff]
    %v3285 = vld [vmem:[#allocation5 + $0x20] sm:$0xff]
    %v3286 = vld [vmem:[#allocation5 + $0x28] sm:$0xff]
    %v3287 = vld [vmem:[#allocation5 + $0x30] sm:$0xff]
    %v3288 = vld [vmem:[#allocation5 + $0x38] sm:$0xff]
    %v3289 = vld [vmem:[#allocation5 + $0x40] sm:$0xff]
    %v3290 = vld [vmem:[#allocation5 + $0x48] sm:$0xff]
    %s3291 = scalar_lea.vmem [#allocation23], 1536
    %v3292 = vld [vmem:[%s3291] sm:$0xff]
    %v3293 = vld [vmem:[%s3291 + $0x8] sm:$0xff]
    %v3294 = vld [vmem:[%s3291 + $0x10] sm:$0xff]
    %v3295 = vld [vmem:[%s3291 + $0x18] sm:$0xff]
    %v3296 = vld [vmem:[%s3291 + $0x20] sm:$0xff]
    %v3297 = vld [vmem:[%s3291 + $0x28] sm:$0xff]
    %v3298 = vld [vmem:[%s3291 + $0x30] sm:$0xff]
    %v3299 = vld [vmem:[%s3291 + $0x38] sm:$0xff]
    %v3300 = vld [vmem:[%s3291 + $0x40] sm:$0xff]
    %v3301 = vld [vmem:[%s3291 + $0x48] sm:$0xff]
    %v3302 = vld [vmem:[%s3291 + $0x50] sm:$0xff]
    %v3303 = vld [vmem:[%s3291 + $0x58] sm:$0xff]
    %v3304 = vld [vmem:[%s3291 + $0x60] sm:$0xff]
    %v3305 = vld [vmem:[%s3291 + $0x68] sm:$0xff]
    %v3306 = vld [vmem:[%s3291 + $0x70] sm:$0xff]
    %v3307 = vld [vmem:[%s3291 + $0x78] sm:$0xff]
    %3308 = vmatpush.msra.mxu0 %v3307
    %3309 = vmatpush.msra.mxu0 %v3306
    %3310 = vmatpush.msra.mxu0 %v3305
    %3311 = vmatpush.msra.mxu0 %v3304
    %3312 = vmatpush.msra.mxu0 %v3303
    %3313 = vmatpush.msra.mxu0 %v3302
    %3314 = vmatpush.msra.mxu0 %v3301
    %3315 = vmatpush.msra.mxu0 %v3300
    %3316 = vmatpush.msra.mxu0 %v3299
    %3317 = vmatpush.msra.mxu0 %v3298
    %3318 = vmatpush.msra.mxu0 %v3297
    %3319 = vmatpush.msra.mxu0 %v3296
    %3320 = vmatpush.msra.mxu0 %v3295
    %3321 = vmatpush.msra.mxu0 %v3294
    %3322 = vmatpush.msra.mxu0 %v3293
    %3323 = vmatpush.msra.mxu0 %v3292
    %3324 = vmatmul.f32.gmra.mxu0 %v3283
    %v3325 = vpop.f32.mrf.mxu0
    %v3326 = vadd.f32 0.0, %v3325
    %3327 = vmatmul.f32.gmra.mxu0 %v3284
    %v3328 = vpop.f32.mrf.mxu0
    %v3329 = vadd.f32 0.0, %v3328
    %3330 = vmatmul.f32.gmra.mxu0 %v3285
    %v3331 = vpop.f32.mrf.mxu0
    %v3332 = vadd.f32 0.0, %v3331
    %3333 = vmatmul.f32.gmra.mxu0 %v3286
    %v3334 = vpop.f32.mrf.mxu0
    %v3335 = vadd.f32 0.0, %v3334
    %3336 = vmatmul.f32.gmra.mxu0 %v3287
    %v3337 = vpop.f32.mrf.mxu0
    %v3338 = vadd.f32 0.0, %v3337
    %3339 = vmatmul.f32.gmra.mxu0 %v3288
    %v3340 = vpop.f32.mrf.mxu0
    %v3341 = vadd.f32 0.0, %v3340
    %3342 = vmatmul.f32.gmra.mxu0 %v3289
    %v3343 = vpop.f32.mrf.mxu0
    %v3344 = vadd.f32 0.0, %v3343
    %3345 = vmatmul.f32.gmra.mxu0 %v3290
    %v3346 = vpop.f32.mrf.mxu0
    %v3347 = vadd.f32 0.0, %v3346
    %3348 = vdwg.mxu0
    %v3349 = vadd.f32 %v3275, %v3326
    %v3350 = vadd.f32 %v3276, %v3329
    %v3351 = vadd.f32 %v3277, %v3332
    %v3352 = vadd.f32 %v3278, %v3335
    %v3353 = vadd.f32 %v3279, %v3338
    %v3354 = vadd.f32 %v3280, %v3341
    %v3355 = vadd.f32 %v3281, %v3344
    %v3356 = vadd.f32 %v3282, %v3347
    %v3357 = vld [vmem:[#allocation5 + $0x18] sm:$0xff]
    %v3358 = vld [vmem:[#allocation5 + $0x20] sm:$0xff]
    %v3359 = vld [vmem:[#allocation5 + $0x28] sm:$0xff]
    %v3360 = vld [vmem:[#allocation5 + $0x30] sm:$0xff]
    %v3361 = vld [vmem:[#allocation5 + $0x38] sm:$0xff]
    %v3362 = vld [vmem:[#allocation5 + $0x40] sm:$0xff]
    %v3363 = vld [vmem:[#allocation5 + $0x48] sm:$0xff]
    %v3364 = vld [vmem:[#allocation5 + $0x50] sm:$0xff]
    %s3365 = scalar_lea.vmem [#allocation23], 1664
    %v3366 = vld [vmem:[%s3365] sm:$0xff]
    %v3367 = vld [vmem:[%s3365 + $0x8] sm:$0xff]
    %v3368 = vld [vmem:[%s3365 + $0x10] sm:$0xff]
    %v3369 = vld [vmem:[%s3365 + $0x18] sm:$0xff]
    %v3370 = vld [vmem:[%s3365 + $0x20] sm:$0xff]
    %v3371 = vld [vmem:[%s3365 + $0x28] sm:$0xff]
    %v3372 = vld [vmem:[%s3365 + $0x30] sm:$0xff]
    %v3373 = vld [vmem:[%s3365 + $0x38] sm:$0xff]
    %v3374 = vld [vmem:[%s3365 + $0x40] sm:$0xff]
    %v3375 = vld [vmem:[%s3365 + $0x48] sm:$0xff]
    %v3376 = vld [vmem:[%s3365 + $0x50] sm:$0xff]
    %v3377 = vld [vmem:[%s3365 + $0x58] sm:$0xff]
    %v3378 = vld [vmem:[%s3365 + $0x60] sm:$0xff]
    %v3379 = vld [vmem:[%s3365 + $0x68] sm:$0xff]
    %v3380 = vld [vmem:[%s3365 + $0x70] sm:$0xff]
    %v3381 = vld [vmem:[%s3365 + $0x78] sm:$0xff]
    %3382 = vmatpush.msra.mxu0 %v3381
    %3383 = vmatpush.msra.mxu0 %v3380
    %3384 = vmatpush.msra.mxu0 %v3379
    %3385 = vmatpush.msra.mxu0 %v3378
    %3386 = vmatpush.msra.mxu0 %v3377
    %3387 = vmatpush.msra.mxu0 %v3376
    %3388 = vmatpush.msra.mxu0 %v3375
    %3389 = vmatpush.msra.mxu0 %v3374
    %3390 = vmatpush.msra.mxu0 %v3373
    %3391 = vmatpush.msra.mxu0 %v3372
    %3392 = vmatpush.msra.mxu0 %v3371
    %3393 = vmatpush.msra.mxu0 %v3370
    %3394 = vmatpush.msra.mxu0 %v3369
    %3395 = vmatpush.msra.mxu0 %v3368
    %3396 = vmatpush.msra.mxu0 %v3367
    %3397 = vmatpush.msra.mxu0 %v3366
    %3398 = vmatmul.f32.gmra.mxu0 %v3357
    %v3399 = vpop.f32.mrf.mxu0
    %v3400 = vadd.f32 0.0, %v3399
    %3401 = vmatmul.f32.gmra.mxu0 %v3358
    %v3402 = vpop.f32.mrf.mxu0
    %v3403 = vadd.f32 0.0, %v3402
    %3404 = vmatmul.f32.gmra.mxu0 %v3359
    %v3405 = vpop.f32.mrf.mxu0
    %v3406 = vadd.f32 0.0, %v3405
    %3407 = vmatmul.f32.gmra.mxu0 %v3360
    %v3408 = vpop.f32.mrf.mxu0
    %v3409 = vadd.f32 0.0, %v3408
    %3410 = vmatmul.f32.gmra.mxu0 %v3361
    %v3411 = vpop.f32.mrf.mxu0
    %v3412 = vadd.f32 0.0, %v3411
    %3413 = vmatmul.f32.gmra.mxu0 %v3362
    %v3414 = vpop.f32.mrf.mxu0
    %v3415 = vadd.f32 0.0, %v3414
    %3416 = vmatmul.f32.gmra.mxu0 %v3363
    %v3417 = vpop.f32.mrf.mxu0
    %v3418 = vadd.f32 0.0, %v3417
    %3419 = vmatmul.f32.gmra.mxu0 %v3364
    %v3420 = vpop.f32.mrf.mxu0
    %v3421 = vadd.f32 0.0, %v3420
    %3422 = vdwg.mxu0
    %v3423 = vadd.f32 %v3349, %v3400
    %v3424 = vadd.f32 %v3350, %v3403
    %v3425 = vadd.f32 %v3351, %v3406
    %v3426 = vadd.f32 %v3352, %v3409
    %v3427 = vadd.f32 %v3353, %v3412
    %v3428 = vadd.f32 %v3354, %v3415
    %v3429 = vadd.f32 %v3355, %v3418
    %v3430 = vadd.f32 %v3356, %v3421
    %v3431 = vld [vmem:[#allocation5 + $0x20] sm:$0xff]
    %v3432 = vld [vmem:[#allocation5 + $0x28] sm:$0xff]
    %v3433 = vld [vmem:[#allocation5 + $0x30] sm:$0xff]
    %v3434 = vld [vmem:[#allocation5 + $0x38] sm:$0xff]
    %v3435 = vld [vmem:[#allocation5 + $0x40] sm:$0xff]
    %v3436 = vld [vmem:[#allocation5 + $0x48] sm:$0xff]
    %v3437 = vld [vmem:[#allocation5 + $0x50] sm:$0xff]
    %v3438 = vld [vmem:[#allocation5 + $0x58] sm:$0xff]
    %s3439 = scalar_lea.vmem [#allocation23], 1792
    %v3440 = vld [vmem:[%s3439] sm:$0xff]
    %v3441 = vld [vmem:[%s3439 + $0x8] sm:$0xff]
    %v3442 = vld [vmem:[%s3439 + $0x10] sm:$0xff]
    %v3443 = vld [vmem:[%s3439 + $0x18] sm:$0xff]
    %v3444 = vld [vmem:[%s3439 + $0x20] sm:$0xff]
    %v3445 = vld [vmem:[%s3439 + $0x28] sm:$0xff]
    %v3446 = vld [vmem:[%s3439 + $0x30] sm:$0xff]
    %v3447 = vld [vmem:[%s3439 + $0x38] sm:$0xff]
    %v3448 = vld [vmem:[%s3439 + $0x40] sm:$0xff]
    %v3449 = vld [vmem:[%s3439 + $0x48] sm:$0xff]
    %v3450 = vld [vmem:[%s3439 + $0x50] sm:$0xff]
    %v3451 = vld [vmem:[%s3439 + $0x58] sm:$0xff]
    %v3452 = vld [vmem:[%s3439 + $0x60] sm:$0xff]
    %v3453 = vld [vmem:[%s3439 + $0x68] sm:$0xff]
    %v3454 = vld [vmem:[%s3439 + $0x70] sm:$0xff]
    %v3455 = vld [vmem:[%s3439 + $0x78] sm:$0xff]
    %3456 = vmatpush.msra.mxu0 %v3455
    %3457 = vmatpush.msra.mxu0 %v3454
    %3458 = vmatpush.msra.mxu0 %v3453
    %3459 = vmatpush.msra.mxu0 %v3452
    %3460 = vmatpush.msra.mxu0 %v3451
    %3461 = vmatpush.msra.mxu0 %v3450
    %3462 = vmatpush.msra.mxu0 %v3449
    %3463 = vmatpush.msra.mxu0 %v3448
    %3464 = vmatpush.msra.mxu0 %v3447
    %3465 = vmatpush.msra.mxu0 %v3446
    %3466 = vmatpush.msra.mxu0 %v3445
    %3467 = vmatpush.msra.mxu0 %v3444
    %3468 = vmatpush.msra.mxu0 %v3443
    %3469 = vmatpush.msra.mxu0 %v3442
    %3470 = vmatpush.msra.mxu0 %v3441
    %3471 = vmatpush.msra.mxu0 %v3440
    %3472 = vmatmul.f32.gmra.mxu0 %v3431
    %v3473 = vpop.f32.mrf.mxu0
    %v3474 = vadd.f32 0.0, %v3473
    %3475 = vmatmul.f32.gmra.mxu0 %v3432
    %v3476 = vpop.f32.mrf.mxu0
    %v3477 = vadd.f32 0.0, %v3476
    %3478 = vmatmul.f32.gmra.mxu0 %v3433
    %v3479 = vpop.f32.mrf.mxu0
    %v3480 = vadd.f32 0.0, %v3479
    %3481 = vmatmul.f32.gmra.mxu0 %v3434
    %v3482 = vpop.f32.mrf.mxu0
    %v3483 = vadd.f32 0.0, %v3482
    %3484 = vmatmul.f32.gmra.mxu0 %v3435
    %v3485 = vpop.f32.mrf.mxu0
    %v3486 = vadd.f32 0.0, %v3485
    %3487 = vmatmul.f32.gmra.mxu0 %v3436
    %v3488 = vpop.f32.mrf.mxu0
    %v3489 = vadd.f32 0.0, %v3488
    %3490 = vmatmul.f32.gmra.mxu0 %v3437
    %v3491 = vpop.f32.mrf.mxu0
    %v3492 = vadd.f32 0.0, %v3491
    %3493 = vmatmul.f32.gmra.mxu0 %v3438
    %v3494 = vpop.f32.mrf.mxu0
    %v3495 = vadd.f32 0.0, %v3494
    %3496 = vdwg.mxu0
    %v3497 = vadd.f32 %v3423, %v3474
    %v3498 = vadd.f32 %v3424, %v3477
    %v3499 = vadd.f32 %v3425, %v3480
    %v3500 = vadd.f32 %v3426, %v3483
    %v3501 = vadd.f32 %v3427, %v3486
    %v3502 = vadd.f32 %v3428, %v3489
    %v3503 = vadd.f32 %v3429, %v3492
    %v3504 = vadd.f32 %v3430, %v3495
    %v3505 = vadd.f32 %v3497, %v3283
    %v3506 = vadd.f32 %v3498, %v3284
    %v3507 = vadd.f32 %v3499, %v3285
    %v3508 = vadd.f32 %v3500, %v3286
    %v3509 = vadd.f32 %v3501, %v3287
    %v3510 = vadd.f32 %v3502, %v3288
    %v3511 = vadd.f32 %v3503, %v3289
    %v3512 = vadd.f32 %v3504, %v3290
    %3513 = vst [vmem:[#allocation5 + $0x10] sm:$0xff] %v3505
    %3514 = vst [vmem:[#allocation5 + $0x18] sm:$0xff] %v3506
    %3515 = vst [vmem:[#allocation5 + $0x20] sm:$0xff] %v3507
    %3516 = vst [vmem:[#allocation5 + $0x28] sm:$0xff] %v3508
    %3517 = vst [vmem:[#allocation5 + $0x30] sm:$0xff] %v3509
    %3518 = vst [vmem:[#allocation5 + $0x38] sm:$0xff] %v3510
    %3519 = vst [vmem:[#allocation5 + $0x40] sm:$0xff] %v3511
    %3520 = vst [vmem:[#allocation5 + $0x48] sm:$0xff] %v3512
    %v3521 = vld [vmem:[%s18] sm:$0x1]
    %v3523 = vperm.slane %v3521, 0
    %v3525 = vadd.f32 %v3523, 0.0
    %v3526 = vld [vmem:[#allocation4] sm:$0xff]
    %v3527 = vld [vmem:[#allocation4 + $0x8] sm:$0xff]
    %v3528 = vld [vmem:[#allocation4 + $0x10] sm:$0xff]
    %v3529 = vld [vmem:[#allocation4 + $0x18] sm:$0xff]
    %v3530 = vld [vmem:[#allocation4 + $0x20] sm:$0xff]
    %v3531 = vld [vmem:[#allocation4 + $0x28] sm:$0xff]
    %v3532 = vld [vmem:[#allocation4 + $0x30] sm:$0xff]
    %v3533 = vld [vmem:[#allocation4 + $0x38] sm:$0xff]
    %v3534 = vld [vmem:[%s17] sm:$0x1]
    %v3535 = vperm.slane %v3534, 0
    %v3536 = vmul.f32 %v3526, %v3535
    %v3537 = vmul.f32 %v3527, %v3535
    %v3538 = vmul.f32 %v3528, %v3535
    %v3539 = vmul.f32 %v3529, %v3535
    %v3540 = vmul.f32 %v3530, %v3535
    %v3541 = vmul.f32 %v3531, %v3535
    %v3542 = vmul.f32 %v3532, %v3535
    %v3543 = vmul.f32 %v3533, %v3535
    %v3544 = vadd.f32 %v3525, %v3536
    %v3545 = vadd.f32 %v3525, %v3537
    %v3546 = vadd.f32 %v3525, %v3538
    %v3547 = vadd.f32 %v3525, %v3539
    %v3548 = vadd.f32 %v3525, %v3540
    %v3549 = vadd.f32 %v3525, %v3541
    %v3550 = vadd.f32 %v3525, %v3542
    %v3551 = vadd.f32 %v3525, %v3543
    %v3552 = vld [vmem:[#allocation5] sm:$0xff]
    %v3553 = vld [vmem:[#allocation5 + $0x8] sm:$0xff]
    %v3554 = vld [vmem:[#allocation5 + $0x10] sm:$0xff]
    %v3555 = vld [vmem:[#allocation5 + $0x18] sm:$0xff]
    %v3556 = vld [vmem:[#allocation5 + $0x20] sm:$0xff]
    %v3557 = vld [vmem:[#allocation5 + $0x28] sm:$0xff]
    %v3558 = vld [vmem:[#allocation5 + $0x30] sm:$0xff]
    %v3559 = vld [vmem:[#allocation5 + $0x38] sm:$0xff]
    %s3560 = scalar_lea.vmem %s17, 8
    %v3561 = vld [vmem:[%s3560] sm:$0x1]
    %v3562 = vperm.slane %v3561, 0
    %v3563 = vmul.f32 %v3552, %v3562
    %v3564 = vmul.f32 %v3553, %v3562
    %v3565 = vmul.f32 %v3554, %v3562
    %v3566 = vmul.f32 %v3555, %v3562
    %v3567 = vmul.f32 %v3556, %v3562
    %v3568 = vmul.f32 %v3557, %v3562
    %v3569 = vmul.f32 %v3558, %v3562
    %v3570 = vmul.f32 %v3559, %v3562
    %v3571 = vadd.f32 %v3544, %v3563
    %v3572 = vadd.f32 %v3545, %v3564
    %v3573 = vadd.f32 %v3546, %v3565
    %v3574 = vadd.f32 %v3547, %v3566
    %v3575 = vadd.f32 %v3548, %v3567
    %v3576 = vadd.f32 %v3549, %v3568
    %v3577 = vadd.f32 %v3550, %v3569
    %v3578 = vadd.f32 %v3551, %v3570
    %v3579 = vld [vmem:[#allocation4 + $0x40] sm:$0xff]
    %v3580 = vld [vmem:[%s17 + $0x1] sm:$0x1]
    %v3581 = vperm.slane %v3580, 0
    %v3582 = vmul.f32 %v3527, %v3581
    %v3583 = vmul.f32 %v3528, %v3581
    %v3584 = vmul.f32 %v3529, %v3581
    %v3585 = vmul.f32 %v3530, %v3581
    %v3586 = vmul.f32 %v3531, %v3581
    %v3587 = vmul.f32 %v3532, %v3581
    %v3588 = vmul.f32 %v3533, %v3581
    %v3589 = vmul.f32 %v3579, %v3581
    %v3590 = vadd.f32 %v3571, %v3582
    %v3591 = vadd.f32 %v3572, %v3583
    %v3592 = vadd.f32 %v3573, %v3584
    %v3593 = vadd.f32 %v3574, %v3585
    %v3594 = vadd.f32 %v3575, %v3586
    %v3595 = vadd.f32 %v3576, %v3587
    %v3596 = vadd.f32 %v3577, %v3588
    %v3597 = vadd.f32 %v3578, %v3589
    %v3598 = vld [vmem:[#allocation5 + $0x40] sm:$0xff]
    %v3599 = vld [vmem:[%s3560 + $0x1] sm:$0x1]
    %v3600 = vperm.slane %v3599, 0
    %v3601 = vmul.f32 %v3553, %v3600
    %v3602 = vmul.f32 %v3554, %v3600
    %v3603 = vmul.f32 %v3555, %v3600
    %v3604 = vmul.f32 %v3556, %v3600
    %v3605 = vmul.f32 %v3557, %v3600
    %v3606 = vmul.f32 %v3558, %v3600
    %v3607 = vmul.f32 %v3559, %v3600
    %v3608 = vmul.f32 %v3598, %v3600
    %v3609 = vadd.f32 %v3590, %v3601
    %v3610 = vadd.f32 %v3591, %v3602
    %v3611 = vadd.f32 %v3592, %v3603
    %v3612 = vadd.f32 %v3593, %v3604
    %v3613 = vadd.f32 %v3594, %v3605
    %v3614 = vadd.f32 %v3595, %v3606
    %v3615 = vadd.f32 %v3596, %v3607
    %v3616 = vadd.f32 %v3597, %v3608
    %v3617 = vld [vmem:[#allocation4 + $0x48] sm:$0xff]
    %v3618 = vld [vmem:[%s17 + $0x2] sm:$0x1]
    %v3619 = vperm.slane %v3618, 0
    %v3620 = vmul.f32 %v3528, %v3619
    %v3621 = vmul.f32 %v3529, %v3619
    %v3622 = vmul.f32 %v3530, %v3619
    %v3623 = vmul.f32 %v3531, %v3619
    %v3624 = vmul.f32 %v3532, %v3619
    %v3625 = vmul.f32 %v3533, %v3619
    %v3626 = vmul.f32 %v3579, %v3619
    %v3627 = vmul.f32 %v3617, %v3619
    %v3628 = vadd.f32 %v3609, %v3620
    %v3629 = vadd.f32 %v3610, %v3621
    %v3630 = vadd.f32 %v3611, %v3622
    %v3631 = vadd.f32 %v3612, %v3623
    %v3632 = vadd.f32 %v3613, %v3624
    %v3633 = vadd.f32 %v3614, %v3625
    %v3634 = vadd.f32 %v3615, %v3626
    %v3635 = vadd.f32 %v3616, %v3627
    %v3636 = vld [vmem:[#allocation5 + $0x48] sm:$0xff]
    %v3637 = vld [vmem:[%s3560 + $0x2] sm:$0x1]
    %v3638 = vperm.slane %v3637, 0
    %v3639 = vmul.f32 %v3554, %v3638
    %v3640 = vmul.f32 %v3555, %v3638
    %v3641 = vmul.f32 %v3556, %v3638
    %v3642 = vmul.f32 %v3557, %v3638
    %v3643 = vmul.f32 %v3558, %v3638
    %v3644 = vmul.f32 %v3559, %v3638
    %v3645 = vmul.f32 %v3598, %v3638
    %v3646 = vmul.f32 %v3636, %v3638
    %v3647 = vadd.f32 %v3628, %v3639
    %v3648 = vadd.f32 %v3629, %v3640
    %v3649 = vadd.f32 %v3630, %v3641
    %v3650 = vadd.f32 %v3631, %v3642
    %v3651 = vadd.f32 %v3632, %v3643
    %v3652 = vadd.f32 %v3633, %v3644
    %v3653 = vadd.f32 %v3634, %v3645
    %v3654 = vadd.f32 %v3635, %v3646
    %v3655 = vld [vmem:[#allocation4 + $0x50] sm:$0xff]
    %v3656 = vld [vmem:[%s17 + $0x3] sm:$0x1]
    %v3657 = vperm.slane %v3656, 0
    %v3658 = vmul.f32 %v3529, %v3657
    %v3659 = vmul.f32 %v3530, %v3657
    %v3660 = vmul.f32 %v3531, %v3657
    %v3661 = vmul.f32 %v3532, %v3657
    %v3662 = vmul.f32 %v3533, %v3657
    %v3663 = vmul.f32 %v3579, %v3657
    %v3664 = vmul.f32 %v3617, %v3657
    %v3665 = vmul.f32 %v3655, %v3657
    %v3666 = vadd.f32 %v3647, %v3658
    %v3667 = vadd.f32 %v3648, %v3659
    %v3668 = vadd.f32 %v3649, %v3660
    %v3669 = vadd.f32 %v3650, %v3661
    %v3670 = vadd.f32 %v3651, %v3662
    %v3671 = vadd.f32 %v3652, %v3663
    %v3672 = vadd.f32 %v3653, %v3664
    %v3673 = vadd.f32 %v3654, %v3665
    %v3674 = vld [vmem:[#allocation5 + $0x50] sm:$0xff]
    %v3675 = vld [vmem:[%s3560 + $0x3] sm:$0x1]
    %v3676 = vperm.slane %v3675, 0
    %v3677 = vmul.f32 %v3555, %v3676
    %v3678 = vmul.f32 %v3556, %v3676
    %v3679 = vmul.f32 %v3557, %v3676
    %v3680 = vmul.f32 %v3558, %v3676
    %v3681 = vmul.f32 %v3559, %v3676
    %v3682 = vmul.f32 %v3598, %v3676
    %v3683 = vmul.f32 %v3636, %v3676
    %v3684 = vmul.f32 %v3674, %v3676
    %v3685 = vadd.f32 %v3666, %v3677
    %v3686 = vadd.f32 %v3667, %v3678
    %v3687 = vadd.f32 %v3668, %v3679
    %v3688 = vadd.f32 %v3669, %v3680
    %v3689 = vadd.f32 %v3670, %v3681
    %v3690 = vadd.f32 %v3671, %v3682
    %v3691 = vadd.f32 %v3672, %v3683
    %v3692 = vadd.f32 %v3673, %v3684
    %v3693 = vld [vmem:[#allocation4 + $0x20] sm:$0xff]
    %v3694 = vld [vmem:[#allocation4 + $0x28] sm:$0xff]
    %v3695 = vld [vmem:[#allocation4 + $0x30] sm:$0xff]
    %v3696 = vld [vmem:[#allocation4 + $0x38] sm:$0xff]
    %v3697 = vld [vmem:[#allocation4 + $0x40] sm:$0xff]
    %v3698 = vld [vmem:[#allocation4 + $0x48] sm:$0xff]
    %v3699 = vld [vmem:[#allocation4 + $0x50] sm:$0xff]
    %v3700 = vld [vmem:[#allocation4 + $0x58] sm:$0xff]
    %v3701 = vld [vmem:[%s17 + $0x4] sm:$0x1]
    %v3702 = vperm.slane %v3701, 0
    %v3703 = vmul.f32 %v3693, %v3702
    %v3704 = vmul.f32 %v3694, %v3702
    %v3705 = vmul.f32 %v3695, %v3702
    %v3706 = vmul.f32 %v3696, %v3702
    %v3707 = vmul.f32 %v3697, %v3702
    %v3708 = vmul.f32 %v3698, %v3702
    %v3709 = vmul.f32 %v3699, %v3702
    %v3710 = vmul.f32 %v3700, %v3702
    %v3711 = vadd.f32 %v3685, %v3703
    %v3712 = vadd.f32 %v3686, %v3704
    %v3713 = vadd.f32 %v3687, %v3705
    %v3714 = vadd.f32 %v3688, %v3706
    %v3715 = vadd.f32 %v3689, %v3707
    %v3716 = vadd.f32 %v3690, %v3708
    %v3717 = vadd.f32 %v3691, %v3709
    %v3718 = vadd.f32 %v3692, %v3710
    %v3719 = vld [vmem:[#allocation5 + $0x20] sm:$0xff]
    %v3720 = vld [vmem:[#allocation5 + $0x28] sm:$0xff]
    %v3721 = vld [vmem:[#allocation5 + $0x30] sm:$0xff]
    %v3722 = vld [vmem:[#allocation5 + $0x38] sm:$0xff]
    %v3723 = vld [vmem:[#allocation5 + $0x40] sm:$0xff]
    %v3724 = vld [vmem:[#allocation5 + $0x48] sm:$0xff]
    %v3725 = vld [vmem:[#allocation5 + $0x50] sm:$0xff]
    %v3726 = vld [vmem:[#allocation5 + $0x58] sm:$0xff]
    %v3727 = vld [vmem:[%s3560 + $0x4] sm:$0x1]
    %v3728 = vperm.slane %v3727, 0
    %v3729 = vmul.f32 %v3719, %v3728
    %v3730 = vmul.f32 %v3720, %v3728
    %v3731 = vmul.f32 %v3721, %v3728
    %v3732 = vmul.f32 %v3722, %v3728
    %v3733 = vmul.f32 %v3723, %v3728
    %v3734 = vmul.f32 %v3724, %v3728
    %v3735 = vmul.f32 %v3725, %v3728
    %v3736 = vmul.f32 %v3726, %v3728
    %v3737 = vadd.f32 %v3711, %v3729
    %v3738 = vadd.f32 %v3712, %v3730
    %v3739 = vadd.f32 %v3713, %v3731
    %v3740 = vadd.f32 %v3714, %v3732
    %v3741 = vadd.f32 %v3715, %v3733
    %v3742 = vadd.f32 %v3716, %v3734
    %v3743 = vadd.f32 %v3717, %v3735
    %v3744 = vadd.f32 %v3718, %v3736
    %3745 = vst [vmem:[#allocation24] sm:$0xff] %v3737
    %3746 = vst [vmem:[#allocation24 + $0x8] sm:$0xff] %v3738
    %3747 = vst [vmem:[#allocation24 + $0x10] sm:$0xff] %v3739
    %3748 = vst [vmem:[#allocation24 + $0x18] sm:$0xff] %v3740
    %3749 = vst [vmem:[#allocation24 + $0x20] sm:$0xff] %v3741
    %3750 = vst [vmem:[#allocation24 + $0x28] sm:$0xff] %v3742
    %3751 = vst [vmem:[#allocation24 + $0x30] sm:$0xff] %v3743
    %3752 = vst [vmem:[#allocation24 + $0x38] sm:$0xff] %v3744
    // Predicated region
    $region150: #{tpu_custom_call.1} parent=1 // pred_check
      _
    $region151: #{tpu_custom_call.1} parent=1 // pred_check_branch
      %3754 = sbr.rel (0) target = $region153
    $region152: #{tpu_custom_call.1} parent=1 // pred_region
      %3756 = vsyncadd [#allocation8], 0
      %s3757 = sshll.u32 [#allocation24], 4
      %s3758 = int_to_ptr.vmem [resolvable:$true] %s3757
      %s3759 = sshll.u32 %s19, 4
      %s3760 = int_to_ptr.hbm [resolvable:$true] %s3759
      %3765 = dma.vmem_to_hbm [thread:$0]  %s3758, 1024, %s3760, [#allocation8], 128, 128, 8
    $region153: #{tpu_custom_call.1} parent=1 // pred_fallthru
      _
    // Predicated region
    $region154: #{tpu_custom_call.1} parent=1 // pred_check
      _
    $region155: #{tpu_custom_call.1} parent=1 // pred_check_branch
      %3767 = sbr.rel (0) target = $region157
    $region156: #{tpu_custom_call.1} parent=1 // pred_region
      %3769 = dma.done [#allocation8], 1024
    $region157: #{tpu_custom_call.1} parent=1 // pred_fallthru
      _
    %3770 = vsyncpa [#allocation7], 1
    %3771 = vsyncpa [#allocation10], 1
    %3772 = vsyncpa [#allocation13], 1
    %3773 = vsyncpa [#allocation16], 1
    %3774 = vsyncpa [#allocation19], 1
    %3775 = vsyncpa [#allocation22], 1
    %3776 = vsyncpa [#allocation8], 1

</llo_original>
